<compile_context>
chip_gen: v6e
topology: v6e:2x2x1
jax: 0.10.0
libtpu: 0.0.40
codegen_flags: <defaults>
</compile_context>

<pallas_src>
import math

import jax
import jax.numpy as jnp
from jax.experimental import pallas as pl
from jax.experimental.pallas import tpu as pltpu

NHEAD = 4
FF_DIM = 2048          # nn.TransformerEncoderLayer default dim_feedforward
LN_EPS = 1e-5          # nn.TransformerEncoderLayer default layer_norm_eps
NEG_INF = -1e30


# ----------------------------------------------------------------------------
# Fused Pallas kernel: 2 encoder layers (grid) + classifier
# ----------------------------------------------------------------------------
def _layer_norm(x, gamma, beta):
    mu = jnp.mean(x, axis=-1, keepdims=True)
    var = jnp.mean((x - mu) ** 2, axis=-1, keepdims=True)
    return (x - mu) * jax.lax.rsqrt(var + LN_EPS) * gamma + beta


def logbert_kernel(x_ref, mask_ref,
                   wqkv_ref, bqkv_ref, wo_ref, small_ref,
                   w1_ref, b1_ref, w2_ref,
                   wc_ref, bc_ref,
                   logits_ref, xout_ref,
                   x_sc):
    l = pl.program_id(0)

    @pl.when(l == 0)
    def _():
        x_sc[...] = x_ref[...]             # load the embeddings once

    x = x_sc[...]                          # (B*S, D) carried activations, f32
    BS, D = x.shape
    mask_add = mask_ref[...]               # (B, 1, S) additive key-padding mask
    B = mask_add.shape[0]
    S = BS // B
    H = NHEAD
    Hd = D // H
    scale = 1.0 / math.sqrt(Hd)

    # ---- fused QKV projection: ONE bf16 matmul per layer --------------------
    # wqkv columns = [Wq^T | Wk^T | Wv^T], zero-padded to 128 lanes.
    qkv = jnp.dot(x.astype(jnp.bfloat16), wqkv_ref[...],
                  preferred_element_type=jnp.float32) + bqkv_ref[...]

    def head(base, h):                     # static lane slice, layout-preserving reshape
        return qkv[:, base + h * Hd: base + (h + 1) * Hd].reshape(B, S, Hd)

    # per-head score matmuls (trailing-dim contraction, no transposes),
    # stacked on a new leading head axis so mask+softmax run ONCE per layer.
    s = jnp.stack(
        [jnp.einsum('bqd,bkd->bqk', head(0, h), head(D, h),
                    preferred_element_type=jnp.float32) for h in range(H)],
        axis=1) * scale                    # (B, H, S, S)
    s = s + mask_add.reshape(B, 1, 1, S)
    s = s - jnp.max(s, axis=-1, keepdims=True)
    p = jnp.exp(s)
    p = p * pl.reciprocal(jnp.sum(p, axis=-1, keepdims=True), approx=True)

    # per-head PV matmuls; head concat is a free lane concat -> (BS, D) slab
    o = jnp.concatenate(
        [jnp.einsum('bqk,bkd->bqd', p[:, h], head(2 * D, h),
                    preferred_element_type=jnp.float32).reshape(BS, Hd)
         for h in range(H)], axis=-1)      # (BS, D)

    # ---- fused output projection: ONE (BS,D)@(D,D) matmul -------------------
    attn = jnp.dot(o.astype(jnp.bfloat16), wo_ref[...],
                   preferred_element_type=jnp.float32) + small_ref[0:1, :]

    # ---- residual + LayerNorm 1 (post-norm) ---------------------------------
    x1 = _layer_norm(x + attn, small_ref[2:3, :], small_ref[3:4, :])

    # ---- feed-forward: Linear -> ReLU -> Linear (bf16 weights) --------------
    h1 = jnp.dot(x1.astype(jnp.bfloat16), w1_ref[...],
                 preferred_element_type=jnp.float32) + b1_ref[...]
    h1 = jnp.maximum(h1, 0.0)
    h2 = jnp.dot(h1.astype(jnp.bfloat16), w2_ref[...],
                 preferred_element_type=jnp.float32) + small_ref[1:2, :]

    # ---- residual + LayerNorm 2 ---------------------------------------------
    xn = _layer_norm(x1 + h2, small_ref[4:5, :], small_ref[5:6, :])
    x_sc[...] = xn

    # ---- classifier only on the last layer (outputs stay VMEM-resident) -----
    @pl.when(l == pl.num_programs(0) - 1)
    def _():
        xout_ref[...] = xn
        logits_ref[...] = jnp.dot(xn.astype(jnp.bfloat16), wc_ref[...],
                                  preferred_element_type=jnp.float32) + bc_ref[...]


def logbert_fused(x2d, mask_add, params):
    BS, D = x2d.shape
    B, _, S = mask_add.shape
    L, _, QKVP = params["wqkv"].shape
    FF = params["w1"].shape[2]
    Vp = params["wc_p"].shape[1]

    grid_spec = pltpu.PrefetchScalarGridSpec(
        num_scalar_prefetch=0,
        grid=(L,),
        in_specs=[
            pl.BlockSpec((BS, D), lambda l: (0, 0)),             # x (resident)
            pl.BlockSpec((B, 1, S), lambda l: (0, 0, 0)),        # mask (resident)
            pl.BlockSpec((None, D, QKVP), lambda l: (l, 0, 0)),  # fused QKV weight (bf16)
            pl.BlockSpec((None, 1, QKVP), lambda l: (l, 0, 0)),  # fused QKV bias
            pl.BlockSpec((None, D, D), lambda l: (l, 0, 0)),     # out-proj weight (bf16)
            pl.BlockSpec((None, 6, D), lambda l: (l, 0, 0)),     # packed: bo,b2,ln1g,ln1b,ln2g,ln2b
            pl.BlockSpec((None, D, FF), lambda l: (l, 0, 0)),    # FF w1 (bf16)
            pl.BlockSpec((None, 1, FF), lambda l: (l, 0, 0)),    # FF b1
            pl.BlockSpec((None, FF, D), lambda l: (l, 0, 0)),    # FF w2 (bf16)
            pl.BlockSpec((D, Vp), lambda l: (0, 0)),             # classifier weight (bf16)
            pl.BlockSpec((1, Vp), lambda l: (0, 0)),             # classifier bias
        ],
        out_specs=(
            pl.BlockSpec((BS, Vp), lambda l: (0, 0)),            # logits (lane-dense)
            pl.BlockSpec((BS, D), lambda l: (0, 0)),             # final activations
        ),
        scratch_shapes=[pltpu.VMEM((BS, D), jnp.float32)],       # carried x
    )
    return pl.pallas_call(
        logbert_kernel,
        out_shape=(jax.ShapeDtypeStruct((BS, Vp), jnp.float32),
                   jax.ShapeDtypeStruct((BS, D), jnp.float32)),
        grid_spec=grid_spec,
        compiler_params=pltpu.CompilerParams(
            dimension_semantics=("arbitrary",),
            vmem_limit_bytes=32 * 1024 * 1024),
    )(x2d, mask_add,
      params["wqkv"], params["bqkv"], params["wo"], params["small"],
      params["w1"], params["b1"], params["w2"],
      params["wc_p"], params["bc_p"])


# ----------------------------------------------------------------------------
# Parameter construction (deterministic, synthetic, PyTorch-layout faithful)
# ----------------------------------------------------------------------------
def sinusoidal_positional_encoding(seq_len, dim):
    position = jnp.arange(seq_len, dtype=jnp.float32)[:, None]
    div_term = jnp.exp(jnp.arange(0, dim, 2, dtype=jnp.float32) * (-math.log(10000.0) / dim))
    pe = jnp.zeros((seq_len, dim), jnp.float32)
    pe = pe.at[:, 0::2].set(jnp.sin(position * div_term))
    pe = pe.at[:, 1::2].set(jnp.cos(position * div_term))
    return pe[None]                                           # (1, 512, dim)


def init_params(key, vocab_size, embed_dim, num_layers=2):
    D = embed_dim
    keys = iter(jax.random.split(key, 4 + 10 * num_layers))

    def nrm(shape, scale=0.05):
        return (scale * jax.random.normal(next(keys), shape)).astype(jnp.float32)

    # classifier padded to a 128-lane-dense output; weight stored bf16
    Vp = max(128, ((vocab_size + 127) // 128) * 128)
    wc = nrm((vocab_size, D))                                 # nn.Linear(D, vocab).weight
    bc = nrm((vocab_size,))
    wc_p = jnp.zeros((D, Vp), jnp.float32).at[:, :vocab_size].set(wc.T).astype(jnp.bfloat16)
    bc_p = jnp.zeros((1, Vp), jnp.float32).at[:, :vocab_size].set(bc)

    QKVP = max(128, ((3 * D + 127) // 128) * 128)             # lane-padded fused QKV width

    wqkv_l, bqkv_l, wo_l, small_l, w1_l, b1_l, w2_l = [], [], [], [], [], [], []
    for _ in range(num_layers):
        in_proj_w = nrm((3 * D, D))                           # MHA in_proj_weight (PyTorch layout)
        in_proj_b = nrm((3 * D,))
        wo = nrm((D, D)); bo = nrm((D,))                      # out_proj
        w1 = nrm((FF_DIM, D)); b1 = nrm((FF_DIM,))
        w2 = nrm((D, FF_DIM)); b2 = nrm((D,))

        # fused QKV weight: columns [Wq^T | Wk^T | Wv^T], zero-padded to 128 lanes
        wqkv = jnp.zeros((D, QKVP), jnp.float32).at[:, :3 * D].set(in_proj_w.T)
        bqkv = jnp.zeros((1, QKVP), jnp.float32).at[:, :3 * D].set(in_proj_b)
        wqkv_l.append(wqkv.astype(jnp.bfloat16))
        bqkv_l.append(bqkv)
        wo_l.append(wo.T.astype(jnp.bfloat16))                # (D, D) = out_proj.weight^T
        # packed small per-layer vectors: rows = bo, b2, ln1g, ln1b, ln2g, ln2b
        small_l.append(jnp.stack([bo, b2,
                                  jnp.ones((D,), jnp.float32),
                                  jnp.zeros((D,), jnp.float32),
                                  jnp.ones((D,), jnp.float32),
                                  jnp.zeros((D,), jnp.float32)]))
        w1_l.append(w1.T.astype(jnp.bfloat16))                # (D, FF_DIM)
        b1_l.append(b1.reshape(1, FF_DIM))
        w2_l.append(w2.T.astype(jnp.bfloat16))                # (FF_DIM, D)

    params = {
        "embedding": nrm((vocab_size + 1, D)),                # nn.Embedding(vocab+1, D)
        "pos_encoding": sinusoidal_positional_encoding(512, D),
        "wqkv": jnp.stack(wqkv_l), "bqkv": jnp.stack(bqkv_l),
        "wo": jnp.stack(wo_l), "small": jnp.stack(small_l),
        "w1": jnp.stack(w1_l), "b1": jnp.stack(b1_l), "w2": jnp.stack(w2_l),
        "wc_p": wc_p, "bc_p": bc_p,
    }
    return params


# ----------------------------------------------------------------------------
# Full forward pass
# ----------------------------------------------------------------------------
def logbert_forward(input_ids, params, vocab_size):
    B, S = input_ids.shape
    D = params["embedding"].shape[1]
    # embedding lookup + positional encoding (plain JAX glue)
    x = jnp.take(params["embedding"], input_ids, axis=0) + params["pos_encoding"][:, :S, :]
    # key padding mask: True where input_ids == 0 -> -inf additive on keys
    mask_add = jnp.where(input_ids == 0, NEG_INF, 0.0).astype(jnp.float32).reshape(B, 1, S)
    logits_p, x_final = logbert_fused(x.reshape(B * S, D).astype(jnp.float32),
                                      mask_add, params)
    logits = logits_p[:, :vocab_size].reshape(B, S, vocab_size)
    cls = x_final.reshape(B, S, D)[:, 0, :]
    return logits, cls


if __name__ == "__main__":
    vocab_size, embed_dim = 50, 32
    batch, seq = 2, 8

    key = jax.random.PRNGKey(0)
    k_params, k_ids = jax.random.split(key)

    params = init_params(k_params, vocab_size, embed_dim, num_layers=2)

    input_ids = jax.random.randint(k_ids, (batch, seq), 1, vocab_size + 1, dtype=jnp.int32)
    input_ids = input_ids.at[1, -2:].set(0)                    # some padding tokens

    logits, cls = logbert_forward(input_ids, params, vocab_size)
    logits, cls = jax.block_until_ready((logits, cls))

    assert logits.shape == (batch, seq, vocab_size)
    assert cls.shape == (batch, embed_dim)
    assert bool(jnp.all(jnp.isfinite(logits))) and bool(jnp.all(jnp.isfinite(cls)))
    print("KERNEL_OK")
</pallas_src>

<mosaic_0001>
module attributes {stable_mosaic.version = 11 : i64} {
  func.func @logbert_kernel(%arg0: i32, %arg1: memref<16x32xf32, #tpu.memory_space<vmem>>, %arg2: memref<2x1x8xf32, #tpu.memory_space<vmem>>, %arg3: memref<1x32x128xbf16, #tpu.memory_space<vmem>>, %arg4: memref<1x1x128xf32, #tpu.memory_space<vmem>>, %arg5: memref<1x32x32xbf16, #tpu.memory_space<vmem>>, %arg6: memref<1x6x32xf32, #tpu.memory_space<vmem>>, %arg7: memref<1x32x2048xbf16, #tpu.memory_space<vmem>>, %arg8: memref<1x1x2048xf32, #tpu.memory_space<vmem>>, %arg9: memref<1x2048x32xbf16, #tpu.memory_space<vmem>>, %arg10: memref<32x128xbf16, #tpu.memory_space<vmem>>, %arg11: memref<1x128xf32, #tpu.memory_space<vmem>>, %arg12: memref<16x128xf32, #tpu.memory_space<vmem>>, %arg13: memref<16x32xf32, #tpu.memory_space<vmem>>, %arg14: memref<16x32xf32, #tpu.memory_space<vmem>>) attributes {dimension_semantics = [#tpu.dimension_semantics<arbitrary>], iteration_bounds = array<i64: 2>, scalar_prefetch = 0 : i64, scratch_operands = 1 : i64, tpu.core_type = #tpu.core_type<tc>, window_params = [{pipeline_mode = #tpu.pipeline_mode<synchronous>, transform_indices = @transform_0, window_bounds = array<i64: 16, 32>}, {pipeline_mode = #tpu.pipeline_mode<synchronous>, transform_indices = @transform_1, window_bounds = array<i64: 2, 1, 8>}, {transform_indices = @transform_2, window_bounds = array<i64: 1, 32, 128>}, {transform_indices = @transform_3, window_bounds = array<i64: 1, 1, 128>}, {transform_indices = @transform_4, window_bounds = array<i64: 1, 32, 32>}, {transform_indices = @transform_5, window_bounds = array<i64: 1, 6, 32>}, {transform_indices = @transform_6, window_bounds = array<i64: 1, 32, 2048>}, {transform_indices = @transform_7, window_bounds = array<i64: 1, 1, 2048>}, {transform_indices = @transform_8, window_bounds = array<i64: 1, 2048, 32>}, {pipeline_mode = #tpu.pipeline_mode<synchronous>, transform_indices = @transform_9, window_bounds = array<i64: 32, 128>}, {pipeline_mode = #tpu.pipeline_mode<synchronous>, transform_indices = @transform_10, window_bounds = array<i64: 1, 128>}, {pipeline_mode = #tpu.pipeline_mode<synchronous>, transform_indices = @transform_11, window_bounds = array<i64: 16, 128>}, {pipeline_mode = #tpu.pipeline_mode<synchronous>, transform_indices = @transform_12, window_bounds = array<i64: 16, 32>}]} {
    %c0_i32 = arith.constant 0 : i32
    %0 = arith.cmpi eq, %arg0, %c0_i32 : i32
    %1 = arith.extui %0 : i1 to i32
    %c0_i32_0 = arith.constant 0 : i32
    %2 = arith.cmpi ne, %1, %c0_i32_0 : i32
    scf.if %2 {
      %c0_64 = arith.constant 0 : index
      %c0_65 = arith.constant 0 : index
      %162 = vector.load %arg1[%c0_64, %c0_65] : memref<16x32xf32, #tpu.memory_space<vmem>>, vector<16x32xf32>
      %c0_66 = arith.constant 0 : index
      %c0_67 = arith.constant 0 : index
      %163 = vector.load %arg14[%c0_66, %c0_67] : memref<16x32xf32, #tpu.memory_space<vmem>>, vector<16x32xf32>
      tpu.vector_store %arg14[%c0_66, %c0_67], %162 {strides = array<i32>} : memref<16x32xf32, #tpu.memory_space<vmem>>, vector<16x32xf32>,
    } else {
    }
    %c0 = arith.constant 0 : index
    %c0_1 = arith.constant 0 : index
    %3 = vector.load %arg14[%c0, %c0_1] : memref<16x32xf32, #tpu.memory_space<vmem>>, vector<16x32xf32>
    %c0_2 = arith.constant 0 : index
    %c0_3 = arith.constant 0 : index
    %c0_4 = arith.constant 0 : index
    %4 = vector.load %arg2[%c0_2, %c0_3, %c0_4] : memref<2x1x8xf32, #tpu.memory_space<vmem>>, vector<2x1x8xf32>
    %5 = arith.truncf %3 : vector<16x32xf32> to vector<16x32xbf16>
    %c0_5 = arith.constant 0 : index
    %c0_6 = arith.constant 0 : index
    %c0_7 = arith.constant 0 : index
    %6 = vector.load %arg3[%c0_5, %c0_6, %c0_7] : memref<1x32x128xbf16, #tpu.memory_space<vmem>>, vector<1x32x128xbf16>
    %7 = vector.shape_cast %6 : vector<1x32x128xbf16> to vector<32x128xbf16>
    %cst = arith.constant dense<0.000000e+00> : vector<16x128xf32>
    %8 = tpu.matmul %5, %7, %cst {dimension_numbers = #tpu.dot_dimension_numbers<[1], [0], [0], [1], [0, 0, 1, 1], [], []>} : vector<16x32xbf16>, vector<32x128xbf16>, vector<16x128xf32> -> vector<16x128xf32>
    %c0_8 = arith.constant 0 : index
    %c0_9 = arith.constant 0 : index
    %c0_10 = arith.constant 0 : index
    %9 = vector.load %arg4[%c0_8, %c0_9, %c0_10] : memref<1x1x128xf32, #tpu.memory_space<vmem>>, vector<1x1x128xf32>
    %10 = vector.shape_cast %9 : vector<1x1x128xf32> to vector<1x128xf32>
    %11 = vector.broadcast %10 : vector<1x128xf32> to vector<16x128xf32>
    %12 = arith.addf %8, %11 : vector<16x128xf32>
    %13 = vector.extract_strided_slice %12 {offsets = [0, 0], sizes = [16, 8], strides = [1, 1]} : vector<16x128xf32> to vector<16x8xf32>
    %14 = vector.shape_cast %13 : vector<16x8xf32> to vector<2x8x8xf32>
    %15 = vector.extract_strided_slice %12 {offsets = [0, 32], sizes = [16, 8], strides = [1, 1]} : vector<16x128xf32> to vector<16x8xf32>
    %16 = vector.shape_cast %15 : vector<16x8xf32> to vector<2x8x8xf32>
    "tpu.trace_start"() <{level = 10 : i32, message = "bqd,bkd->bqk"}> : () -> ()
    %cst_11 = arith.constant dense<0.000000e+00> : vector<2x8x8xf32>
    %17 = tpu.matmul %14, %16, %cst_11 {dimension_numbers = #tpu.dot_dimension_numbers<[2], [2], [1], [1], [0, 0, 0, 1, 1, 1], [0], [0]>} : vector<2x8x8xf32>, vector<2x8x8xf32>, vector<2x8x8xf32> -> vector<2x8x8xf32>
    "tpu.trace_stop"() : () -> ()
    %18 = vector.extract_strided_slice %12 {offsets = [0, 8], sizes = [16, 8], strides = [1, 1]} : vector<16x128xf32> to vector<16x8xf32>
    %19 = vector.shape_cast %18 : vector<16x8xf32> to vector<2x8x8xf32>
    %20 = vector.extract_strided_slice %12 {offsets = [0, 40], sizes = [16, 8], strides = [1, 1]} : vector<16x128xf32> to vector<16x8xf32>
    %21 = vector.shape_cast %20 : vector<16x8xf32> to vector<2x8x8xf32>
    "tpu.trace_start"() <{level = 10 : i32, message = "bqd,bkd->bqk"}> : () -> ()
    %cst_12 = arith.constant dense<0.000000e+00> : vector<2x8x8xf32>
    %22 = tpu.matmul %19, %21, %cst_12 {dimension_numbers = #tpu.dot_dimension_numbers<[2], [2], [1], [1], [0, 0, 0, 1, 1, 1], [0], [0]>} : vector<2x8x8xf32>, vector<2x8x8xf32>, vector<2x8x8xf32> -> vector<2x8x8xf32>
    "tpu.trace_stop"() : () -> ()
    %23 = vector.extract_strided_slice %12 {offsets = [0, 16], sizes = [16, 8], strides = [1, 1]} : vector<16x128xf32> to vector<16x8xf32>
    %24 = vector.shape_cast %23 : vector<16x8xf32> to vector<2x8x8xf32>
    %25 = vector.extract_strided_slice %12 {offsets = [0, 48], sizes = [16, 8], strides = [1, 1]} : vector<16x128xf32> to vector<16x8xf32>
    %26 = vector.shape_cast %25 : vector<16x8xf32> to vector<2x8x8xf32>
    "tpu.trace_start"() <{level = 10 : i32, message = "bqd,bkd->bqk"}> : () -> ()
    %cst_13 = arith.constant dense<0.000000e+00> : vector<2x8x8xf32>
    %27 = tpu.matmul %24, %26, %cst_13 {dimension_numbers = #tpu.dot_dimension_numbers<[2], [2], [1], [1], [0, 0, 0, 1, 1, 1], [0], [0]>} : vector<2x8x8xf32>, vector<2x8x8xf32>, vector<2x8x8xf32> -> vector<2x8x8xf32>
    "tpu.trace_stop"() : () -> ()
    %28 = vector.extract_strided_slice %12 {offsets = [0, 24], sizes = [16, 8], strides = [1, 1]} : vector<16x128xf32> to vector<16x8xf32>
    %29 = vector.shape_cast %28 : vector<16x8xf32> to vector<2x8x8xf32>
    %30 = vector.extract_strided_slice %12 {offsets = [0, 56], sizes = [16, 8], strides = [1, 1]} : vector<16x128xf32> to vector<16x8xf32>
    %31 = vector.shape_cast %30 : vector<16x8xf32> to vector<2x8x8xf32>
    "tpu.trace_start"() <{level = 10 : i32, message = "bqd,bkd->bqk"}> : () -> ()
    %cst_14 = arith.constant dense<0.000000e+00> : vector<2x8x8xf32>
    %32 = tpu.matmul %29, %31, %cst_14 {dimension_numbers = #tpu.dot_dimension_numbers<[2], [2], [1], [1], [0, 0, 0, 1, 1, 1], [0], [0]>} : vector<2x8x8xf32>, vector<2x8x8xf32>, vector<2x8x8xf32> -> vector<2x8x8xf32>
    "tpu.trace_stop"() : () -> ()
    %33 = vector.shape_cast %17 : vector<2x8x8xf32> to vector<2x1x8x8xf32>
    %34 = vector.shape_cast %22 : vector<2x8x8xf32> to vector<2x1x8x8xf32>
    %35 = vector.shape_cast %27 : vector<2x8x8xf32> to vector<2x1x8x8xf32>
    %36 = vector.shape_cast %32 : vector<2x8x8xf32> to vector<2x1x8x8xf32>
    %37 = tpu.concatenate %33, %34, %35, %36 in 1 : vector<2x1x8x8xf32>, vector<2x1x8x8xf32>, vector<2x1x8x8xf32>, vector<2x1x8x8xf32> -> vector<2x4x8x8xf32>
    %cst_15 = arith.constant 0.353553385 : f32
    %38 = vector.broadcast %cst_15 : f32 to vector<2x4x8x8xf32>
    %39 = arith.mulf %37, %38 : vector<2x4x8x8xf32>
    %40 = vector.shape_cast %4 : vector<2x1x8xf32> to vector<2x1x1x8xf32>
    %41 = vector.broadcast %40 : vector<2x1x1x8xf32> to vector<2x4x8x8xf32>
    %42 = arith.addf %39, %41 : vector<2x4x8x8xf32>
    %cst_16 = arith.constant dense<0xFF800000> : vector<2x4x8xf32>
    %43 = vector.multi_reduction <maximumf>, %42, %cst_16 [3] : vector<2x4x8x8xf32> to vector<2x4x8xf32>
    %44 = vector.shape_cast %43 : vector<2x4x8xf32> to vector<2x4x8x1xf32>
    %45 = vector.broadcast %44 : vector<2x4x8x1xf32> to vector<2x4x8x8xf32>
    %46 = arith.subf %42, %45 : vector<2x4x8x8xf32>
    %47 = math.exp %46 : vector<2x4x8x8xf32>
    %cst_17 = arith.constant dense<0.000000e+00> : vector<2x4x8xf32>
    %48 = vector.multi_reduction <add>, %47, %cst_17 [3] : vector<2x4x8x8xf32> to vector<2x4x8xf32>
    %49 = vector.shape_cast %48 : vector<2x4x8xf32> to vector<2x4x8x1xf32>
    %50 = tpu.reciprocal %49 {approx = true} : vector<2x4x8x1xf32> -> vector<2x4x8x1xf32>
    %51 = vector.broadcast %50 : vector<2x4x8x1xf32> to vector<2x4x8x8xf32>
    %52 = arith.mulf %47, %51 : vector<2x4x8x8xf32>
    %53 = vector.extract_strided_slice %52 {offsets = [0, 0, 0, 0], sizes = [2, 1, 8, 8], strides = [1, 1, 1, 1]} : vector<2x4x8x8xf32> to vector<2x1x8x8xf32>
    %54 = vector.shape_cast %53 : vector<2x1x8x8xf32> to vector<2x8x8xf32>
    %55 = vector.extract_strided_slice %12 {offsets = [0, 64], sizes = [16, 8], strides = [1, 1]} : vector<16x128xf32> to vector<16x8xf32>
    %56 = vector.shape_cast %55 : vector<16x8xf32> to vector<2x8x8xf32>
    "tpu.trace_start"() <{level = 10 : i32, message = "bqk,bkd->bqd"}> : () -> ()
    %cst_18 = arith.constant dense<0.000000e+00> : vector<2x8x8xf32>
    %57 = tpu.matmul %54, %56, %cst_18 {dimension_numbers = #tpu.dot_dimension_numbers<[2], [1], [1], [2], [0, 0, 0, 1, 1, 2], [0], [0]>} : vector<2x8x8xf32>, vector<2x8x8xf32>, vector<2x8x8xf32> -> vector<2x8x8xf32>
    "tpu.trace_stop"() : () -> ()
    %58 = vector.shape_cast %57 : vector<2x8x8xf32> to vector<16x8xf32>
    %59 = vector.extract_strided_slice %52 {offsets = [0, 1, 0, 0], sizes = [2, 1, 8, 8], strides = [1, 1, 1, 1]} : vector<2x4x8x8xf32> to vector<2x1x8x8xf32>
    %60 = vector.shape_cast %59 : vector<2x1x8x8xf32> to vector<2x8x8xf32>
    %61 = vector.extract_strided_slice %12 {offsets = [0, 72], sizes = [16, 8], strides = [1, 1]} : vector<16x128xf32> to vector<16x8xf32>
    %62 = vector.shape_cast %61 : vector<16x8xf32> to vector<2x8x8xf32>
    "tpu.trace_start"() <{level = 10 : i32, message = "bqk,bkd->bqd"}> : () -> ()
    %cst_19 = arith.constant dense<0.000000e+00> : vector<2x8x8xf32>
    %63 = tpu.matmul %60, %62, %cst_19 {dimension_numbers = #tpu.dot_dimension_numbers<[2], [1], [1], [2], [0, 0, 0, 1, 1, 2], [0], [0]>} : vector<2x8x8xf32>, vector<2x8x8xf32>, vector<2x8x8xf32> -> vector<2x8x8xf32>
    "tpu.trace_stop"() : () -> ()
    %64 = vector.shape_cast %63 : vector<2x8x8xf32> to vector<16x8xf32>
    %65 = vector.extract_strided_slice %52 {offsets = [0, 2, 0, 0], sizes = [2, 1, 8, 8], strides = [1, 1, 1, 1]} : vector<2x4x8x8xf32> to vector<2x1x8x8xf32>
    %66 = vector.shape_cast %65 : vector<2x1x8x8xf32> to vector<2x8x8xf32>
    %67 = vector.extract_strided_slice %12 {offsets = [0, 80], sizes = [16, 8], strides = [1, 1]} : vector<16x128xf32> to vector<16x8xf32>
    %68 = vector.shape_cast %67 : vector<16x8xf32> to vector<2x8x8xf32>
    "tpu.trace_start"() <{level = 10 : i32, message = "bqk,bkd->bqd"}> : () -> ()
    %cst_20 = arith.constant dense<0.000000e+00> : vector<2x8x8xf32>
    %69 = tpu.matmul %66, %68, %cst_20 {dimension_numbers = #tpu.dot_dimension_numbers<[2], [1], [1], [2], [0, 0, 0, 1, 1, 2], [0], [0]>} : vector<2x8x8xf32>, vector<2x8x8xf32>, vector<2x8x8xf32> -> vector<2x8x8xf32>
    "tpu.trace_stop"() : () -> ()
    %70 = vector.shape_cast %69 : vector<2x8x8xf32> to vector<16x8xf32>
    %71 = vector.extract_strided_slice %52 {offsets = [0, 3, 0, 0], sizes = [2, 1, 8, 8], strides = [1, 1, 1, 1]} : vector<2x4x8x8xf32> to vector<2x1x8x8xf32>
    %72 = vector.shape_cast %71 : vector<2x1x8x8xf32> to vector<2x8x8xf32>
    %73 = vector.extract_strided_slice %12 {offsets = [0, 88], sizes = [16, 8], strides = [1, 1]} : vector<16x128xf32> to vector<16x8xf32>
    %74 = vector.shape_cast %73 : vector<16x8xf32> to vector<2x8x8xf32>
    "tpu.trace_start"() <{level = 10 : i32, message = "bqk,bkd->bqd"}> : () -> ()
    %cst_21 = arith.constant dense<0.000000e+00> : vector<2x8x8xf32>
    %75 = tpu.matmul %72, %74, %cst_21 {dimension_numbers = #tpu.dot_dimension_numbers<[2], [1], [1], [2], [0, 0, 0, 1, 1, 2], [0], [0]>} : vector<2x8x8xf32>, vector<2x8x8xf32>, vector<2x8x8xf32> -> vector<2x8x8xf32>
    "tpu.trace_stop"() : () -> ()
    %76 = vector.shape_cast %75 : vector<2x8x8xf32> to vector<16x8xf32>
    %77 = tpu.concatenate %58, %64, %70, %76 in 1 : vector<16x8xf32>, vector<16x8xf32>, vector<16x8xf32>, vector<16x8xf32> -> vector<16x32xf32>
    %78 = arith.truncf %77 : vector<16x32xf32> to vector<16x32xbf16>
    %c0_22 = arith.constant 0 : index
    %c0_23 = arith.constant 0 : index
    %c0_24 = arith.constant 0 : index
    %79 = vector.load %arg5[%c0_22, %c0_23, %c0_24] : memref<1x32x32xbf16, #tpu.memory_space<vmem>>, vector<1x32x32xbf16>
    %80 = vector.shape_cast %79 : vector<1x32x32xbf16> to vector<32x32xbf16>
    %cst_25 = arith.constant dense<0.000000e+00> : vector<16x32xf32>
    %81 = tpu.matmul %78, %80, %cst_25 {dimension_numbers = #tpu.dot_dimension_numbers<[1], [0], [0], [1], [0, 0, 1, 1], [], []>} : vector<16x32xbf16>, vector<32x32xbf16>, vector<16x32xf32> -> vector<16x32xf32>
    %c0_26 = arith.constant 0 : index
    %c0_27 = arith.constant 0 : index
    %c0_28 = arith.constant 0 : index
    %82 = vector.load %arg6[%c0_26, %c0_27, %c0_28] : memref<1x6x32xf32, #tpu.memory_space<vmem>>, vector<1x1x32xf32>
    %83 = vector.shape_cast %82 : vector<1x1x32xf32> to vector<1x32xf32>
    %84 = vector.broadcast %83 : vector<1x32xf32> to vector<16x32xf32>
    %85 = arith.addf %81, %84 : vector<16x32xf32>
    %86 = arith.addf %3, %85 : vector<16x32xf32>
    %c0_29 = arith.constant 0 : index
    %c2 = arith.constant 2 : index
    %c0_30 = arith.constant 0 : index
    %87 = vector.load %arg6[%c0_29, %c2, %c0_30] : memref<1x6x32xf32, #tpu.memory_space<vmem>>, vector<1x1x32xf32>
    %88 = vector.shape_cast %87 : vector<1x1x32xf32> to vector<1x32xf32>
    %c0_31 = arith.constant 0 : index
    %c3 = arith.constant 3 : index
    %c0_32 = arith.constant 0 : index
    %89 = vector.load %arg6[%c0_31, %c3, %c0_32] : memref<1x6x32xf32, #tpu.memory_space<vmem>>, vector<1x1x32xf32>
    %90 = vector.shape_cast %89 : vector<1x1x32xf32> to vector<1x32xf32>
    %cst_33 = arith.constant dense<0.000000e+00> : vector<16xf32>
    %91 = vector.multi_reduction <add>, %86, %cst_33 [1] : vector<16x32xf32> to vector<16xf32>
    %92 = vector.shape_cast %91 : vector<16xf32> to vector<16x1xf32>
    %cst_34 = arith.constant 3.200000e+01 : f32
    %93 = vector.broadcast %cst_34 : f32 to vector<16x1xf32>
    %94 = arith.divf %92, %93 : vector<16x1xf32>
    %95 = vector.broadcast %94 : vector<16x1xf32> to vector<16x32xf32>
    %96 = arith.subf %86, %95 : vector<16x32xf32>
    %97 = arith.mulf %96, %96 : vector<16x32xf32>
    %cst_35 = arith.constant dense<0.000000e+00> : vector<16xf32>
    %98 = vector.multi_reduction <add>, %97, %cst_35 [1] : vector<16x32xf32> to vector<16xf32>
    %99 = vector.shape_cast %98 : vector<16xf32> to vector<16x1xf32>
    %cst_36 = arith.constant 3.200000e+01 : f32
    %100 = vector.broadcast %cst_36 : f32 to vector<16x1xf32>
    %101 = arith.divf %99, %100 : vector<16x1xf32>
    %102 = vector.broadcast %94 : vector<16x1xf32> to vector<16x32xf32>
    %103 = arith.subf %86, %102 : vector<16x32xf32>
    %cst_37 = arith.constant 9.99999974E-6 : f32
    %104 = vector.broadcast %cst_37 : f32 to vector<16x1xf32>
    %105 = arith.addf %101, %104 : vector<16x1xf32>
    %106 = math.rsqrt %105 : vector<16x1xf32>
    %107 = vector.broadcast %106 : vector<16x1xf32> to vector<16x32xf32>
    %108 = arith.mulf %103, %107 : vector<16x32xf32>
    %109 = vector.broadcast %88 : vector<1x32xf32> to vector<16x32xf32>
    %110 = arith.mulf %108, %109 : vector<16x32xf32>
    %111 = vector.broadcast %90 : vector<1x32xf32> to vector<16x32xf32>
    %112 = arith.addf %110, %111 : vector<16x32xf32>
    %113 = arith.truncf %112 : vector<16x32xf32> to vector<16x32xbf16>
    %c0_38 = arith.constant 0 : index
    %c0_39 = arith.constant 0 : index
    %c0_40 = arith.constant 0 : index
    %114 = vector.load %arg7[%c0_38, %c0_39, %c0_40] : memref<1x32x2048xbf16, #tpu.memory_space<vmem>>, vector<1x32x2048xbf16>
    %115 = vector.shape_cast %114 : vector<1x32x2048xbf16> to vector<32x2048xbf16>
    %cst_41 = arith.constant dense<0.000000e+00> : vector<16x2048xf32>
    %116 = tpu.matmul %113, %115, %cst_41 {dimension_numbers = #tpu.dot_dimension_numbers<[1], [0], [0], [1], [0, 0, 1, 1], [], []>} : vector<16x32xbf16>, vector<32x2048xbf16>, vector<16x2048xf32> -> vector<16x2048xf32>
    %c0_42 = arith.constant 0 : index
    %c0_43 = arith.constant 0 : index
    %c0_44 = arith.constant 0 : index
    %117 = vector.load %arg8[%c0_42, %c0_43, %c0_44] : memref<1x1x2048xf32, #tpu.memory_space<vmem>>, vector<1x1x2048xf32>
    %118 = vector.shape_cast %117 : vector<1x1x2048xf32> to vector<1x2048xf32>
    %119 = vector.broadcast %118 : vector<1x2048xf32> to vector<16x2048xf32>
    %120 = arith.addf %116, %119 : vector<16x2048xf32>
    %cst_45 = arith.constant 0.000000e+00 : f32
    %121 = vector.broadcast %cst_45 : f32 to vector<16x2048xf32>
    %122 = arith.maximumf %120, %121 : vector<16x2048xf32>
    %123 = arith.truncf %122 : vector<16x2048xf32> to vector<16x2048xbf16>
    %c0_46 = arith.constant 0 : index
    %c0_47 = arith.constant 0 : index
    %c0_48 = arith.constant 0 : index
    %124 = vector.load %arg9[%c0_46, %c0_47, %c0_48] : memref<1x2048x32xbf16, #tpu.memory_space<vmem>>, vector<1x2048x32xbf16>
    %125 = vector.shape_cast %124 : vector<1x2048x32xbf16> to vector<2048x32xbf16>
    %cst_49 = arith.constant dense<0.000000e+00> : vector<16x32xf32>
    %126 = tpu.matmul %123, %125, %cst_49 {dimension_numbers = #tpu.dot_dimension_numbers<[1], [0], [0], [1], [0, 0, 1, 1], [], []>} : vector<16x2048xbf16>, vector<2048x32xbf16>, vector<16x32xf32> -> vector<16x32xf32>
    %c0_50 = arith.constant 0 : index
    %c1 = arith.constant 1 : index
    %c0_51 = arith.constant 0 : index
    %127 = vector.load %arg6[%c0_50, %c1, %c0_51] : memref<1x6x32xf32, #tpu.memory_space<vmem>>, vector<1x1x32xf32>
    %128 = vector.shape_cast %127 : vector<1x1x32xf32> to vector<1x32xf32>
    %129 = vector.broadcast %128 : vector<1x32xf32> to vector<16x32xf32>
    %130 = arith.addf %126, %129 : vector<16x32xf32>
    %131 = arith.addf %112, %130 : vector<16x32xf32>
    %c0_52 = arith.constant 0 : index
    %c4 = arith.constant 4 : index
    %c0_53 = arith.constant 0 : index
    %132 = vector.load %arg6[%c0_52, %c4, %c0_53] : memref<1x6x32xf32, #tpu.memory_space<vmem>>, vector<1x1x32xf32>
    %133 = vector.shape_cast %132 : vector<1x1x32xf32> to vector<1x32xf32>
    %c0_54 = arith.constant 0 : index
    %c5 = arith.constant 5 : index
    %c0_55 = arith.constant 0 : index
    %134 = vector.load %arg6[%c0_54, %c5, %c0_55] : memref<1x6x32xf32, #tpu.memory_space<vmem>>, vector<1x1x32xf32>
    %135 = vector.shape_cast %134 : vector<1x1x32xf32> to vector<1x32xf32>
    %cst_56 = arith.constant dense<0.000000e+00> : vector<16xf32>
    %136 = vector.multi_reduction <add>, %131, %cst_56 [1] : vector<16x32xf32> to vector<16xf32>
    %137 = vector.shape_cast %136 : vector<16xf32> to vector<16x1xf32>
    %cst_57 = arith.constant 3.200000e+01 : f32
    %138 = vector.broadcast %cst_57 : f32 to vector<16x1xf32>
    %139 = arith.divf %137, %138 : vector<16x1xf32>
    %140 = vector.broadcast %139 : vector<16x1xf32> to vector<16x32xf32>
    %141 = arith.subf %131, %140 : vector<16x32xf32>
    %142 = arith.mulf %141, %141 : vector<16x32xf32>
    %cst_58 = arith.constant dense<0.000000e+00> : vector<16xf32>
    %143 = vector.multi_reduction <add>, %142, %cst_58 [1] : vector<16x32xf32> to vector<16xf32>
    %144 = vector.shape_cast %143 : vector<16xf32> to vector<16x1xf32>
    %cst_59 = arith.constant 3.200000e+01 : f32
    %145 = vector.broadcast %cst_59 : f32 to vector<16x1xf32>
    %146 = arith.divf %144, %145 : vector<16x1xf32>
    %147 = vector.broadcast %139 : vector<16x1xf32> to vector<16x32xf32>
    %148 = arith.subf %131, %147 : vector<16x32xf32>
    %cst_60 = arith.constant 9.99999974E-6 : f32
    %149 = vector.broadcast %cst_60 : f32 to vector<16x1xf32>
    %150 = arith.addf %146, %149 : vector<16x1xf32>
    %151 = math.rsqrt %150 : vector<16x1xf32>
    %152 = vector.broadcast %151 : vector<16x1xf32> to vector<16x32xf32>
    %153 = arith.mulf %148, %152 : vector<16x32xf32>
    %154 = vector.broadcast %133 : vector<1x32xf32> to vector<16x32xf32>
    %155 = arith.mulf %153, %154 : vector<16x32xf32>
    %156 = vector.broadcast %135 : vector<1x32xf32> to vector<16x32xf32>
    %157 = arith.addf %155, %156 : vector<16x32xf32>
    %c0_61 = arith.constant 0 : index
    %c0_62 = arith.constant 0 : index
    %158 = vector.load %arg14[%c0_61, %c0_62] : memref<16x32xf32, #tpu.memory_space<vmem>>, vector<16x32xf32>
    tpu.vector_store %arg14[%c0_61, %c0_62], %157 {strides = array<i32>} : memref<16x32xf32, #tpu.memory_space<vmem>>, vector<16x32xf32>,
    %c1_i32 = arith.constant 1 : i32
    %159 = arith.cmpi eq, %arg0, %c1_i32 : i32
    %160 = arith.extui %159 : i1 to i32
    %c0_i32_63 = arith.constant 0 : i32
    %161 = arith.cmpi ne, %160, %c0_i32_63 : i32
    scf.if %161 {
      %c0_64 = arith.constant 0 : index
      %c0_65 = arith.constant 0 : index
      %162 = vector.load %arg13[%c0_64, %c0_65] : memref<16x32xf32, #tpu.memory_space<vmem>>, vector<16x32xf32>
      tpu.vector_store %arg13[%c0_64, %c0_65], %157 {strides = array<i32>} : memref<16x32xf32, #tpu.memory_space<vmem>>, vector<16x32xf32>,
      %163 = arith.truncf %157 : vector<16x32xf32> to vector<16x32xbf16>
      %c0_66 = arith.constant 0 : index
      %c0_67 = arith.constant 0 : index
      %164 = vector.load %arg10[%c0_66, %c0_67] : memref<32x128xbf16, #tpu.memory_space<vmem>>, vector<32x128xbf16>
      %cst_68 = arith.constant dense<0.000000e+00> : vector<16x128xf32>
      %165 = tpu.matmul %163, %164, %cst_68 {dimension_numbers = #tpu.dot_dimension_numbers<[1], [0], [0], [1], [0, 0, 1, 1], [], []>} : vector<16x32xbf16>, vector<32x128xbf16>, vector<16x128xf32> -> vector<16x128xf32>
      %c0_69 = arith.constant 0 : index
      %c0_70 = arith.constant 0 : index
      %166 = vector.load %arg11[%c0_69, %c0_70] : memref<1x128xf32, #tpu.memory_space<vmem>>, vector<1x128xf32>
      %167 = vector.broadcast %166 : vector<1x128xf32> to vector<16x128xf32>
      %168 = arith.addf %165, %167 : vector<16x128xf32>
      %c0_71 = arith.constant 0 : index
      %c0_72 = arith.constant 0 : index
      %169 = vector.load %arg12[%c0_71, %c0_72] : memref<16x128xf32, #tpu.memory_space<vmem>>, vector<16x128xf32>
      tpu.vector_store %arg12[%c0_71, %c0_72], %168 {strides = array<i32>} : memref<16x128xf32, #tpu.memory_space<vmem>>, vector<16x128xf32>,
    } else {
    }
    return
  }
  func.func @transform_0(%arg0: i32) -> (i32, i32) {
    %c0_i32 = arith.constant 0 : i32
    %c0_i32_0 = arith.constant 0 : i32
    %c0_i32_1 = arith.constant 0 : i32
    return %c0_i32, %c0_i32_0 : i32, i32
  }
  func.func @transform_1(%arg0: i32) -> (i32, i32, i32) {
    %c0_i32 = arith.constant 0 : i32
    %c0_i32_0 = arith.constant 0 : i32
    %c0_i32_1 = arith.constant 0 : i32
    %c0_i32_2 = arith.constant 0 : i32
    return %c0_i32, %c0_i32_0, %c0_i32_1 : i32, i32, i32
  }
  func.func @transform_2(%arg0: i32) -> (i32, i32, i32) {
    %c0_i32 = arith.constant 0 : i32
    %c0_i32_0 = arith.constant 0 : i32
    %c0_i32_1 = arith.constant 0 : i32
    return %arg0, %c0_i32, %c0_i32_0 : i32, i32, i32
  }
  func.func @transform_3(%arg0: i32) -> (i32, i32, i32) {
    %c0_i32 = arith.constant 0 : i32
    %c0_i32_0 = arith.constant 0 : i32
    %c0_i32_1 = arith.constant 0 : i32
    return %arg0, %c0_i32, %c0_i32_0 : i32, i32, i32
  }
  func.func @transform_4(%arg0: i32) -> (i32, i32, i32) {
    %c0_i32 = arith.constant 0 : i32
    %c0_i32_0 = arith.constant 0 : i32
    %c0_i32_1 = arith.constant 0 : i32
    return %arg0, %c0_i32, %c0_i32_0 : i32, i32, i32
  }
  func.func @transform_5(%arg0: i32) -> (i32, i32, i32) {
    %c0_i32 = arith.constant 0 : i32
    %c0_i32_0 = arith.constant 0 : i32
    %c0_i32_1 = arith.constant 0 : i32
    return %arg0, %c0_i32, %c0_i32_0 : i32, i32, i32
  }
  func.func @transform_6(%arg0: i32) -> (i32, i32, i32) {
    %c0_i32 = arith.constant 0 : i32
    %c0_i32_0 = arith.constant 0 : i32
    %c0_i32_1 = arith.constant 0 : i32
    return %arg0, %c0_i32, %c0_i32_0 : i32, i32, i32
  }
  func.func @transform_7(%arg0: i32) -> (i32, i32, i32) {
    %c0_i32 = arith.constant 0 : i32
    %c0_i32_0 = arith.constant 0 : i32
    %c0_i32_1 = arith.constant 0 : i32
    return %arg0, %c0_i32, %c0_i32_0 : i32, i32, i32
  }
  func.func @transform_8(%arg0: i32) -> (i32, i32, i32) {
    %c0_i32 = arith.constant 0 : i32
    %c0_i32_0 = arith.constant 0 : i32
    %c0_i32_1 = arith.constant 0 : i32
    return %arg0, %c0_i32, %c0_i32_0 : i32, i32, i32
  }
  func.func @transform_9(%arg0: i32) -> (i32, i32) {
    %c0_i32 = arith.constant 0 : i32
    %c0_i32_0 = arith.constant 0 : i32
    %c0_i32_1 = arith.constant 0 : i32
    return %c0_i32, %c0_i32_0 : i32, i32
  }
  func.func @transform_10(%arg0: i32) -> (i32, i32) {
    %c0_i32 = arith.constant 0 : i32
    %c0_i32_0 = arith.constant 0 : i32
    %c0_i32_1 = arith.constant 0 : i32
    return %c0_i32, %c0_i32_0 : i32, i32
  }
  func.func @transform_11(%arg0: i32) -> (i32, i32) {
    %c0_i32 = arith.constant 0 : i32
    %c0_i32_0 = arith.constant 0 : i32
    %c0_i32_1 = arith.constant 0 : i32
    return %c0_i32, %c0_i32_0 : i32, i32
  }
  func.func @transform_12(%arg0: i32) -> (i32, i32) {
    %c0_i32 = arith.constant 0 : i32
    %c0_i32_0 = arith.constant 0 : i32
    %c0_i32_1 = arith.constant 0 : i32
    return %c0_i32, %c0_i32_0 : i32, i32
  }
}

</mosaic_0001>

<llo_original>
// kernel: tpu_custom_call.1
$region0: #{tpu_custom_call.1}
  #allocation0 [shape = 'u32[]', space=smem, size = 0x4, offset = 0x4, fixed_abs, tag = 'smem constant byte address 0x4 - core index']
  #allocation1 [shape = 'u32[144,128]{1,0:T(1,128)}', space=vmem, size = 0x12000, scoped, tag = 'internal scratch']
  #allocation2 [shape = 'f32[16,32]{1,0:T(8,128)}', space=vmem, size = 0x2000, scoped, tag = 'scratch operand']
  %s0 = inlined_call_operand.vmem [shape: f32[16,32], index: 0, kind: input, shape index: {}]
  %s1 = inlined_call_operand.vmem [shape: f32[2,1,8], index: 1, kind: input, shape index: {}]
  %s2 = inlined_call_operand.vmem [shape: bf16[2,32,128], index: 2, kind: input, shape index: {}]
  %s3 = inlined_call_operand.vmem [shape: f32[2,1,128], index: 3, kind: input, shape index: {}]
  %s4 = inlined_call_operand.vmem [shape: bf16[2,32,32], index: 4, kind: input, shape index: {}]
  %s5 = inlined_call_operand.vmem [shape: f32[2,6,32], index: 5, kind: input, shape index: {}]
  %s6 = inlined_call_operand.vmem [shape: bf16[2,32,2048], index: 6, kind: input, shape index: {}]
  %s7 = inlined_call_operand.vmem [shape: f32[2,1,2048], index: 7, kind: input, shape index: {}]
  %s8 = inlined_call_operand.vmem [shape: bf16[2,2048,32], index: 8, kind: input, shape index: {}]
  %s9 = inlined_call_operand.vmem [shape: bf16[32,128], index: 9, kind: input, shape index: {}]
  %s10 = inlined_call_operand.vmem [shape: f32[1,128], index: 10, kind: input, shape index: {}]
  %s11 = inlined_call_operand.hbm [shape: f32[16,128], index: 11, kind: output, shape index: {0}]
  %s12 = inlined_call_operand.hbm [shape: f32[16,32], index: 12, kind: output, shape index: {1}]
  %13 = xla_tuple %s11, %s12
  %s14 = sld [smem:[#allocation0]]
  $region93: #{tpu_custom_call.1} parent=0
    _
  %s16 = ssub.s32 1, %s14
  %s17 = scalar_select 0, %s16, %s14
  $region1: #{tpu_custom_call.1} parent=0
    #allocation3 [shape = 'u8[8192]{0}', space=vmem, size = 0x2000, scoped, tag = 'output window, operand 0, single buffered']
    #allocation4 [shape = 's32[2]{0}', space=sflag, size = 0x8, scoped, tag = 'scoped memory for tpu_custom_call.1']
    #allocation5 [shape = 'u8[8192]{0}', space=vmem, size = 0x2000, scoped, tag = 'output window, operand 1, single buffered']
    #allocation6 [shape = 's32[1]{0}', space=sflag, size = 0x4, scoped, tag = 'scoped memory for tpu_custom_call.1']
    %18 = vsyncpa [#allocation4], 0
    %19 = vsyncpa [#allocation6], 0
    loop: start=0, step=1, limit=4
    $region2: #{tpu_custom_call.1} parent=1 // loop_pre_header
      _
    $region3: #{tpu_custom_call.1} parent=1 // loop_header
      %s21 = sphi 0, %s25
      %p22 = scmp.ge.s32.totalorder %s21, 4
      %s29 = sphi 0, %s29
      %s31 = sphi 0, %s29
      %s32 = sphi 0, %s31
      %s46 = sphi 0, %s32
      %s50 = sphi 0, %s50
      %s52 = sphi 0, %s50
      %s53 = sphi 0, %s52
      %s67 = sphi 0, %s53
      %s73 = sphi 0, %s75
      %s76 = sphi 0, %s73
      %s77 = sphi 0, %s76
      %s93 = sphi 0, %s77
      %s99 = sphi 0, %s101
      %s102 = sphi 0, %s99
      %s103 = sphi 0, %s102
      %s119 = sphi 0, %s103
      %s125 = sphi 0, %s127
      %s128 = sphi 0, %s125
      %s129 = sphi 0, %s128
      %s145 = sphi 0, %s129
      %s151 = sphi 0, %s153
      %s154 = sphi 0, %s151
      %s155 = sphi 0, %s154
      %s171 = sphi 0, %s155
      %s177 = sphi 0, %s179
      %s180 = sphi 0, %s177
      %s181 = sphi 0, %s180
      %s197 = sphi 0, %s181
      %s203 = sphi 0, %s205
      %s206 = sphi 0, %s203
      %s207 = sphi 0, %s206
      %s223 = sphi 0, %s207
      %s229 = sphi 0, %s231
      %s232 = sphi 0, %s229
      %s233 = sphi 0, %s232
      %s249 = sphi 0, %s233
      %s253 = sphi 0, %s253
      %s255 = sphi 0, %s253
      %s256 = sphi 0, %s255
      %s270 = sphi 0, %s256
      %s274 = sphi 0, %s274
      %s276 = sphi 0, %s274
      %s277 = sphi 0, %s276
      %s291 = sphi 0, %s277
      %s295 = sphi 0, %s295
      %s297 = sphi 0, %s295
      %s298 = sphi 0, %s297
      %s312 = sphi 0, %s298
      %s316 = sphi 0, %s316
      %s318 = sphi 0, %s316
      %s319 = sphi 0, %s318
      %s333 = sphi 0, %s319
    $region4: #{tpu_custom_call.1} parent=1 // loop_header_branch
      %24 = sbr.rel (%p22) target = $region8
    $region5: #{tpu_custom_call.1} parent=1 // loop_body
      %s26 = ssub.s32 %s21, 1
      %s27 = ssub.s32 %s21, 2
      %s28 = sadd.s32 %s21, 1
      %s30 = sadd.s32 %s29, 1
      %p33 = scmp.eq.s32.totalorder %s21, 1
      %p34 = scmp.ne.s32.totalorder %s29, %s31
      %p35 = scmp.eq.s32.totalorder %s21, 0
      %p36 = por %p34, %p35
      %p37 = scmp.ne.s32.totalorder %s29, %s31
      %p38 = scmp.eq.s32.totalorder %s26, 1
      %p39 = por %p37, %p38
      %p40 = scmp.ne.s32.totalorder %s31, %s32
      %p41 = scmp.eq.s32.totalorder %s26, 0
      %p42 = por %p40, %p41
      %p43 = scmp.ne.s32.totalorder %s31, %s32
      %p44 = scmp.eq.s32.totalorder %s27, 1
      %p45 = por %p43, %p44
      %p47 = scmp.ne.s32.totalorder %s32, %s46
      %p48 = scmp.eq.s32.totalorder %s27, 0
      %p49 = por %p47, %p48
      %s51 = sadd.s32 %s50, 1
      %p54 = scmp.eq.s32.totalorder %s21, 1
      %p55 = scmp.ne.s32.totalorder %s50, %s52
      %p56 = scmp.eq.s32.totalorder %s21, 0
      %p57 = por %p55, %p56
      %p58 = scmp.ne.s32.totalorder %s50, %s52
      %p59 = scmp.eq.s32.totalorder %s26, 1
      %p60 = por %p58, %p59
      %p61 = scmp.ne.s32.totalorder %s52, %s53
      %p62 = scmp.eq.s32.totalorder %s26, 0
      %p63 = por %p61, %p62
      %p64 = scmp.ne.s32.totalorder %s52, %s53
      %p65 = scmp.eq.s32.totalorder %s27, 1
      %p66 = por %p64, %p65
      %p68 = scmp.ne.s32.totalorder %s53, %s67
      %p69 = scmp.eq.s32.totalorder %s27, 0
      %p70 = por %p68, %p69
      %s71 = ssub.s32 %s21, %s28
      %p72 = scmp.eq.s32.totalorder %s71, 0
      %s74 = sadd.s32 %s73, 1
      %s75 = scalar_select %p72, %s73, %s74
      %p78 = pneg %p72
      %p79 = scmp.eq.s32.totalorder %s21, 1
      %p80 = por %p78, %p79
      %p81 = scmp.ne.s32.totalorder %s73, %s76
      %p82 = scmp.eq.s32.totalorder %s21, 0
      %p83 = por %p81, %p82
      %p84 = scmp.ne.s32.totalorder %s73, %s76
      %p85 = scmp.eq.s32.totalorder %s26, 1
      %p86 = por %p84, %p85
      %p87 = scmp.ne.s32.totalorder %s76, %s77
      %p88 = scmp.eq.s32.totalorder %s26, 0
      %p89 = por %p87, %p88
      %p90 = scmp.ne.s32.totalorder %s76, %s77
      %p91 = scmp.eq.s32.totalorder %s27, 1
      %p92 = por %p90, %p91
      %p94 = scmp.ne.s32.totalorder %s77, %s93
      %p95 = scmp.eq.s32.totalorder %s27, 0
      %p96 = por %p94, %p95
      %s97 = ssub.s32 %s21, %s28
      %p98 = scmp.eq.s32.totalorder %s97, 0
      %s100 = sadd.s32 %s99, 1
      %s101 = scalar_select %p98, %s99, %s100
      %p104 = pneg %p98
      %p105 = scmp.eq.s32.totalorder %s21, 1
      %p106 = por %p104, %p105
      %p107 = scmp.ne.s32.totalorder %s99, %s102
      %p108 = scmp.eq.s32.totalorder %s21, 0
      %p109 = por %p107, %p108
      %p110 = scmp.ne.s32.totalorder %s99, %s102
      %p111 = scmp.eq.s32.totalorder %s26, 1
      %p112 = por %p110, %p111
      %p113 = scmp.ne.s32.totalorder %s102, %s103
      %p114 = scmp.eq.s32.totalorder %s26, 0
      %p115 = por %p113, %p114
      %p116 = scmp.ne.s32.totalorder %s102, %s103
      %p117 = scmp.eq.s32.totalorder %s27, 1
      %p118 = por %p116, %p117
      %p120 = scmp.ne.s32.totalorder %s103, %s119
      %p121 = scmp.eq.s32.totalorder %s27, 0
      %p122 = por %p120, %p121
      %s123 = ssub.s32 %s21, %s28
      %p124 = scmp.eq.s32.totalorder %s123, 0
      %s126 = sadd.s32 %s125, 1
      %s127 = scalar_select %p124, %s125, %s126
      %p130 = pneg %p124
      %p131 = scmp.eq.s32.totalorder %s21, 1
      %p132 = por %p130, %p131
      %p133 = scmp.ne.s32.totalorder %s125, %s128
      %p134 = scmp.eq.s32.totalorder %s21, 0
      %p135 = por %p133, %p134
      %p136 = scmp.ne.s32.totalorder %s125, %s128
      %p137 = scmp.eq.s32.totalorder %s26, 1
      %p138 = por %p136, %p137
      %p139 = scmp.ne.s32.totalorder %s128, %s129
      %p140 = scmp.eq.s32.totalorder %s26, 0
      %p141 = por %p139, %p140
      %p142 = scmp.ne.s32.totalorder %s128, %s129
      %p143 = scmp.eq.s32.totalorder %s27, 1
      %p144 = por %p142, %p143
      %p146 = scmp.ne.s32.totalorder %s129, %s145
      %p147 = scmp.eq.s32.totalorder %s27, 0
      %p148 = por %p146, %p147
      %s149 = ssub.s32 %s21, %s28
      %p150 = scmp.eq.s32.totalorder %s149, 0
      %s152 = sadd.s32 %s151, 1
      %s153 = scalar_select %p150, %s151, %s152
      %p156 = pneg %p150
      %p157 = scmp.eq.s32.totalorder %s21, 1
      %p158 = por %p156, %p157
      %p159 = scmp.ne.s32.totalorder %s151, %s154
      %p160 = scmp.eq.s32.totalorder %s21, 0
      %p161 = por %p159, %p160
      %p162 = scmp.ne.s32.totalorder %s151, %s154
      %p163 = scmp.eq.s32.totalorder %s26, 1
      %p164 = por %p162, %p163
      %p165 = scmp.ne.s32.totalorder %s154, %s155
      %p166 = scmp.eq.s32.totalorder %s26, 0
      %p167 = por %p165, %p166
      %p168 = scmp.ne.s32.totalorder %s154, %s155
      %p169 = scmp.eq.s32.totalorder %s27, 1
      %p170 = por %p168, %p169
      %p172 = scmp.ne.s32.totalorder %s155, %s171
      %p173 = scmp.eq.s32.totalorder %s27, 0
      %p174 = por %p172, %p173
      %s175 = ssub.s32 %s21, %s28
      %p176 = scmp.eq.s32.totalorder %s175, 0
      %s178 = sadd.s32 %s177, 1
      %s179 = scalar_select %p176, %s177, %s178
      %p182 = pneg %p176
      %p183 = scmp.eq.s32.totalorder %s21, 1
      %p184 = por %p182, %p183
      %p185 = scmp.ne.s32.totalorder %s177, %s180
      %p186 = scmp.eq.s32.totalorder %s21, 0
      %p187 = por %p185, %p186
      %p188 = scmp.ne.s32.totalorder %s177, %s180
      %p189 = scmp.eq.s32.totalorder %s26, 1
      %p190 = por %p188, %p189
      %p191 = scmp.ne.s32.totalorder %s180, %s181
      %p192 = scmp.eq.s32.totalorder %s26, 0
      %p193 = por %p191, %p192
      %p194 = scmp.ne.s32.totalorder %s180, %s181
      %p195 = scmp.eq.s32.totalorder %s27, 1
      %p196 = por %p194, %p195
      %p198 = scmp.ne.s32.totalorder %s181, %s197
      %p199 = scmp.eq.s32.totalorder %s27, 0
      %p200 = por %p198, %p199
      %s201 = ssub.s32 %s21, %s28
      %p202 = scmp.eq.s32.totalorder %s201, 0
      %s204 = sadd.s32 %s203, 1
      %s205 = scalar_select %p202, %s203, %s204
      %p208 = pneg %p202
      %p209 = scmp.eq.s32.totalorder %s21, 1
      %p210 = por %p208, %p209
      %p211 = scmp.ne.s32.totalorder %s203, %s206
      %p212 = scmp.eq.s32.totalorder %s21, 0
      %p213 = por %p211, %p212
      %p214 = scmp.ne.s32.totalorder %s203, %s206
      %p215 = scmp.eq.s32.totalorder %s26, 1
      %p216 = por %p214, %p215
      %p217 = scmp.ne.s32.totalorder %s206, %s207
      %p218 = scmp.eq.s32.totalorder %s26, 0
      %p219 = por %p217, %p218
      %p220 = scmp.ne.s32.totalorder %s206, %s207
      %p221 = scmp.eq.s32.totalorder %s27, 1
      %p222 = por %p220, %p221
      %p224 = scmp.ne.s32.totalorder %s207, %s223
      %p225 = scmp.eq.s32.totalorder %s27, 0
      %p226 = por %p224, %p225
      %s227 = ssub.s32 %s21, %s28
      %p228 = scmp.eq.s32.totalorder %s227, 0
      %s230 = sadd.s32 %s229, 1
      %s231 = scalar_select %p228, %s229, %s230
      %p234 = pneg %p228
      %p235 = scmp.eq.s32.totalorder %s21, 1
      %p236 = por %p234, %p235
      %p237 = scmp.ne.s32.totalorder %s229, %s232
      %p238 = scmp.eq.s32.totalorder %s21, 0
      %p239 = por %p237, %p238
      %p240 = scmp.ne.s32.totalorder %s229, %s232
      %p241 = scmp.eq.s32.totalorder %s26, 1
      %p242 = por %p240, %p241
      %p243 = scmp.ne.s32.totalorder %s232, %s233
      %p244 = scmp.eq.s32.totalorder %s26, 0
      %p245 = por %p243, %p244
      %p246 = scmp.ne.s32.totalorder %s232, %s233
      %p247 = scmp.eq.s32.totalorder %s27, 1
      %p248 = por %p246, %p247
      %p250 = scmp.ne.s32.totalorder %s233, %s249
      %p251 = scmp.eq.s32.totalorder %s27, 0
      %p252 = por %p250, %p251
      %s254 = sadd.s32 %s253, 1
      %p257 = scmp.eq.s32.totalorder %s21, 1
      %p258 = scmp.ne.s32.totalorder %s253, %s255
      %p259 = scmp.eq.s32.totalorder %s21, 0
      %p260 = por %p258, %p259
      %p261 = scmp.ne.s32.totalorder %s253, %s255
      %p262 = scmp.eq.s32.totalorder %s26, 1
      %p263 = por %p261, %p262
      %p264 = scmp.ne.s32.totalorder %s255, %s256
      %p265 = scmp.eq.s32.totalorder %s26, 0
      %p266 = por %p264, %p265
      %p267 = scmp.ne.s32.totalorder %s255, %s256
      %p268 = scmp.eq.s32.totalorder %s27, 1
      %p269 = por %p267, %p268
      %p271 = scmp.ne.s32.totalorder %s256, %s270
      %p272 = scmp.eq.s32.totalorder %s27, 0
      %p273 = por %p271, %p272
      %s275 = sadd.s32 %s274, 1
      %p278 = scmp.eq.s32.totalorder %s21, 1
      %p279 = scmp.ne.s32.totalorder %s274, %s276
      %p280 = scmp.eq.s32.totalorder %s21, 0
      %p281 = por %p279, %p280
      %p282 = scmp.ne.s32.totalorder %s274, %s276
      %p283 = scmp.eq.s32.totalorder %s26, 1
      %p284 = por %p282, %p283
      %p285 = scmp.ne.s32.totalorder %s276, %s277
      %p286 = scmp.eq.s32.totalorder %s26, 0
      %p287 = por %p285, %p286
      %p288 = scmp.ne.s32.totalorder %s276, %s277
      %p289 = scmp.eq.s32.totalorder %s27, 1
      %p290 = por %p288, %p289
      %p292 = scmp.ne.s32.totalorder %s277, %s291
      %p293 = scmp.eq.s32.totalorder %s27, 0
      %p294 = por %p292, %p293
      %s296 = sadd.s32 %s295, 1
      %p299 = scmp.eq.s32.totalorder %s21, 1
      %p300 = scmp.ne.s32.totalorder %s295, %s297
      %p301 = scmp.eq.s32.totalorder %s21, 0
      %p302 = por %p300, %p301
      %p303 = scmp.ne.s32.totalorder %s295, %s297
      %p304 = scmp.eq.s32.totalorder %s26, 1
      %p305 = por %p303, %p304
      %p306 = scmp.ne.s32.totalorder %s297, %s298
      %p307 = scmp.eq.s32.totalorder %s26, 0
      %p308 = por %p306, %p307
      %p309 = scmp.ne.s32.totalorder %s297, %s298
      %p310 = scmp.eq.s32.totalorder %s27, 1
      %p311 = por %p309, %p310
      %p313 = scmp.ne.s32.totalorder %s298, %s312
      %p314 = scmp.eq.s32.totalorder %s27, 0
      %p315 = por %p313, %p314
      %s317 = sadd.s32 %s316, 1
      %p320 = scmp.eq.s32.totalorder %s21, 1
      %p321 = scmp.ne.s32.totalorder %s316, %s318
      %p322 = scmp.eq.s32.totalorder %s21, 0
      %p323 = por %p321, %p322
      %p324 = scmp.ne.s32.totalorder %s316, %s318
      %p325 = scmp.eq.s32.totalorder %s26, 1
      %p326 = por %p324, %p325
      %p327 = scmp.ne.s32.totalorder %s318, %s319
      %p328 = scmp.eq.s32.totalorder %s26, 0
      %p329 = por %p327, %p328
      %p330 = scmp.ne.s32.totalorder %s318, %s319
      %p331 = scmp.eq.s32.totalorder %s27, 1
      %p332 = por %p330, %p331
      %p334 = scmp.ne.s32.totalorder %s319, %s333
      %p335 = scmp.eq.s32.totalorder %s27, 0
      %p336 = por %p334, %p335
      %p337 = scmp.le.s32.totalorder 1, %s21
      %p338 = scmp.lt.s32.totalorder %s21, 3
      %p339 = pnand %p337, %p338
      %p340 = pneg %p339
      // Predicated region
      $region9: #{tpu_custom_call.1} parent=5 // pred_check
        _
      $region10: #{tpu_custom_call.1} parent=5 // pred_check_branch
        %342 = sbr.rel (%p339) target = $region12
      $region11: #{tpu_custom_call.1} parent=5 // pred_region
        %s343 = ssub.s32 %s21, 1
        // Predicated region
        $region13: #{tpu_custom_call.1} parent=11 // pred_check
          %p344 = pneg %p42
        $region14: #{tpu_custom_call.1} parent=11 // pred_check_branch
          %346 = sbr.rel (%p344) target = $region16
        $region15: #{tpu_custom_call.1} parent=11 // pred_region
          _
        $region16: #{tpu_custom_call.1} parent=11 // pred_fallthru
          _
        // Predicated region
        $region17: #{tpu_custom_call.1} parent=11 // pred_check
          %p347 = pneg %p63
        $region18: #{tpu_custom_call.1} parent=11 // pred_check_branch
          %349 = sbr.rel (%p347) target = $region20
        $region19: #{tpu_custom_call.1} parent=11 // pred_region
          _
        $region20: #{tpu_custom_call.1} parent=11 // pred_fallthru
          _
        // Predicated region
        $region21: #{tpu_custom_call.1} parent=11 // pred_check
          %p350 = pneg %p266
        $region22: #{tpu_custom_call.1} parent=11 // pred_check_branch
          %352 = sbr.rel (%p350) target = $region24
        $region23: #{tpu_custom_call.1} parent=11 // pred_region
          _
        $region24: #{tpu_custom_call.1} parent=11 // pred_fallthru
          _
        // Predicated region
        $region25: #{tpu_custom_call.1} parent=11 // pred_check
          %p353 = pneg %p287
        $region26: #{tpu_custom_call.1} parent=11 // pred_check_branch
          %355 = sbr.rel (%p353) target = $region28
        $region27: #{tpu_custom_call.1} parent=11 // pred_region
          _
        $region28: #{tpu_custom_call.1} parent=11 // pred_fallthru
          _
      $region12: #{tpu_custom_call.1} parent=5 // pred_fallthru
        _
      %p356 = scmp.lt.s32.totalorder %s21, 2
      // Predicated region
      $region29: #{tpu_custom_call.1} parent=5 // pred_check
        %p357 = pneg %p356
      $region30: #{tpu_custom_call.1} parent=5 // pred_check_branch
        %359 = sbr.rel (%p357) target = $region32
      $region31: #{tpu_custom_call.1} parent=5 // pred_region
        // Predicated region
        $region33: #{tpu_custom_call.1} parent=31 // pred_check
          %p360 = pneg %p83
        $region34: #{tpu_custom_call.1} parent=31 // pred_check_branch
          %362 = sbr.rel (%p360) target = $region36
        $region35: #{tpu_custom_call.1} parent=31 // pred_region
          %p363 = scmp.lt.s32.totalorder %s21, 1
          %s364 = scalar_select %p363, %s21, 1
          %s365 = smul.addr %s364, 4
          %s366 = smul.addr %s365, 4
          %s367 = scalar_lea.vmem %s2, %s366
        $region36: #{tpu_custom_call.1} parent=31 // pred_fallthru
          _
        // Predicated region
        $region37: #{tpu_custom_call.1} parent=31 // pred_check
          %p368 = pneg %p109
        $region38: #{tpu_custom_call.1} parent=31 // pred_check_branch
          %370 = sbr.rel (%p368) target = $region40
        $region39: #{tpu_custom_call.1} parent=31 // pred_region
          %p371 = scmp.lt.s32.totalorder %s21, 1
          %s372 = scalar_select %p371, %s21, 1
          %s373 = scalar_lea.vmem %s3, %s372
        $region40: #{tpu_custom_call.1} parent=31 // pred_fallthru
          _
        // Predicated region
        $region41: #{tpu_custom_call.1} parent=31 // pred_check
          %p374 = pneg %p135
        $region42: #{tpu_custom_call.1} parent=31 // pred_check_branch
          %376 = sbr.rel (%p374) target = $region44
        $region43: #{tpu_custom_call.1} parent=31 // pred_region
          %p377 = scmp.lt.s32.totalorder %s21, 1
          %s378 = scalar_select %p377, %s21, 1
          %s379 = smul.addr %s378, 4
          %s380 = smul.addr %s379, 4
          %s381 = scalar_lea.vmem %s4, %s380
        $region44: #{tpu_custom_call.1} parent=31 // pred_fallthru
          _
        // Predicated region
        $region45: #{tpu_custom_call.1} parent=31 // pred_check
          %p382 = pneg %p161
        $region46: #{tpu_custom_call.1} parent=31 // pred_check_branch
          %384 = sbr.rel (%p382) target = $region48
        $region47: #{tpu_custom_call.1} parent=31 // pred_region
          %p385 = scmp.lt.s32.totalorder %s21, 1
          %s386 = scalar_select %p385, %s21, 1
          %s387 = smul.addr %s386, 8
          %s388 = scalar_lea.vmem %s5, %s387
        $region48: #{tpu_custom_call.1} parent=31 // pred_fallthru
          _
        // Predicated region
        $region49: #{tpu_custom_call.1} parent=31 // pred_check
          %p389 = pneg %p187
        $region50: #{tpu_custom_call.1} parent=31 // pred_check_branch
          %391 = sbr.rel (%p389) target = $region52
        $region51: #{tpu_custom_call.1} parent=31 // pred_region
          %p392 = scmp.lt.s32.totalorder %s21, 1
          %s393 = scalar_select %p392, %s21, 1
          %s394 = smul.addr %s393, 64
          %s395 = smul.addr %s394, 4
          %s396 = scalar_lea.vmem %s6, %s395
        $region52: #{tpu_custom_call.1} parent=31 // pred_fallthru
          _
        // Predicated region
        $region53: #{tpu_custom_call.1} parent=31 // pred_check
          %p397 = pneg %p213
        $region54: #{tpu_custom_call.1} parent=31 // pred_check_branch
          %399 = sbr.rel (%p397) target = $region56
        $region55: #{tpu_custom_call.1} parent=31 // pred_region
          %p400 = scmp.lt.s32.totalorder %s21, 1
          %s401 = scalar_select %p400, %s21, 1
          %s402 = smul.addr %s401, 16
          %s403 = scalar_lea.vmem %s7, %s402
        $region56: #{tpu_custom_call.1} parent=31 // pred_fallthru
          _
        // Predicated region
        $region57: #{tpu_custom_call.1} parent=31 // pred_check
          %p404 = pneg %p239
        $region58: #{tpu_custom_call.1} parent=31 // pred_check_branch
          %406 = sbr.rel (%p404) target = $region60
        $region59: #{tpu_custom_call.1} parent=31 // pred_region
          %p407 = scmp.lt.s32.totalorder %s21, 1
          %s408 = scalar_select %p407, %s21, 1
          %s409 = smul.addr %s408, 256
          %s410 = smul.addr %s409, 4
          %s411 = scalar_lea.vmem %s8, %s410
        $region60: #{tpu_custom_call.1} parent=31 // pred_fallthru
          _
      $region32: #{tpu_custom_call.1} parent=5 // pred_fallthru
        _
      %p412 = scmp.le.s32.totalorder 1, %s21
      %p413 = scmp.lt.s32.totalorder %s21, 3
      %p414 = pnand %p412, %p413
      %p415 = pneg %p414
      // Predicated region
      $region61: #{tpu_custom_call.1} parent=5 // pred_check
        _
      $region62: #{tpu_custom_call.1} parent=5 // pred_check_branch
        %417 = sbr.rel (%p414) target = $region64
      $region63: #{tpu_custom_call.1} parent=5 // pred_region
        %s418 = ssub.s32 %s21, 1
        %p419 = pneg %p42
        %p420 = pneg %p39
        %p421 = pneg %p63
        %p422 = pneg %p60
        %p423 = scmp.lt.s32.totalorder %s26, 1
        %s424 = scalar_select %p423, %s26, 1
        %s425 = smul.addr %s424, 4
        %s426 = smul.addr %s425, 4
        %s427 = scalar_lea.vmem %s2, %s426
        %p428 = pneg %p89
        %p429 = pneg %p86
        %p430 = scmp.lt.s32.totalorder %s26, 1
        %s431 = scalar_select %p430, %s26, 1
        %s432 = scalar_lea.vmem %s3, %s431
        %p433 = pneg %p115
        %p434 = pneg %p112
        %p435 = scmp.lt.s32.totalorder %s26, 1
        %s436 = scalar_select %p435, %s26, 1
        %s437 = smul.addr %s436, 4
        %s438 = smul.addr %s437, 4
        %s439 = scalar_lea.vmem %s4, %s438
        %p440 = pneg %p141
        %p441 = pneg %p138
        %p442 = scmp.lt.s32.totalorder %s26, 1
        %s443 = scalar_select %p442, %s26, 1
        %s444 = smul.addr %s443, 8
        %s445 = scalar_lea.vmem %s5, %s444
        %p446 = pneg %p167
        %p447 = pneg %p164
        %p448 = scmp.lt.s32.totalorder %s26, 1
        %s449 = scalar_select %p448, %s26, 1
        %s450 = smul.addr %s449, 64
        %s451 = smul.addr %s450, 4
        %s452 = scalar_lea.vmem %s6, %s451
        %p453 = pneg %p193
        %p454 = pneg %p190
        %p455 = scmp.lt.s32.totalorder %s26, 1
        %s456 = scalar_select %p455, %s26, 1
        %s457 = smul.addr %s456, 16
        %s458 = scalar_lea.vmem %s7, %s457
        %p459 = pneg %p219
        %p460 = pneg %p216
        %p461 = scmp.lt.s32.totalorder %s26, 1
        %s462 = scalar_select %p461, %s26, 1
        %s463 = smul.addr %s462, 256
        %s464 = smul.addr %s463, 4
        %s465 = scalar_lea.vmem %s8, %s464
        %p466 = pneg %p245
        %p467 = pneg %p242
        %p468 = pneg %p266
        %p469 = pneg %p263
        %p470 = pneg %p287
        %p471 = pneg %p284
        %p472 = pneg %p308
        %p473 = pneg %p305
        %p474 = pneg %p329
        %p475 = pneg %p326
        %p476 = scmp.lt.s32.totalorder %s26, 1
        %s477 = scalar_select %p476, %s26, 1
        %s478 = smul.addr %s477, 4
        %s479 = smul.addr %s478, 4
        %s480 = scalar_lea.vmem %s2, %s479
        %p481 = scmp.lt.s32.totalorder %s26, 1
        %s482 = scalar_select %p481, %s26, 1
        %s483 = scalar_lea.vmem %s3, %s482
        %p484 = scmp.lt.s32.totalorder %s26, 1
        %s485 = scalar_select %p484, %s26, 1
        %s486 = smul.addr %s485, 4
        %s487 = smul.addr %s486, 4
        %s488 = scalar_lea.vmem %s4, %s487
        %p489 = scmp.lt.s32.totalorder %s26, 1
        %s490 = scalar_select %p489, %s26, 1
        %s491 = smul.addr %s490, 8
        %s492 = scalar_lea.vmem %s5, %s491
        %p493 = scmp.lt.s32.totalorder %s26, 1
        %s494 = scalar_select %p493, %s26, 1
        %s495 = smul.addr %s494, 64
        %s496 = smul.addr %s495, 4
        %s497 = scalar_lea.vmem %s6, %s496
        %p498 = scmp.lt.s32.totalorder %s26, 1
        %s499 = scalar_select %p498, %s26, 1
        %s500 = smul.addr %s499, 16
        %s501 = scalar_lea.vmem %s7, %s500
        %p502 = scmp.lt.s32.totalorder %s26, 1
        %s503 = scalar_select %p502, %s26, 1
        %s504 = smul.addr %s503, 256
        %s505 = smul.addr %s504, 4
        %s506 = scalar_lea.vmem %s8, %s505
        %p508 = scmp.eq.s32.totalorder %s26, 0
        // Predicated region
        $region65: #{tpu_custom_call.1} parent=63 // pred_check
          %p509 = pneg %p508
        $region66: #{tpu_custom_call.1} parent=63 // pred_check_branch
          %511 = sbr.rel (%p509) target = $region68
        $region67: #{tpu_custom_call.1} parent=63 // pred_region
          %v512 = vld [vmem:[%s0] sm:$0xff]
          %v513 = vld [vmem:[%s0 + $0x8] sm:$0xff]
          %vm514 = vcmask 261120
          %515 = vst.msk [vmem:[#allocation2] sm:$0xff] %vm514, %v512
          %516 = vst.msk [vmem:[#allocation2 + $0x8] sm:$0xff] %vm514, %v513
        $region68: #{tpu_custom_call.1} parent=63 // pred_fallthru
          _
        %v517 = vld [vmem:[#allocation2] sm:$0xff]
        %v518 = vld [vmem:[#allocation2 + $0x8] sm:$0xff]
        %v519 = vld [vmem:[%s1] sm:$0x1]
        %v520 = vld [vmem:[%s1 + $0x1] sm:$0x1]
        %v521 = vpack.c.bf16 %v518, %v517
        %v522 = vld [vmem:[%s480] sm:$0xf]
        %v523 = vld [vmem:[%s480 + $0x4] sm:$0xf]
        %v524 = vld [vmem:[%s480 + $0x8] sm:$0xf]
        %v525 = vld [vmem:[%s480 + $0xc] sm:$0xf]
        %v526 = vld [vmem:[%s483] sm:$0x1]
        %v528 = vlaneseq
        %v529 = vshrl.u32 %v528, 7
        %v530 = vsub.s32 0, %v529
        %v531 = vrot.slane %v526, %v530
        %v537 = vunpack.c.l.b16 %v522
        %v538 = vunpack.c.l.b16 %v523
        %v539 = vunpack.c.l.b16 %v524
        %v540 = vunpack.c.l.b16 %v525
        %v541 = vpack.c.b16 %v538, %v537
        %v542 = vpack.c.b16 %v540, %v539
        %vm545 = vcmask 261120
        %v547 = vsel %vm545, %v521, 0
        %549 = vmatprep.subr.bf16.mxu0 0
        %550 = vmatpush1.bf16.msra.mxu0 0
        %551 = vmatprep.subr.bf16.mxu0 0
        %552 = vmatpush1.bf16.msra.mxu0 0
        %553 = vmatprep.subr.bf16.mxu0 0
        %554 = vmatpush1.bf16.msra.mxu0 0
        %555 = vmatprep.subr.bf16.mxu0 0
        %556 = vmatpush1.bf16.msra.mxu0 0
        %557 = vmatprep.subr.bf16.mxu0 0
        %558 = vmatpush1.bf16.msra.mxu0 0
        %559 = vmatprep.subr.bf16.mxu0 0
        %560 = vmatpush1.bf16.msra.mxu0 0
        %561 = vmatprep.subr.bf16.mxu0 0
        %562 = vmatpush1.bf16.msra.mxu0 %v542
        %563 = vmatprep.subr.bf16.mxu0 0
        %564 = vmatpush1.bf16.msra.mxu0 %v541
        %565 = vmatprep.subr.bf16.mxu0 0
        %566 = vmatpush2.bf16.msra.mxu0 0
        %567 = vmatprep.subr.bf16.mxu0 0
        %568 = vmatpush2.bf16.msra.mxu0 0
        %569 = vmatprep.subr.bf16.mxu0 0
        %570 = vmatpush2.bf16.msra.mxu0 0
        %571 = vmatprep.subr.bf16.mxu0 0
        %572 = vmatpush2.bf16.msra.mxu0 0
        %573 = vmatprep.subr.bf16.mxu0 0
        %574 = vmatpush2.bf16.msra.mxu0 0
        %575 = vmatprep.subr.bf16.mxu0 0
        %576 = vmatpush2.bf16.msra.mxu0 0
        %577 = vmatprep.subr.bf16.mxu0 0
        %578 = vmatpush2.bf16.msra.mxu0 0
        %579 = vmatprep.subr.bf16.mxu0 0
        %580 = vmatpush2.bf16.msra.mxu0 0
        %581 = vmatprep.mubr.bf16.mxu0 0
        %582 = vmatmul.mubr.bf16.gmra.mxu0 %v547
        %v583 = vpop.f32.mrf.mxu0
        %v584 = vadd.f32 %v531, %v583
        %v585 = vpop.f32.mrf.mxu0
        %v586 = vpop.f32.mrf.mxu0
        %v587 = vadd.f32 %v531, %v586
        %v588 = vpop.f32.mrf.mxu0
        %589 = vdwg.mxu0
        %591 = vrot.lane.b32.xlu0 %v584, 96
        %v592 = vpop.permute.xlu0 %591
        %vm593 = vcmask 64512
        %v594 = vsel %vm593, %v584, 0
        %v596 = vsel %vm593, %v592, 0
        %598 = vmatprep.subr.mxu0 0.0
        %599 = vmatpush1.xpose.msra.mxu0 0.0
        %600 = vmatprep.subr.mxu0 0.0
        %601 = vmatpush1.xpose.msra.mxu0 0.0
        %602 = vmatprep.subr.mxu0 0.0
        %603 = vmatpush1.xpose.msra.mxu0 0.0
        %604 = vmatprep.subr.mxu0 0.0
        %605 = vmatpush1.xpose.msra.mxu0 0.0
        %606 = vmatprep.subr.mxu0 0.0
        %607 = vmatpush1.xpose.msra.mxu0 0.0
        %608 = vmatprep.subr.mxu0 0.0
        %609 = vmatpush1.xpose.msra.mxu0 0.0
        %610 = vmatprep.subr.mxu0 0.0
        %611 = vmatpush1.xpose.msra.mxu0 0.0
        %612 = vmatprep.subr.mxu0 0.0
        %613 = vmatpush1.xpose.msra.mxu0 0.0
        %614 = vmatprep.subr.mxu0 0.0
        %615 = vmatpush1.xpose.msra.mxu0 0.0
        %616 = vmatprep.subr.mxu0 0.0
        %617 = vmatpush1.xpose.msra.mxu0 0.0
        %618 = vmatprep.subr.mxu0 0.0
        %619 = vmatpush1.xpose.msra.mxu0 0.0
        %620 = vmatprep.subr.mxu0 0.0
        %621 = vmatpush1.xpose.msra.mxu0 0.0
        %622 = vmatprep.subr.mxu0 0.0
        %623 = vmatpush1.xpose.msra.mxu0 0.0
        %624 = vmatprep.subr.mxu0 0.0
        %625 = vmatpush1.xpose.msra.mxu0 0.0
        %626 = vmatprep.subr.mxu0 0.0
        %627 = vmatpush1.xpose.msra.mxu0 0.0
        %628 = vmatprep.subr.mxu0 0.0
        %629 = vmatpush1.xpose.msra.mxu0 %v596
        %630 = vmatprep.subr.mxu0 0.0
        %631 = vmatpush2.xpose.msra.mxu0 0.0
        %632 = vmatprep.subr.mxu0 0.0
        %633 = vmatpush2.xpose.msra.mxu0 0.0
        %634 = vmatprep.subr.mxu0 0.0
        %635 = vmatpush2.xpose.msra.mxu0 0.0
        %636 = vmatprep.subr.mxu0 0.0
        %637 = vmatpush2.xpose.msra.mxu0 0.0
        %638 = vmatprep.subr.mxu0 0.0
        %639 = vmatpush2.xpose.msra.mxu0 0.0
        %640 = vmatprep.subr.mxu0 0.0
        %641 = vmatpush2.xpose.msra.mxu0 0.0
        %642 = vmatprep.subr.mxu0 0.0
        %643 = vmatpush2.xpose.msra.mxu0 0.0
        %644 = vmatprep.subr.mxu0 0.0
        %645 = vmatpush2.xpose.msra.mxu0 0.0
        %646 = vmatprep.subr.mxu0 0.0
        %647 = vmatpush2.xpose.msra.mxu0 0.0
        %648 = vmatprep.subr.mxu0 0.0
        %649 = vmatpush2.xpose.msra.mxu0 0.0
        %650 = vmatprep.subr.mxu0 0.0
        %651 = vmatpush2.xpose.msra.mxu0 0.0
        %652 = vmatprep.subr.mxu0 0.0
        %653 = vmatpush2.xpose.msra.mxu0 0.0
        %654 = vmatprep.subr.mxu0 0.0
        %655 = vmatpush2.xpose.msra.mxu0 0.0
        %656 = vmatprep.subr.mxu0 0.0
        %657 = vmatpush2.xpose.msra.mxu0 0.0
        %658 = vmatprep.subr.mxu0 0.0
        %659 = vmatpush2.xpose.msra.mxu0 0.0
        %660 = vmatprep.subr.mxu0 0.0
        %661 = vmatpush2.xpose.msra.mxu0 0.0
        %662 = vmatprep.mubr.f32.mxu0 0.0
        %663 = vmatmul.mubr.f32.gmra.mxu0 %v594
        %v664 = vpop.f32.mrf.mxu0
        %v665 = vadd.f32 0.0, %v664
        %v666 = vpop.f32.mrf.mxu0
        %667 = vdwg.mxu0
        %669 = vrot.lane.b32.xlu0 %v587, 96
        %v670 = vpop.permute.xlu0 %669
        %v671 = vsel %vm593, %v587, 0
        %v673 = vsel %vm593, %v670, 0
        %675 = vmatprep.subr.mxu0 0.0
        %676 = vmatpush1.xpose.msra.mxu0 0.0
        %677 = vmatprep.subr.mxu0 0.0
        %678 = vmatpush1.xpose.msra.mxu0 0.0
        %679 = vmatprep.subr.mxu0 0.0
        %680 = vmatpush1.xpose.msra.mxu0 0.0
        %681 = vmatprep.subr.mxu0 0.0
        %682 = vmatpush1.xpose.msra.mxu0 0.0
        %683 = vmatprep.subr.mxu0 0.0
        %684 = vmatpush1.xpose.msra.mxu0 0.0
        %685 = vmatprep.subr.mxu0 0.0
        %686 = vmatpush1.xpose.msra.mxu0 0.0
        %687 = vmatprep.subr.mxu0 0.0
        %688 = vmatpush1.xpose.msra.mxu0 0.0
        %689 = vmatprep.subr.mxu0 0.0
        %690 = vmatpush1.xpose.msra.mxu0 0.0
        %691 = vmatprep.subr.mxu0 0.0
        %692 = vmatpush1.xpose.msra.mxu0 0.0
        %693 = vmatprep.subr.mxu0 0.0
        %694 = vmatpush1.xpose.msra.mxu0 0.0
        %695 = vmatprep.subr.mxu0 0.0
        %696 = vmatpush1.xpose.msra.mxu0 0.0
        %697 = vmatprep.subr.mxu0 0.0
        %698 = vmatpush1.xpose.msra.mxu0 0.0
        %699 = vmatprep.subr.mxu0 0.0
        %700 = vmatpush1.xpose.msra.mxu0 0.0
        %701 = vmatprep.subr.mxu0 0.0
        %702 = vmatpush1.xpose.msra.mxu0 0.0
        %703 = vmatprep.subr.mxu0 0.0
        %704 = vmatpush1.xpose.msra.mxu0 0.0
        %705 = vmatprep.subr.mxu0 0.0
        %706 = vmatpush1.xpose.msra.mxu0 %v673
        %707 = vmatprep.subr.mxu0 0.0
        %708 = vmatpush2.xpose.msra.mxu0 0.0
        %709 = vmatprep.subr.mxu0 0.0
        %710 = vmatpush2.xpose.msra.mxu0 0.0
        %711 = vmatprep.subr.mxu0 0.0
        %712 = vmatpush2.xpose.msra.mxu0 0.0
        %713 = vmatprep.subr.mxu0 0.0
        %714 = vmatpush2.xpose.msra.mxu0 0.0
        %715 = vmatprep.subr.mxu0 0.0
        %716 = vmatpush2.xpose.msra.mxu0 0.0
        %717 = vmatprep.subr.mxu0 0.0
        %718 = vmatpush2.xpose.msra.mxu0 0.0
        %719 = vmatprep.subr.mxu0 0.0
        %720 = vmatpush2.xpose.msra.mxu0 0.0
        %721 = vmatprep.subr.mxu0 0.0
        %722 = vmatpush2.xpose.msra.mxu0 0.0
        %723 = vmatprep.subr.mxu0 0.0
        %724 = vmatpush2.xpose.msra.mxu0 0.0
        %725 = vmatprep.subr.mxu0 0.0
        %726 = vmatpush2.xpose.msra.mxu0 0.0
        %727 = vmatprep.subr.mxu0 0.0
        %728 = vmatpush2.xpose.msra.mxu0 0.0
        %729 = vmatprep.subr.mxu0 0.0
        %730 = vmatpush2.xpose.msra.mxu0 0.0
        %731 = vmatprep.subr.mxu0 0.0
        %732 = vmatpush2.xpose.msra.mxu0 0.0
        %733 = vmatprep.subr.mxu0 0.0
        %734 = vmatpush2.xpose.msra.mxu0 0.0
        %735 = vmatprep.subr.mxu0 0.0
        %736 = vmatpush2.xpose.msra.mxu0 0.0
        %737 = vmatprep.subr.mxu0 0.0
        %738 = vmatpush2.xpose.msra.mxu0 0.0
        %739 = vmatprep.mubr.f32.mxu0 0.0
        %740 = vmatmul.mubr.f32.gmra.mxu0 %v671
        %v741 = vpop.f32.mrf.mxu0
        %v742 = vadd.f32 0.0, %v741
        %v743 = vpop.f32.mrf.mxu0
        %744 = vdwg.mxu0
        %745 = vrot.lane.b32.xlu0 %v584, 120
        %v746 = vpop.permute.xlu0 %745
        %747 = vrot.lane.b32.xlu0 %v584, 88
        %v748 = vpop.permute.xlu0 %747
        %v749 = vsel %vm593, %v746, 0
        %v751 = vsel %vm593, %v748, 0
        %753 = vmatprep.subr.mxu0 0.0
        %754 = vmatpush1.xpose.msra.mxu0 0.0
        %755 = vmatprep.subr.mxu0 0.0
        %756 = vmatpush1.xpose.msra.mxu0 0.0
        %757 = vmatprep.subr.mxu0 0.0
        %758 = vmatpush1.xpose.msra.mxu0 0.0
        %759 = vmatprep.subr.mxu0 0.0
        %760 = vmatpush1.xpose.msra.mxu0 0.0
        %761 = vmatprep.subr.mxu0 0.0
        %762 = vmatpush1.xpose.msra.mxu0 0.0
        %763 = vmatprep.subr.mxu0 0.0
        %764 = vmatpush1.xpose.msra.mxu0 0.0
        %765 = vmatprep.subr.mxu0 0.0
        %766 = vmatpush1.xpose.msra.mxu0 0.0
        %767 = vmatprep.subr.mxu0 0.0
        %768 = vmatpush1.xpose.msra.mxu0 0.0
        %769 = vmatprep.subr.mxu0 0.0
        %770 = vmatpush1.xpose.msra.mxu0 0.0
        %771 = vmatprep.subr.mxu0 0.0
        %772 = vmatpush1.xpose.msra.mxu0 0.0
        %773 = vmatprep.subr.mxu0 0.0
        %774 = vmatpush1.xpose.msra.mxu0 0.0
        %775 = vmatprep.subr.mxu0 0.0
        %776 = vmatpush1.xpose.msra.mxu0 0.0
        %777 = vmatprep.subr.mxu0 0.0
        %778 = vmatpush1.xpose.msra.mxu0 0.0
        %779 = vmatprep.subr.mxu0 0.0
        %780 = vmatpush1.xpose.msra.mxu0 0.0
        %781 = vmatprep.subr.mxu0 0.0
        %782 = vmatpush1.xpose.msra.mxu0 0.0
        %783 = vmatprep.subr.mxu0 0.0
        %784 = vmatpush1.xpose.msra.mxu0 %v751
        %785 = vmatprep.subr.mxu0 0.0
        %786 = vmatpush2.xpose.msra.mxu0 0.0
        %787 = vmatprep.subr.mxu0 0.0
        %788 = vmatpush2.xpose.msra.mxu0 0.0
        %789 = vmatprep.subr.mxu0 0.0
        %790 = vmatpush2.xpose.msra.mxu0 0.0
        %791 = vmatprep.subr.mxu0 0.0
        %792 = vmatpush2.xpose.msra.mxu0 0.0
        %793 = vmatprep.subr.mxu0 0.0
        %794 = vmatpush2.xpose.msra.mxu0 0.0
        %795 = vmatprep.subr.mxu0 0.0
        %796 = vmatpush2.xpose.msra.mxu0 0.0
        %797 = vmatprep.subr.mxu0 0.0
        %798 = vmatpush2.xpose.msra.mxu0 0.0
        %799 = vmatprep.subr.mxu0 0.0
        %800 = vmatpush2.xpose.msra.mxu0 0.0
        %801 = vmatprep.subr.mxu0 0.0
        %802 = vmatpush2.xpose.msra.mxu0 0.0
        %803 = vmatprep.subr.mxu0 0.0
        %804 = vmatpush2.xpose.msra.mxu0 0.0
        %805 = vmatprep.subr.mxu0 0.0
        %806 = vmatpush2.xpose.msra.mxu0 0.0
        %807 = vmatprep.subr.mxu0 0.0
        %808 = vmatpush2.xpose.msra.mxu0 0.0
        %809 = vmatprep.subr.mxu0 0.0
        %810 = vmatpush2.xpose.msra.mxu0 0.0
        %811 = vmatprep.subr.mxu0 0.0
        %812 = vmatpush2.xpose.msra.mxu0 0.0
        %813 = vmatprep.subr.mxu0 0.0
        %814 = vmatpush2.xpose.msra.mxu0 0.0
        %815 = vmatprep.subr.mxu0 0.0
        %816 = vmatpush2.xpose.msra.mxu0 0.0
        %817 = vmatprep.mubr.f32.mxu0 0.0
        %818 = vmatmul.mubr.f32.gmra.mxu0 %v749
        %v819 = vpop.f32.mrf.mxu0
        %v820 = vadd.f32 0.0, %v819
        %v821 = vpop.f32.mrf.mxu0
        %822 = vdwg.mxu0
        %823 = vrot.lane.b32.xlu0 %v587, 120
        %v824 = vpop.permute.xlu0 %823
        %825 = vrot.lane.b32.xlu0 %v587, 88
        %v826 = vpop.permute.xlu0 %825
        %v827 = vsel %vm593, %v824, 0
        %v829 = vsel %vm593, %v826, 0
        %831 = vmatprep.subr.mxu0 0.0
        %832 = vmatpush1.xpose.msra.mxu0 0.0
        %833 = vmatprep.subr.mxu0 0.0
        %834 = vmatpush1.xpose.msra.mxu0 0.0
        %835 = vmatprep.subr.mxu0 0.0
        %836 = vmatpush1.xpose.msra.mxu0 0.0
        %837 = vmatprep.subr.mxu0 0.0
        %838 = vmatpush1.xpose.msra.mxu0 0.0
        %839 = vmatprep.subr.mxu0 0.0
        %840 = vmatpush1.xpose.msra.mxu0 0.0
        %841 = vmatprep.subr.mxu0 0.0
        %842 = vmatpush1.xpose.msra.mxu0 0.0
        %843 = vmatprep.subr.mxu0 0.0
        %844 = vmatpush1.xpose.msra.mxu0 0.0
        %845 = vmatprep.subr.mxu0 0.0
        %846 = vmatpush1.xpose.msra.mxu0 0.0
        %847 = vmatprep.subr.mxu0 0.0
        %848 = vmatpush1.xpose.msra.mxu0 0.0
        %849 = vmatprep.subr.mxu0 0.0
        %850 = vmatpush1.xpose.msra.mxu0 0.0
        %851 = vmatprep.subr.mxu0 0.0
        %852 = vmatpush1.xpose.msra.mxu0 0.0
        %853 = vmatprep.subr.mxu0 0.0
        %854 = vmatpush1.xpose.msra.mxu0 0.0
        %855 = vmatprep.subr.mxu0 0.0
        %856 = vmatpush1.xpose.msra.mxu0 0.0
        %857 = vmatprep.subr.mxu0 0.0
        %858 = vmatpush1.xpose.msra.mxu0 0.0
        %859 = vmatprep.subr.mxu0 0.0
        %860 = vmatpush1.xpose.msra.mxu0 0.0
        %861 = vmatprep.subr.mxu0 0.0
        %862 = vmatpush1.xpose.msra.mxu0 %v829
        %863 = vmatprep.subr.mxu0 0.0
        %864 = vmatpush2.xpose.msra.mxu0 0.0
        %865 = vmatprep.subr.mxu0 0.0
        %866 = vmatpush2.xpose.msra.mxu0 0.0
        %867 = vmatprep.subr.mxu0 0.0
        %868 = vmatpush2.xpose.msra.mxu0 0.0
        %869 = vmatprep.subr.mxu0 0.0
        %870 = vmatpush2.xpose.msra.mxu0 0.0
        %871 = vmatprep.subr.mxu0 0.0
        %872 = vmatpush2.xpose.msra.mxu0 0.0
        %873 = vmatprep.subr.mxu0 0.0
        %874 = vmatpush2.xpose.msra.mxu0 0.0
        %875 = vmatprep.subr.mxu0 0.0
        %876 = vmatpush2.xpose.msra.mxu0 0.0
        %877 = vmatprep.subr.mxu0 0.0
        %878 = vmatpush2.xpose.msra.mxu0 0.0
        %879 = vmatprep.subr.mxu0 0.0
        %880 = vmatpush2.xpose.msra.mxu0 0.0
        %881 = vmatprep.subr.mxu0 0.0
        %882 = vmatpush2.xpose.msra.mxu0 0.0
        %883 = vmatprep.subr.mxu0 0.0
        %884 = vmatpush2.xpose.msra.mxu0 0.0
        %885 = vmatprep.subr.mxu0 0.0
        %886 = vmatpush2.xpose.msra.mxu0 0.0
        %887 = vmatprep.subr.mxu0 0.0
        %888 = vmatpush2.xpose.msra.mxu0 0.0
        %889 = vmatprep.subr.mxu0 0.0
        %890 = vmatpush2.xpose.msra.mxu0 0.0
        %891 = vmatprep.subr.mxu0 0.0
        %892 = vmatpush2.xpose.msra.mxu0 0.0
        %893 = vmatprep.subr.mxu0 0.0
        %894 = vmatpush2.xpose.msra.mxu0 0.0
        %895 = vmatprep.mubr.f32.mxu0 0.0
        %896 = vmatmul.mubr.f32.gmra.mxu0 %v827
        %v897 = vpop.f32.mrf.mxu0
        %v898 = vadd.f32 0.0, %v897
        %v899 = vpop.f32.mrf.mxu0
        %900 = vdwg.mxu0
        %901 = vrot.lane.b32.xlu0 %v584, 112
        %v902 = vpop.permute.xlu0 %901
        %903 = vrot.lane.b32.xlu0 %v584, 80
        %v904 = vpop.permute.xlu0 %903
        %v905 = vsel %vm593, %v902, 0
        %v907 = vsel %vm593, %v904, 0
        %909 = vmatprep.subr.mxu0 0.0
        %910 = vmatpush1.xpose.msra.mxu0 0.0
        %911 = vmatprep.subr.mxu0 0.0
        %912 = vmatpush1.xpose.msra.mxu0 0.0
        %913 = vmatprep.subr.mxu0 0.0
        %914 = vmatpush1.xpose.msra.mxu0 0.0
        %915 = vmatprep.subr.mxu0 0.0
        %916 = vmatpush1.xpose.msra.mxu0 0.0
        %917 = vmatprep.subr.mxu0 0.0
        %918 = vmatpush1.xpose.msra.mxu0 0.0
        %919 = vmatprep.subr.mxu0 0.0
        %920 = vmatpush1.xpose.msra.mxu0 0.0
        %921 = vmatprep.subr.mxu0 0.0
        %922 = vmatpush1.xpose.msra.mxu0 0.0
        %923 = vmatprep.subr.mxu0 0.0
        %924 = vmatpush1.xpose.msra.mxu0 0.0
        %925 = vmatprep.subr.mxu0 0.0
        %926 = vmatpush1.xpose.msra.mxu0 0.0
        %927 = vmatprep.subr.mxu0 0.0
        %928 = vmatpush1.xpose.msra.mxu0 0.0
        %929 = vmatprep.subr.mxu0 0.0
        %930 = vmatpush1.xpose.msra.mxu0 0.0
        %931 = vmatprep.subr.mxu0 0.0
        %932 = vmatpush1.xpose.msra.mxu0 0.0
        %933 = vmatprep.subr.mxu0 0.0
        %934 = vmatpush1.xpose.msra.mxu0 0.0
        %935 = vmatprep.subr.mxu0 0.0
        %936 = vmatpush1.xpose.msra.mxu0 0.0
        %937 = vmatprep.subr.mxu0 0.0
        %938 = vmatpush1.xpose.msra.mxu0 0.0
        %939 = vmatprep.subr.mxu0 0.0
        %940 = vmatpush1.xpose.msra.mxu0 %v907
        %941 = vmatprep.subr.mxu0 0.0
        %942 = vmatpush2.xpose.msra.mxu0 0.0
        %943 = vmatprep.subr.mxu0 0.0
        %944 = vmatpush2.xpose.msra.mxu0 0.0
        %945 = vmatprep.subr.mxu0 0.0
        %946 = vmatpush2.xpose.msra.mxu0 0.0
        %947 = vmatprep.subr.mxu0 0.0
        %948 = vmatpush2.xpose.msra.mxu0 0.0
        %949 = vmatprep.subr.mxu0 0.0
        %950 = vmatpush2.xpose.msra.mxu0 0.0
        %951 = vmatprep.subr.mxu0 0.0
        %952 = vmatpush2.xpose.msra.mxu0 0.0
        %953 = vmatprep.subr.mxu0 0.0
        %954 = vmatpush2.xpose.msra.mxu0 0.0
        %955 = vmatprep.subr.mxu0 0.0
        %956 = vmatpush2.xpose.msra.mxu0 0.0
        %957 = vmatprep.subr.mxu0 0.0
        %958 = vmatpush2.xpose.msra.mxu0 0.0
        %959 = vmatprep.subr.mxu0 0.0
        %960 = vmatpush2.xpose.msra.mxu0 0.0
        %961 = vmatprep.subr.mxu0 0.0
        %962 = vmatpush2.xpose.msra.mxu0 0.0
        %963 = vmatprep.subr.mxu0 0.0
        %964 = vmatpush2.xpose.msra.mxu0 0.0
        %965 = vmatprep.subr.mxu0 0.0
        %966 = vmatpush2.xpose.msra.mxu0 0.0
        %967 = vmatprep.subr.mxu0 0.0
        %968 = vmatpush2.xpose.msra.mxu0 0.0
        %969 = vmatprep.subr.mxu0 0.0
        %970 = vmatpush2.xpose.msra.mxu0 0.0
        %971 = vmatprep.subr.mxu0 0.0
        %972 = vmatpush2.xpose.msra.mxu0 0.0
        %973 = vmatprep.mubr.f32.mxu0 0.0
        %974 = vmatmul.mubr.f32.gmra.mxu0 %v905
        %v975 = vpop.f32.mrf.mxu0
        %v976 = vadd.f32 0.0, %v975
        %v977 = vpop.f32.mrf.mxu0
        %978 = vdwg.mxu0
        %979 = vrot.lane.b32.xlu0 %v587, 112
        %v980 = vpop.permute.xlu0 %979
        %981 = vrot.lane.b32.xlu0 %v587, 80
        %v982 = vpop.permute.xlu0 %981
        %v983 = vsel %vm593, %v980, 0
        %v985 = vsel %vm593, %v982, 0
        %987 = vmatprep.subr.mxu0 0.0
        %988 = vmatpush1.xpose.msra.mxu0 0.0
        %989 = vmatprep.subr.mxu0 0.0
        %990 = vmatpush1.xpose.msra.mxu0 0.0
        %991 = vmatprep.subr.mxu0 0.0
        %992 = vmatpush1.xpose.msra.mxu0 0.0
        %993 = vmatprep.subr.mxu0 0.0
        %994 = vmatpush1.xpose.msra.mxu0 0.0
        %995 = vmatprep.subr.mxu0 0.0
        %996 = vmatpush1.xpose.msra.mxu0 0.0
        %997 = vmatprep.subr.mxu0 0.0
        %998 = vmatpush1.xpose.msra.mxu0 0.0
        %999 = vmatprep.subr.mxu0 0.0
        %1000 = vmatpush1.xpose.msra.mxu0 0.0
        %1001 = vmatprep.subr.mxu0 0.0
        %1002 = vmatpush1.xpose.msra.mxu0 0.0
        %1003 = vmatprep.subr.mxu0 0.0
        %1004 = vmatpush1.xpose.msra.mxu0 0.0
        %1005 = vmatprep.subr.mxu0 0.0
        %1006 = vmatpush1.xpose.msra.mxu0 0.0
        %1007 = vmatprep.subr.mxu0 0.0
        %1008 = vmatpush1.xpose.msra.mxu0 0.0
        %1009 = vmatprep.subr.mxu0 0.0
        %1010 = vmatpush1.xpose.msra.mxu0 0.0
        %1011 = vmatprep.subr.mxu0 0.0
        %1012 = vmatpush1.xpose.msra.mxu0 0.0
        %1013 = vmatprep.subr.mxu0 0.0
        %1014 = vmatpush1.xpose.msra.mxu0 0.0
        %1015 = vmatprep.subr.mxu0 0.0
        %1016 = vmatpush1.xpose.msra.mxu0 0.0
        %1017 = vmatprep.subr.mxu0 0.0
        %1018 = vmatpush1.xpose.msra.mxu0 %v985
        %1019 = vmatprep.subr.mxu0 0.0
        %1020 = vmatpush2.xpose.msra.mxu0 0.0
        %1021 = vmatprep.subr.mxu0 0.0
        %1022 = vmatpush2.xpose.msra.mxu0 0.0
        %1023 = vmatprep.subr.mxu0 0.0
        %1024 = vmatpush2.xpose.msra.mxu0 0.0
        %1025 = vmatprep.subr.mxu0 0.0
        %1026 = vmatpush2.xpose.msra.mxu0 0.0
        %1027 = vmatprep.subr.mxu0 0.0
        %1028 = vmatpush2.xpose.msra.mxu0 0.0
        %1029 = vmatprep.subr.mxu0 0.0
        %1030 = vmatpush2.xpose.msra.mxu0 0.0
        %1031 = vmatprep.subr.mxu0 0.0
        %1032 = vmatpush2.xpose.msra.mxu0 0.0
        %1033 = vmatprep.subr.mxu0 0.0
        %1034 = vmatpush2.xpose.msra.mxu0 0.0
        %1035 = vmatprep.subr.mxu0 0.0
        %1036 = vmatpush2.xpose.msra.mxu0 0.0
        %1037 = vmatprep.subr.mxu0 0.0
        %1038 = vmatpush2.xpose.msra.mxu0 0.0
        %1039 = vmatprep.subr.mxu0 0.0
        %1040 = vmatpush2.xpose.msra.mxu0 0.0
        %1041 = vmatprep.subr.mxu0 0.0
        %1042 = vmatpush2.xpose.msra.mxu0 0.0
        %1043 = vmatprep.subr.mxu0 0.0
        %1044 = vmatpush2.xpose.msra.mxu0 0.0
        %1045 = vmatprep.subr.mxu0 0.0
        %1046 = vmatpush2.xpose.msra.mxu0 0.0
        %1047 = vmatprep.subr.mxu0 0.0
        %1048 = vmatpush2.xpose.msra.mxu0 0.0
        %1049 = vmatprep.subr.mxu0 0.0
        %1050 = vmatpush2.xpose.msra.mxu0 0.0
        %1051 = vmatprep.mubr.f32.mxu0 0.0
        %1052 = vmatmul.mubr.f32.gmra.mxu0 %v983
        %v1053 = vpop.f32.mrf.mxu0
        %v1054 = vadd.f32 0.0, %v1053
        %v1055 = vpop.f32.mrf.mxu0
        %1056 = vdwg.mxu0
        %1057 = vrot.lane.b32.xlu0 %v584, 104
        %v1058 = vpop.permute.xlu0 %1057
        %1059 = vrot.lane.b32.xlu0 %v584, 72
        %v1060 = vpop.permute.xlu0 %1059
        %v1061 = vsel %vm593, %v1058, 0
        %v1063 = vsel %vm593, %v1060, 0
        %1065 = vmatprep.subr.mxu0 0.0
        %1066 = vmatpush1.xpose.msra.mxu0 0.0
        %1067 = vmatprep.subr.mxu0 0.0
        %1068 = vmatpush1.xpose.msra.mxu0 0.0
        %1069 = vmatprep.subr.mxu0 0.0
        %1070 = vmatpush1.xpose.msra.mxu0 0.0
        %1071 = vmatprep.subr.mxu0 0.0
        %1072 = vmatpush1.xpose.msra.mxu0 0.0
        %1073 = vmatprep.subr.mxu0 0.0
        %1074 = vmatpush1.xpose.msra.mxu0 0.0
        %1075 = vmatprep.subr.mxu0 0.0
        %1076 = vmatpush1.xpose.msra.mxu0 0.0
        %1077 = vmatprep.subr.mxu0 0.0
        %1078 = vmatpush1.xpose.msra.mxu0 0.0
        %1079 = vmatprep.subr.mxu0 0.0
        %1080 = vmatpush1.xpose.msra.mxu0 0.0
        %1081 = vmatprep.subr.mxu0 0.0
        %1082 = vmatpush1.xpose.msra.mxu0 0.0
        %1083 = vmatprep.subr.mxu0 0.0
        %1084 = vmatpush1.xpose.msra.mxu0 0.0
        %1085 = vmatprep.subr.mxu0 0.0
        %1086 = vmatpush1.xpose.msra.mxu0 0.0
        %1087 = vmatprep.subr.mxu0 0.0
        %1088 = vmatpush1.xpose.msra.mxu0 0.0
        %1089 = vmatprep.subr.mxu0 0.0
        %1090 = vmatpush1.xpose.msra.mxu0 0.0
        %1091 = vmatprep.subr.mxu0 0.0
        %1092 = vmatpush1.xpose.msra.mxu0 0.0
        %1093 = vmatprep.subr.mxu0 0.0
        %1094 = vmatpush1.xpose.msra.mxu0 0.0
        %1095 = vmatprep.subr.mxu0 0.0
        %1096 = vmatpush1.xpose.msra.mxu0 %v1063
        %1097 = vmatprep.subr.mxu0 0.0
        %1098 = vmatpush2.xpose.msra.mxu0 0.0
        %1099 = vmatprep.subr.mxu0 0.0
        %1100 = vmatpush2.xpose.msra.mxu0 0.0
        %1101 = vmatprep.subr.mxu0 0.0
        %1102 = vmatpush2.xpose.msra.mxu0 0.0
        %1103 = vmatprep.subr.mxu0 0.0
        %1104 = vmatpush2.xpose.msra.mxu0 0.0
        %1105 = vmatprep.subr.mxu0 0.0
        %1106 = vmatpush2.xpose.msra.mxu0 0.0
        %1107 = vmatprep.subr.mxu0 0.0
        %1108 = vmatpush2.xpose.msra.mxu0 0.0
        %1109 = vmatprep.subr.mxu0 0.0
        %1110 = vmatpush2.xpose.msra.mxu0 0.0
        %1111 = vmatprep.subr.mxu0 0.0
        %1112 = vmatpush2.xpose.msra.mxu0 0.0
        %1113 = vmatprep.subr.mxu0 0.0
        %1114 = vmatpush2.xpose.msra.mxu0 0.0
        %1115 = vmatprep.subr.mxu0 0.0
        %1116 = vmatpush2.xpose.msra.mxu0 0.0
        %1117 = vmatprep.subr.mxu0 0.0
        %1118 = vmatpush2.xpose.msra.mxu0 0.0
        %1119 = vmatprep.subr.mxu0 0.0
        %1120 = vmatpush2.xpose.msra.mxu0 0.0
        %1121 = vmatprep.subr.mxu0 0.0
        %1122 = vmatpush2.xpose.msra.mxu0 0.0
        %1123 = vmatprep.subr.mxu0 0.0
        %1124 = vmatpush2.xpose.msra.mxu0 0.0
        %1125 = vmatprep.subr.mxu0 0.0
        %1126 = vmatpush2.xpose.msra.mxu0 0.0
        %1127 = vmatprep.subr.mxu0 0.0
        %1128 = vmatpush2.xpose.msra.mxu0 0.0
        %1129 = vmatprep.mubr.f32.mxu0 0.0
        %1130 = vmatmul.mubr.f32.gmra.mxu0 %v1061
        %v1131 = vpop.f32.mrf.mxu0
        %v1132 = vadd.f32 0.0, %v1131
        %v1133 = vpop.f32.mrf.mxu0
        %1134 = vdwg.mxu0
        %1135 = vrot.lane.b32.xlu0 %v587, 104
        %v1136 = vpop.permute.xlu0 %1135
        %1137 = vrot.lane.b32.xlu0 %v587, 72
        %v1138 = vpop.permute.xlu0 %1137
        %v1139 = vsel %vm593, %v1136, 0
        %v1141 = vsel %vm593, %v1138, 0
        %1143 = vmatprep.subr.mxu0 0.0
        %1144 = vmatpush1.xpose.msra.mxu0 0.0
        %1145 = vmatprep.subr.mxu0 0.0
        %1146 = vmatpush1.xpose.msra.mxu0 0.0
        %1147 = vmatprep.subr.mxu0 0.0
        %1148 = vmatpush1.xpose.msra.mxu0 0.0
        %1149 = vmatprep.subr.mxu0 0.0
        %1150 = vmatpush1.xpose.msra.mxu0 0.0
        %1151 = vmatprep.subr.mxu0 0.0
        %1152 = vmatpush1.xpose.msra.mxu0 0.0
        %1153 = vmatprep.subr.mxu0 0.0
        %1154 = vmatpush1.xpose.msra.mxu0 0.0
        %1155 = vmatprep.subr.mxu0 0.0
        %1156 = vmatpush1.xpose.msra.mxu0 0.0
        %1157 = vmatprep.subr.mxu0 0.0
        %1158 = vmatpush1.xpose.msra.mxu0 0.0
        %1159 = vmatprep.subr.mxu0 0.0
        %1160 = vmatpush1.xpose.msra.mxu0 0.0
        %1161 = vmatprep.subr.mxu0 0.0
        %1162 = vmatpush1.xpose.msra.mxu0 0.0
        %1163 = vmatprep.subr.mxu0 0.0
        %1164 = vmatpush1.xpose.msra.mxu0 0.0
        %1165 = vmatprep.subr.mxu0 0.0
        %1166 = vmatpush1.xpose.msra.mxu0 0.0
        %1167 = vmatprep.subr.mxu0 0.0
        %1168 = vmatpush1.xpose.msra.mxu0 0.0
        %1169 = vmatprep.subr.mxu0 0.0
        %1170 = vmatpush1.xpose.msra.mxu0 0.0
        %1171 = vmatprep.subr.mxu0 0.0
        %1172 = vmatpush1.xpose.msra.mxu0 0.0
        %1173 = vmatprep.subr.mxu0 0.0
        %1174 = vmatpush1.xpose.msra.mxu0 %v1141
        %1175 = vmatprep.subr.mxu0 0.0
        %1176 = vmatpush2.xpose.msra.mxu0 0.0
        %1177 = vmatprep.subr.mxu0 0.0
        %1178 = vmatpush2.xpose.msra.mxu0 0.0
        %1179 = vmatprep.subr.mxu0 0.0
        %1180 = vmatpush2.xpose.msra.mxu0 0.0
        %1181 = vmatprep.subr.mxu0 0.0
        %1182 = vmatpush2.xpose.msra.mxu0 0.0
        %1183 = vmatprep.subr.mxu0 0.0
        %1184 = vmatpush2.xpose.msra.mxu0 0.0
        %1185 = vmatprep.subr.mxu0 0.0
        %1186 = vmatpush2.xpose.msra.mxu0 0.0
        %1187 = vmatprep.subr.mxu0 0.0
        %1188 = vmatpush2.xpose.msra.mxu0 0.0
        %1189 = vmatprep.subr.mxu0 0.0
        %1190 = vmatpush2.xpose.msra.mxu0 0.0
        %1191 = vmatprep.subr.mxu0 0.0
        %1192 = vmatpush2.xpose.msra.mxu0 0.0
        %1193 = vmatprep.subr.mxu0 0.0
        %1194 = vmatpush2.xpose.msra.mxu0 0.0
        %1195 = vmatprep.subr.mxu0 0.0
        %1196 = vmatpush2.xpose.msra.mxu0 0.0
        %1197 = vmatprep.subr.mxu0 0.0
        %1198 = vmatpush2.xpose.msra.mxu0 0.0
        %1199 = vmatprep.subr.mxu0 0.0
        %1200 = vmatpush2.xpose.msra.mxu0 0.0
        %1201 = vmatprep.subr.mxu0 0.0
        %1202 = vmatpush2.xpose.msra.mxu0 0.0
        %1203 = vmatprep.subr.mxu0 0.0
        %1204 = vmatpush2.xpose.msra.mxu0 0.0
        %1205 = vmatprep.subr.mxu0 0.0
        %1206 = vmatpush2.xpose.msra.mxu0 0.0
        %1207 = vmatprep.mubr.f32.mxu0 0.0
        %1208 = vmatmul.mubr.f32.gmra.mxu0 %v1139
        %v1209 = vpop.f32.mrf.mxu0
        %v1210 = vadd.f32 0.0, %v1209
        %v1211 = vpop.f32.mrf.mxu0
        %1212 = vdwg.mxu0
        %v1213 = vmul.f32 %v665, 0.35355338
        %v1214 = vmul.f32 %v820, 0.35355338
        %v1215 = vmul.f32 %v976, 0.35355338
        %v1216 = vmul.f32 %v1132, 0.35355338
        %v1217 = vmul.f32 %v742, 0.35355338
        %v1218 = vmul.f32 %v898, 0.35355338
        %v1219 = vmul.f32 %v1054, 0.35355338
        %v1220 = vmul.f32 %v1210, 0.35355338
        %v1223 = vlaneseq
        %v1224 = vshrl.u32 %v1223, 7
        %v1225 = vsub.s32 0, %v1224
        %v1226 = vrot.slane %v519, %v1225
        %v1227 = vlaneseq
        %v1228 = vshrl.u32 %v1227, 7
        %v1229 = vsub.s32 0, %v1228
        %v1230 = vrot.slane %v520, %v1229
        %v1233 = vadd.f32 %v1213, %v1226
        %v1234 = vadd.f32 %v1214, %v1226
        %v1235 = vadd.f32 %v1215, %v1226
        %v1236 = vadd.f32 %v1216, %v1226
        %v1237 = vadd.f32 %v1217, %v1230
        %v1238 = vadd.f32 %v1218, %v1230
        %v1239 = vadd.f32 %v1219, %v1230
        %v1240 = vadd.f32 %v1220, %v1230
        %v1241 = vsel %vm593, %v1233, -inf
        %1242 = vmax.xlane.f32.xlu0 %v1241
        %v1243 = vpop.xlane.xlu0 %1242
        %v1244 = vsel %vm593, %v1234, -inf
        %1245 = vmax.xlane.f32.xlu0 %v1244
        %v1246 = vpop.xlane.xlu0 %1245
        %v1247 = vsel %vm593, %v1235, -inf
        %1248 = vmax.xlane.f32.xlu0 %v1247
        %v1249 = vpop.xlane.xlu0 %1248
        %v1250 = vsel %vm593, %v1236, -inf
        %1251 = vmax.xlane.f32.xlu0 %v1250
        %v1252 = vpop.xlane.xlu0 %1251
        %v1253 = vsel %vm593, %v1237, -inf
        %1254 = vmax.xlane.f32.xlu0 %v1253
        %v1255 = vpop.xlane.xlu0 %1254
        %v1256 = vsel %vm593, %v1238, -inf
        %1257 = vmax.xlane.f32.xlu0 %v1256
        %v1258 = vpop.xlane.xlu0 %1257
        %v1259 = vsel %vm593, %v1239, -inf
        %1260 = vmax.xlane.f32.xlu0 %v1259
        %v1261 = vpop.xlane.xlu0 %1260
        %v1262 = vsel %vm593, %v1240, -inf
        %1263 = vmax.xlane.f32.xlu0 %v1262
        %v1264 = vpop.xlane.xlu0 %1263
        %v1265 = vsub.f32 %v1233, %v1243
        %v1266 = vsub.f32 %v1234, %v1246
        %v1267 = vsub.f32 %v1235, %v1249
        %v1268 = vsub.f32 %v1236, %v1252
        %v1269 = vsub.f32 %v1237, %v1255
        %v1270 = vsub.f32 %v1238, %v1258
        %v1271 = vsub.f32 %v1239, %v1261
        %v1272 = vsub.f32 %v1240, %v1264
        %v1273 = vmul.f32 %v1265, 1.442695
        %v1274 = vpow.pop %v1273
        %v1275 = vmul.f32 %v1266, 1.442695
        %v1276 = vpow.pop %v1275
        %v1277 = vmul.f32 %v1267, 1.442695
        %v1278 = vpow.pop %v1277
        %v1279 = vmul.f32 %v1268, 1.442695
        %v1280 = vpow.pop %v1279
        %v1281 = vmul.f32 %v1269, 1.442695
        %v1282 = vpow.pop %v1281
        %v1283 = vmul.f32 %v1270, 1.442695
        %v1284 = vpow.pop %v1283
        %v1285 = vmul.f32 %v1271, 1.442695
        %v1286 = vpow.pop %v1285
        %v1287 = vmul.f32 %v1272, 1.442695
        %v1288 = vpow.pop %v1287
        %v1289 = vsel %vm593, %v1274, 0.0
        %1290 = vadd.xlane.f32.xlu0 %v1289
        %v1291 = vpop.xlane.xlu0 %1290
        %v1292 = vsel %vm593, %v1276, 0.0
        %1293 = vadd.xlane.f32.xlu0 %v1292
        %v1294 = vpop.xlane.xlu0 %1293
        %v1295 = vsel %vm593, %v1278, 0.0
        %1296 = vadd.xlane.f32.xlu0 %v1295
        %v1297 = vpop.xlane.xlu0 %1296
        %v1298 = vsel %vm593, %v1280, 0.0
        %1299 = vadd.xlane.f32.xlu0 %v1298
        %v1300 = vpop.xlane.xlu0 %1299
        %v1301 = vsel %vm593, %v1282, 0.0
        %1302 = vadd.xlane.f32.xlu0 %v1301
        %v1303 = vpop.xlane.xlu0 %1302
        %v1304 = vsel %vm593, %v1284, 0.0
        %1305 = vadd.xlane.f32.xlu0 %v1304
        %v1306 = vpop.xlane.xlu0 %1305
        %v1307 = vsel %vm593, %v1286, 0.0
        %1308 = vadd.xlane.f32.xlu0 %v1307
        %v1309 = vpop.xlane.xlu0 %1308
        %v1310 = vsel %vm593, %v1288, 0.0
        %1311 = vadd.xlane.f32.xlu0 %v1310
        %v1312 = vpop.xlane.xlu0 %1311
        %v1313 = vrcp.pop %v1291
        %v1314 = vrcp.pop %v1294
        %v1315 = vrcp.pop %v1297
        %v1316 = vrcp.pop %v1300
        %v1317 = vrcp.pop %v1303
        %v1318 = vrcp.pop %v1306
        %v1319 = vrcp.pop %v1309
        %v1320 = vrcp.pop %v1312
        %v1321 = vmul.f32 %v1274, %v1313
        %v1322 = vmul.f32 %v1276, %v1314
        %v1323 = vmul.f32 %v1278, %v1315
        %v1324 = vmul.f32 %v1280, %v1316
        %v1325 = vmul.f32 %v1282, %v1317
        %v1326 = vmul.f32 %v1284, %v1318
        %v1327 = vmul.f32 %v1286, %v1319
        %v1328 = vmul.f32 %v1288, %v1320
        %1329 = vrot.lane.b32.xlu0 %v584, 64
        %v1330 = vpop.permute.xlu0 %1329
        %v1333 = vsel %vm593, %v1321, 0
        %1335 = vmatprep.subr.mxu0 0.0
        %1336 = vmatpush1.msra.mxu0 0.0
        %1337 = vmatprep.subr.mxu0 0.0
        %1338 = vmatpush1.msra.mxu0 0.0
        %1339 = vmatprep.subr.mxu0 0.0
        %1340 = vmatpush1.msra.mxu0 0.0
        %1341 = vmatprep.subr.mxu0 0.0
        %1342 = vmatpush1.msra.mxu0 0.0
        %1343 = vmatprep.subr.mxu0 0.0
        %1344 = vmatpush1.msra.mxu0 0.0
        %1345 = vmatprep.subr.mxu0 0.0
        %1346 = vmatpush1.msra.mxu0 0.0
        %1347 = vmatprep.subr.mxu0 0.0
        %1348 = vmatpush1.msra.mxu0 0.0
        %1349 = vmatprep.subr.mxu0 0.0
        %1350 = vmatpush1.msra.mxu0 0.0
        %1351 = vmatprep.subr.mxu0 0.0
        %1352 = vmatpush1.msra.mxu0 0.0
        %1353 = vmatprep.subr.mxu0 0.0
        %1354 = vmatpush1.msra.mxu0 0.0
        %1355 = vmatprep.subr.mxu0 0.0
        %1356 = vmatpush1.msra.mxu0 0.0
        %1357 = vmatprep.subr.mxu0 0.0
        %1358 = vmatpush1.msra.mxu0 0.0
        %1359 = vmatprep.subr.mxu0 0.0
        %1360 = vmatpush1.msra.mxu0 0.0
        %1361 = vmatprep.subr.mxu0 0.0
        %1362 = vmatpush1.msra.mxu0 0.0
        %1363 = vmatprep.subr.mxu0 0.0
        %1364 = vmatpush1.msra.mxu0 0.0
        %1365 = vmatprep.subr.mxu0 0.0
        %1366 = vmatpush1.msra.mxu0 %v1330
        %1367 = vmatprep.subr.mxu0 0.0
        %1368 = vmatpush2.msra.mxu0 0.0
        %1369 = vmatprep.subr.mxu0 0.0
        %1370 = vmatpush2.msra.mxu0 0.0
        %1371 = vmatprep.subr.mxu0 0.0
        %1372 = vmatpush2.msra.mxu0 0.0
        %1373 = vmatprep.subr.mxu0 0.0
        %1374 = vmatpush2.msra.mxu0 0.0
        %1375 = vmatprep.subr.mxu0 0.0
        %1376 = vmatpush2.msra.mxu0 0.0
        %1377 = vmatprep.subr.mxu0 0.0
        %1378 = vmatpush2.msra.mxu0 0.0
        %1379 = vmatprep.subr.mxu0 0.0
        %1380 = vmatpush2.msra.mxu0 0.0
        %1381 = vmatprep.subr.mxu0 0.0
        %1382 = vmatpush2.msra.mxu0 0.0
        %1383 = vmatprep.subr.mxu0 0.0
        %1384 = vmatpush2.msra.mxu0 0.0
        %1385 = vmatprep.subr.mxu0 0.0
        %1386 = vmatpush2.msra.mxu0 0.0
        %1387 = vmatprep.subr.mxu0 0.0
        %1388 = vmatpush2.msra.mxu0 0.0
        %1389 = vmatprep.subr.mxu0 0.0
        %1390 = vmatpush2.msra.mxu0 0.0
        %1391 = vmatprep.subr.mxu0 0.0
        %1392 = vmatpush2.msra.mxu0 0.0
        %1393 = vmatprep.subr.mxu0 0.0
        %1394 = vmatpush2.msra.mxu0 0.0
        %1395 = vmatprep.subr.mxu0 0.0
        %1396 = vmatpush2.msra.mxu0 0.0
        %1397 = vmatprep.subr.mxu0 0.0
        %1398 = vmatpush2.msra.mxu0 0.0
        %1399 = vmatprep.mubr.f32.mxu0 0.0
        %1400 = vmatmul.mubr.f32.gmra.mxu0 %v1333
        %v1401 = vpop.f32.mrf.mxu0
        %v1402 = vadd.f32 0.0, %v1401
        %v1403 = vpop.f32.mrf.mxu0
        %1404 = vdwg.mxu0
        %1405 = vrot.lane.b32.xlu0 %v587, 64
        %v1406 = vpop.permute.xlu0 %1405
        %v1409 = vsel %vm593, %v1325, 0
        %1411 = vmatprep.subr.mxu0 0.0
        %1412 = vmatpush1.msra.mxu0 0.0
        %1413 = vmatprep.subr.mxu0 0.0
        %1414 = vmatpush1.msra.mxu0 0.0
        %1415 = vmatprep.subr.mxu0 0.0
        %1416 = vmatpush1.msra.mxu0 0.0
        %1417 = vmatprep.subr.mxu0 0.0
        %1418 = vmatpush1.msra.mxu0 0.0
        %1419 = vmatprep.subr.mxu0 0.0
        %1420 = vmatpush1.msra.mxu0 0.0
        %1421 = vmatprep.subr.mxu0 0.0
        %1422 = vmatpush1.msra.mxu0 0.0
        %1423 = vmatprep.subr.mxu0 0.0
        %1424 = vmatpush1.msra.mxu0 0.0
        %1425 = vmatprep.subr.mxu0 0.0
        %1426 = vmatpush1.msra.mxu0 0.0
        %1427 = vmatprep.subr.mxu0 0.0
        %1428 = vmatpush1.msra.mxu0 0.0
        %1429 = vmatprep.subr.mxu0 0.0
        %1430 = vmatpush1.msra.mxu0 0.0
        %1431 = vmatprep.subr.mxu0 0.0
        %1432 = vmatpush1.msra.mxu0 0.0
        %1433 = vmatprep.subr.mxu0 0.0
        %1434 = vmatpush1.msra.mxu0 0.0
        %1435 = vmatprep.subr.mxu0 0.0
        %1436 = vmatpush1.msra.mxu0 0.0
        %1437 = vmatprep.subr.mxu0 0.0
        %1438 = vmatpush1.msra.mxu0 0.0
        %1439 = vmatprep.subr.mxu0 0.0
        %1440 = vmatpush1.msra.mxu0 0.0
        %1441 = vmatprep.subr.mxu0 0.0
        %1442 = vmatpush1.msra.mxu0 %v1406
        %1443 = vmatprep.subr.mxu0 0.0
        %1444 = vmatpush2.msra.mxu0 0.0
        %1445 = vmatprep.subr.mxu0 0.0
        %1446 = vmatpush2.msra.mxu0 0.0
        %1447 = vmatprep.subr.mxu0 0.0
        %1448 = vmatpush2.msra.mxu0 0.0
        %1449 = vmatprep.subr.mxu0 0.0
        %1450 = vmatpush2.msra.mxu0 0.0
        %1451 = vmatprep.subr.mxu0 0.0
        %1452 = vmatpush2.msra.mxu0 0.0
        %1453 = vmatprep.subr.mxu0 0.0
        %1454 = vmatpush2.msra.mxu0 0.0
        %1455 = vmatprep.subr.mxu0 0.0
        %1456 = vmatpush2.msra.mxu0 0.0
        %1457 = vmatprep.subr.mxu0 0.0
        %1458 = vmatpush2.msra.mxu0 0.0
        %1459 = vmatprep.subr.mxu0 0.0
        %1460 = vmatpush2.msra.mxu0 0.0
        %1461 = vmatprep.subr.mxu0 0.0
        %1462 = vmatpush2.msra.mxu0 0.0
        %1463 = vmatprep.subr.mxu0 0.0
        %1464 = vmatpush2.msra.mxu0 0.0
        %1465 = vmatprep.subr.mxu0 0.0
        %1466 = vmatpush2.msra.mxu0 0.0
        %1467 = vmatprep.subr.mxu0 0.0
        %1468 = vmatpush2.msra.mxu0 0.0
        %1469 = vmatprep.subr.mxu0 0.0
        %1470 = vmatpush2.msra.mxu0 0.0
        %1471 = vmatprep.subr.mxu0 0.0
        %1472 = vmatpush2.msra.mxu0 0.0
        %1473 = vmatprep.subr.mxu0 0.0
        %1474 = vmatpush2.msra.mxu0 0.0
        %1475 = vmatprep.mubr.f32.mxu0 0.0
        %1476 = vmatmul.mubr.f32.gmra.mxu0 %v1409
        %v1477 = vpop.f32.mrf.mxu0
        %v1478 = vadd.f32 0.0, %v1477
        %v1479 = vpop.f32.mrf.mxu0
        %1480 = vdwg.mxu0
        %1481 = vrot.lane.b32.xlu0 %v584, 56
        %v1482 = vpop.permute.xlu0 %1481
        %v1485 = vsel %vm593, %v1322, 0
        %1487 = vmatprep.subr.mxu0 0.0
        %1488 = vmatpush1.msra.mxu0 0.0
        %1489 = vmatprep.subr.mxu0 0.0
        %1490 = vmatpush1.msra.mxu0 0.0
        %1491 = vmatprep.subr.mxu0 0.0
        %1492 = vmatpush1.msra.mxu0 0.0
        %1493 = vmatprep.subr.mxu0 0.0
        %1494 = vmatpush1.msra.mxu0 0.0
        %1495 = vmatprep.subr.mxu0 0.0
        %1496 = vmatpush1.msra.mxu0 0.0
        %1497 = vmatprep.subr.mxu0 0.0
        %1498 = vmatpush1.msra.mxu0 0.0
        %1499 = vmatprep.subr.mxu0 0.0
        %1500 = vmatpush1.msra.mxu0 0.0
        %1501 = vmatprep.subr.mxu0 0.0
        %1502 = vmatpush1.msra.mxu0 0.0
        %1503 = vmatprep.subr.mxu0 0.0
        %1504 = vmatpush1.msra.mxu0 0.0
        %1505 = vmatprep.subr.mxu0 0.0
        %1506 = vmatpush1.msra.mxu0 0.0
        %1507 = vmatprep.subr.mxu0 0.0
        %1508 = vmatpush1.msra.mxu0 0.0
        %1509 = vmatprep.subr.mxu0 0.0
        %1510 = vmatpush1.msra.mxu0 0.0
        %1511 = vmatprep.subr.mxu0 0.0
        %1512 = vmatpush1.msra.mxu0 0.0
        %1513 = vmatprep.subr.mxu0 0.0
        %1514 = vmatpush1.msra.mxu0 0.0
        %1515 = vmatprep.subr.mxu0 0.0
        %1516 = vmatpush1.msra.mxu0 0.0
        %1517 = vmatprep.subr.mxu0 0.0
        %1518 = vmatpush1.msra.mxu0 %v1482
        %1519 = vmatprep.subr.mxu0 0.0
        %1520 = vmatpush2.msra.mxu0 0.0
        %1521 = vmatprep.subr.mxu0 0.0
        %1522 = vmatpush2.msra.mxu0 0.0
        %1523 = vmatprep.subr.mxu0 0.0
        %1524 = vmatpush2.msra.mxu0 0.0
        %1525 = vmatprep.subr.mxu0 0.0
        %1526 = vmatpush2.msra.mxu0 0.0
        %1527 = vmatprep.subr.mxu0 0.0
        %1528 = vmatpush2.msra.mxu0 0.0
        %1529 = vmatprep.subr.mxu0 0.0
        %1530 = vmatpush2.msra.mxu0 0.0
        %1531 = vmatprep.subr.mxu0 0.0
        %1532 = vmatpush2.msra.mxu0 0.0
        %1533 = vmatprep.subr.mxu0 0.0
        %1534 = vmatpush2.msra.mxu0 0.0
        %1535 = vmatprep.subr.mxu0 0.0
        %1536 = vmatpush2.msra.mxu0 0.0
        %1537 = vmatprep.subr.mxu0 0.0
        %1538 = vmatpush2.msra.mxu0 0.0
        %1539 = vmatprep.subr.mxu0 0.0
        %1540 = vmatpush2.msra.mxu0 0.0
        %1541 = vmatprep.subr.mxu0 0.0
        %1542 = vmatpush2.msra.mxu0 0.0
        %1543 = vmatprep.subr.mxu0 0.0
        %1544 = vmatpush2.msra.mxu0 0.0
        %1545 = vmatprep.subr.mxu0 0.0
        %1546 = vmatpush2.msra.mxu0 0.0
        %1547 = vmatprep.subr.mxu0 0.0
        %1548 = vmatpush2.msra.mxu0 0.0
        %1549 = vmatprep.subr.mxu0 0.0
        %1550 = vmatpush2.msra.mxu0 0.0
        %1551 = vmatprep.mubr.f32.mxu0 0.0
        %1552 = vmatmul.mubr.f32.gmra.mxu0 %v1485
        %v1553 = vpop.f32.mrf.mxu0
        %v1554 = vadd.f32 0.0, %v1553
        %v1555 = vpop.f32.mrf.mxu0
        %1556 = vdwg.mxu0
        %1557 = vrot.lane.b32.xlu0 %v587, 56
        %v1558 = vpop.permute.xlu0 %1557
        %v1561 = vsel %vm593, %v1326, 0
        %1563 = vmatprep.subr.mxu0 0.0
        %1564 = vmatpush1.msra.mxu0 0.0
        %1565 = vmatprep.subr.mxu0 0.0
        %1566 = vmatpush1.msra.mxu0 0.0
        %1567 = vmatprep.subr.mxu0 0.0
        %1568 = vmatpush1.msra.mxu0 0.0
        %1569 = vmatprep.subr.mxu0 0.0
        %1570 = vmatpush1.msra.mxu0 0.0
        %1571 = vmatprep.subr.mxu0 0.0
        %1572 = vmatpush1.msra.mxu0 0.0
        %1573 = vmatprep.subr.mxu0 0.0
        %1574 = vmatpush1.msra.mxu0 0.0
        %1575 = vmatprep.subr.mxu0 0.0
        %1576 = vmatpush1.msra.mxu0 0.0
        %1577 = vmatprep.subr.mxu0 0.0
        %1578 = vmatpush1.msra.mxu0 0.0
        %1579 = vmatprep.subr.mxu0 0.0
        %1580 = vmatpush1.msra.mxu0 0.0
        %1581 = vmatprep.subr.mxu0 0.0
        %1582 = vmatpush1.msra.mxu0 0.0
        %1583 = vmatprep.subr.mxu0 0.0
        %1584 = vmatpush1.msra.mxu0 0.0
        %1585 = vmatprep.subr.mxu0 0.0
        %1586 = vmatpush1.msra.mxu0 0.0
        %1587 = vmatprep.subr.mxu0 0.0
        %1588 = vmatpush1.msra.mxu0 0.0
        %1589 = vmatprep.subr.mxu0 0.0
        %1590 = vmatpush1.msra.mxu0 0.0
        %1591 = vmatprep.subr.mxu0 0.0
        %1592 = vmatpush1.msra.mxu0 0.0
        %1593 = vmatprep.subr.mxu0 0.0
        %1594 = vmatpush1.msra.mxu0 %v1558
        %1595 = vmatprep.subr.mxu0 0.0
        %1596 = vmatpush2.msra.mxu0 0.0
        %1597 = vmatprep.subr.mxu0 0.0
        %1598 = vmatpush2.msra.mxu0 0.0
        %1599 = vmatprep.subr.mxu0 0.0
        %1600 = vmatpush2.msra.mxu0 0.0
        %1601 = vmatprep.subr.mxu0 0.0
        %1602 = vmatpush2.msra.mxu0 0.0
        %1603 = vmatprep.subr.mxu0 0.0
        %1604 = vmatpush2.msra.mxu0 0.0
        %1605 = vmatprep.subr.mxu0 0.0
        %1606 = vmatpush2.msra.mxu0 0.0
        %1607 = vmatprep.subr.mxu0 0.0
        %1608 = vmatpush2.msra.mxu0 0.0
        %1609 = vmatprep.subr.mxu0 0.0
        %1610 = vmatpush2.msra.mxu0 0.0
        %1611 = vmatprep.subr.mxu0 0.0
        %1612 = vmatpush2.msra.mxu0 0.0
        %1613 = vmatprep.subr.mxu0 0.0
        %1614 = vmatpush2.msra.mxu0 0.0
        %1615 = vmatprep.subr.mxu0 0.0
        %1616 = vmatpush2.msra.mxu0 0.0
        %1617 = vmatprep.subr.mxu0 0.0
        %1618 = vmatpush2.msra.mxu0 0.0
        %1619 = vmatprep.subr.mxu0 0.0
        %1620 = vmatpush2.msra.mxu0 0.0
        %1621 = vmatprep.subr.mxu0 0.0
        %1622 = vmatpush2.msra.mxu0 0.0
        %1623 = vmatprep.subr.mxu0 0.0
        %1624 = vmatpush2.msra.mxu0 0.0
        %1625 = vmatprep.subr.mxu0 0.0
        %1626 = vmatpush2.msra.mxu0 0.0
        %1627 = vmatprep.mubr.f32.mxu0 0.0
        %1628 = vmatmul.mubr.f32.gmra.mxu0 %v1561
        %v1629 = vpop.f32.mrf.mxu0
        %v1630 = vadd.f32 0.0, %v1629
        %v1631 = vpop.f32.mrf.mxu0
        %1632 = vdwg.mxu0
        %1633 = vrot.lane.b32.xlu0 %v584, 48
        %v1634 = vpop.permute.xlu0 %1633
        %v1637 = vsel %vm593, %v1323, 0
        %1639 = vmatprep.subr.mxu0 0.0
        %1640 = vmatpush1.msra.mxu0 0.0
        %1641 = vmatprep.subr.mxu0 0.0
        %1642 = vmatpush1.msra.mxu0 0.0
        %1643 = vmatprep.subr.mxu0 0.0
        %1644 = vmatpush1.msra.mxu0 0.0
        %1645 = vmatprep.subr.mxu0 0.0
        %1646 = vmatpush1.msra.mxu0 0.0
        %1647 = vmatprep.subr.mxu0 0.0
        %1648 = vmatpush1.msra.mxu0 0.0
        %1649 = vmatprep.subr.mxu0 0.0
        %1650 = vmatpush1.msra.mxu0 0.0
        %1651 = vmatprep.subr.mxu0 0.0
        %1652 = vmatpush1.msra.mxu0 0.0
        %1653 = vmatprep.subr.mxu0 0.0
        %1654 = vmatpush1.msra.mxu0 0.0
        %1655 = vmatprep.subr.mxu0 0.0
        %1656 = vmatpush1.msra.mxu0 0.0
        %1657 = vmatprep.subr.mxu0 0.0
        %1658 = vmatpush1.msra.mxu0 0.0
        %1659 = vmatprep.subr.mxu0 0.0
        %1660 = vmatpush1.msra.mxu0 0.0
        %1661 = vmatprep.subr.mxu0 0.0
        %1662 = vmatpush1.msra.mxu0 0.0
        %1663 = vmatprep.subr.mxu0 0.0
        %1664 = vmatpush1.msra.mxu0 0.0
        %1665 = vmatprep.subr.mxu0 0.0
        %1666 = vmatpush1.msra.mxu0 0.0
        %1667 = vmatprep.subr.mxu0 0.0
        %1668 = vmatpush1.msra.mxu0 0.0
        %1669 = vmatprep.subr.mxu0 0.0
        %1670 = vmatpush1.msra.mxu0 %v1634
        %1671 = vmatprep.subr.mxu0 0.0
        %1672 = vmatpush2.msra.mxu0 0.0
        %1673 = vmatprep.subr.mxu0 0.0
        %1674 = vmatpush2.msra.mxu0 0.0
        %1675 = vmatprep.subr.mxu0 0.0
        %1676 = vmatpush2.msra.mxu0 0.0
        %1677 = vmatprep.subr.mxu0 0.0
        %1678 = vmatpush2.msra.mxu0 0.0
        %1679 = vmatprep.subr.mxu0 0.0
        %1680 = vmatpush2.msra.mxu0 0.0
        %1681 = vmatprep.subr.mxu0 0.0
        %1682 = vmatpush2.msra.mxu0 0.0
        %1683 = vmatprep.subr.mxu0 0.0
        %1684 = vmatpush2.msra.mxu0 0.0
        %1685 = vmatprep.subr.mxu0 0.0
        %1686 = vmatpush2.msra.mxu0 0.0
        %1687 = vmatprep.subr.mxu0 0.0
        %1688 = vmatpush2.msra.mxu0 0.0
        %1689 = vmatprep.subr.mxu0 0.0
        %1690 = vmatpush2.msra.mxu0 0.0
        %1691 = vmatprep.subr.mxu0 0.0
        %1692 = vmatpush2.msra.mxu0 0.0
        %1693 = vmatprep.subr.mxu0 0.0
        %1694 = vmatpush2.msra.mxu0 0.0
        %1695 = vmatprep.subr.mxu0 0.0
        %1696 = vmatpush2.msra.mxu0 0.0
        %1697 = vmatprep.subr.mxu0 0.0
        %1698 = vmatpush2.msra.mxu0 0.0
        %1699 = vmatprep.subr.mxu0 0.0
        %1700 = vmatpush2.msra.mxu0 0.0
        %1701 = vmatprep.subr.mxu0 0.0
        %1702 = vmatpush2.msra.mxu0 0.0
        %1703 = vmatprep.mubr.f32.mxu0 0.0
        %1704 = vmatmul.mubr.f32.gmra.mxu0 %v1637
        %v1705 = vpop.f32.mrf.mxu0
        %v1706 = vadd.f32 0.0, %v1705
        %v1707 = vpop.f32.mrf.mxu0
        %1708 = vdwg.mxu0
        %1709 = vrot.lane.b32.xlu0 %v587, 48
        %v1710 = vpop.permute.xlu0 %1709
        %v1713 = vsel %vm593, %v1327, 0
        %1715 = vmatprep.subr.mxu0 0.0
        %1716 = vmatpush1.msra.mxu0 0.0
        %1717 = vmatprep.subr.mxu0 0.0
        %1718 = vmatpush1.msra.mxu0 0.0
        %1719 = vmatprep.subr.mxu0 0.0
        %1720 = vmatpush1.msra.mxu0 0.0
        %1721 = vmatprep.subr.mxu0 0.0
        %1722 = vmatpush1.msra.mxu0 0.0
        %1723 = vmatprep.subr.mxu0 0.0
        %1724 = vmatpush1.msra.mxu0 0.0
        %1725 = vmatprep.subr.mxu0 0.0
        %1726 = vmatpush1.msra.mxu0 0.0
        %1727 = vmatprep.subr.mxu0 0.0
        %1728 = vmatpush1.msra.mxu0 0.0
        %1729 = vmatprep.subr.mxu0 0.0
        %1730 = vmatpush1.msra.mxu0 0.0
        %1731 = vmatprep.subr.mxu0 0.0
        %1732 = vmatpush1.msra.mxu0 0.0
        %1733 = vmatprep.subr.mxu0 0.0
        %1734 = vmatpush1.msra.mxu0 0.0
        %1735 = vmatprep.subr.mxu0 0.0
        %1736 = vmatpush1.msra.mxu0 0.0
        %1737 = vmatprep.subr.mxu0 0.0
        %1738 = vmatpush1.msra.mxu0 0.0
        %1739 = vmatprep.subr.mxu0 0.0
        %1740 = vmatpush1.msra.mxu0 0.0
        %1741 = vmatprep.subr.mxu0 0.0
        %1742 = vmatpush1.msra.mxu0 0.0
        %1743 = vmatprep.subr.mxu0 0.0
        %1744 = vmatpush1.msra.mxu0 0.0
        %1745 = vmatprep.subr.mxu0 0.0
        %1746 = vmatpush1.msra.mxu0 %v1710
        %1747 = vmatprep.subr.mxu0 0.0
        %1748 = vmatpush2.msra.mxu0 0.0
        %1749 = vmatprep.subr.mxu0 0.0
        %1750 = vmatpush2.msra.mxu0 0.0
        %1751 = vmatprep.subr.mxu0 0.0
        %1752 = vmatpush2.msra.mxu0 0.0
        %1753 = vmatprep.subr.mxu0 0.0
        %1754 = vmatpush2.msra.mxu0 0.0
        %1755 = vmatprep.subr.mxu0 0.0
        %1756 = vmatpush2.msra.mxu0 0.0
        %1757 = vmatprep.subr.mxu0 0.0
        %1758 = vmatpush2.msra.mxu0 0.0
        %1759 = vmatprep.subr.mxu0 0.0
        %1760 = vmatpush2.msra.mxu0 0.0
        %1761 = vmatprep.subr.mxu0 0.0
        %1762 = vmatpush2.msra.mxu0 0.0
        %1763 = vmatprep.subr.mxu0 0.0
        %1764 = vmatpush2.msra.mxu0 0.0
        %1765 = vmatprep.subr.mxu0 0.0
        %1766 = vmatpush2.msra.mxu0 0.0
        %1767 = vmatprep.subr.mxu0 0.0
        %1768 = vmatpush2.msra.mxu0 0.0
        %1769 = vmatprep.subr.mxu0 0.0
        %1770 = vmatpush2.msra.mxu0 0.0
        %1771 = vmatprep.subr.mxu0 0.0
        %1772 = vmatpush2.msra.mxu0 0.0
        %1773 = vmatprep.subr.mxu0 0.0
        %1774 = vmatpush2.msra.mxu0 0.0
        %1775 = vmatprep.subr.mxu0 0.0
        %1776 = vmatpush2.msra.mxu0 0.0
        %1777 = vmatprep.subr.mxu0 0.0
        %1778 = vmatpush2.msra.mxu0 0.0
        %1779 = vmatprep.mubr.f32.mxu0 0.0
        %1780 = vmatmul.mubr.f32.gmra.mxu0 %v1713
        %v1781 = vpop.f32.mrf.mxu0
        %v1782 = vadd.f32 0.0, %v1781
        %v1783 = vpop.f32.mrf.mxu0
        %1784 = vdwg.mxu0
        %1785 = vrot.lane.b32.xlu0 %v584, 40
        %v1786 = vpop.permute.xlu0 %1785
        %v1789 = vsel %vm593, %v1324, 0
        %1791 = vmatprep.subr.mxu0 0.0
        %1792 = vmatpush1.msra.mxu0 0.0
        %1793 = vmatprep.subr.mxu0 0.0
        %1794 = vmatpush1.msra.mxu0 0.0
        %1795 = vmatprep.subr.mxu0 0.0
        %1796 = vmatpush1.msra.mxu0 0.0
        %1797 = vmatprep.subr.mxu0 0.0
        %1798 = vmatpush1.msra.mxu0 0.0
        %1799 = vmatprep.subr.mxu0 0.0
        %1800 = vmatpush1.msra.mxu0 0.0
        %1801 = vmatprep.subr.mxu0 0.0
        %1802 = vmatpush1.msra.mxu0 0.0
        %1803 = vmatprep.subr.mxu0 0.0
        %1804 = vmatpush1.msra.mxu0 0.0
        %1805 = vmatprep.subr.mxu0 0.0
        %1806 = vmatpush1.msra.mxu0 0.0
        %1807 = vmatprep.subr.mxu0 0.0
        %1808 = vmatpush1.msra.mxu0 0.0
        %1809 = vmatprep.subr.mxu0 0.0
        %1810 = vmatpush1.msra.mxu0 0.0
        %1811 = vmatprep.subr.mxu0 0.0
        %1812 = vmatpush1.msra.mxu0 0.0
        %1813 = vmatprep.subr.mxu0 0.0
        %1814 = vmatpush1.msra.mxu0 0.0
        %1815 = vmatprep.subr.mxu0 0.0
        %1816 = vmatpush1.msra.mxu0 0.0
        %1817 = vmatprep.subr.mxu0 0.0
        %1818 = vmatpush1.msra.mxu0 0.0
        %1819 = vmatprep.subr.mxu0 0.0
        %1820 = vmatpush1.msra.mxu0 0.0
        %1821 = vmatprep.subr.mxu0 0.0
        %1822 = vmatpush1.msra.mxu0 %v1786
        %1823 = vmatprep.subr.mxu0 0.0
        %1824 = vmatpush2.msra.mxu0 0.0
        %1825 = vmatprep.subr.mxu0 0.0
        %1826 = vmatpush2.msra.mxu0 0.0
        %1827 = vmatprep.subr.mxu0 0.0
        %1828 = vmatpush2.msra.mxu0 0.0
        %1829 = vmatprep.subr.mxu0 0.0
        %1830 = vmatpush2.msra.mxu0 0.0
        %1831 = vmatprep.subr.mxu0 0.0
        %1832 = vmatpush2.msra.mxu0 0.0
        %1833 = vmatprep.subr.mxu0 0.0
        %1834 = vmatpush2.msra.mxu0 0.0
        %1835 = vmatprep.subr.mxu0 0.0
        %1836 = vmatpush2.msra.mxu0 0.0
        %1837 = vmatprep.subr.mxu0 0.0
        %1838 = vmatpush2.msra.mxu0 0.0
        %1839 = vmatprep.subr.mxu0 0.0
        %1840 = vmatpush2.msra.mxu0 0.0
        %1841 = vmatprep.subr.mxu0 0.0
        %1842 = vmatpush2.msra.mxu0 0.0
        %1843 = vmatprep.subr.mxu0 0.0
        %1844 = vmatpush2.msra.mxu0 0.0
        %1845 = vmatprep.subr.mxu0 0.0
        %1846 = vmatpush2.msra.mxu0 0.0
        %1847 = vmatprep.subr.mxu0 0.0
        %1848 = vmatpush2.msra.mxu0 0.0
        %1849 = vmatprep.subr.mxu0 0.0
        %1850 = vmatpush2.msra.mxu0 0.0
        %1851 = vmatprep.subr.mxu0 0.0
        %1852 = vmatpush2.msra.mxu0 0.0
        %1853 = vmatprep.subr.mxu0 0.0
        %1854 = vmatpush2.msra.mxu0 0.0
        %1855 = vmatprep.mubr.f32.mxu0 0.0
        %1856 = vmatmul.mubr.f32.gmra.mxu0 %v1789
        %v1857 = vpop.f32.mrf.mxu0
        %v1858 = vadd.f32 0.0, %v1857
        %v1859 = vpop.f32.mrf.mxu0
        %1860 = vdwg.mxu0
        %1861 = vrot.lane.b32.xlu0 %v587, 40
        %v1862 = vpop.permute.xlu0 %1861
        %v1865 = vsel %vm593, %v1328, 0
        %1867 = vmatprep.subr.mxu0 0.0
        %1868 = vmatpush1.msra.mxu0 0.0
        %1869 = vmatprep.subr.mxu0 0.0
        %1870 = vmatpush1.msra.mxu0 0.0
        %1871 = vmatprep.subr.mxu0 0.0
        %1872 = vmatpush1.msra.mxu0 0.0
        %1873 = vmatprep.subr.mxu0 0.0
        %1874 = vmatpush1.msra.mxu0 0.0
        %1875 = vmatprep.subr.mxu0 0.0
        %1876 = vmatpush1.msra.mxu0 0.0
        %1877 = vmatprep.subr.mxu0 0.0
        %1878 = vmatpush1.msra.mxu0 0.0
        %1879 = vmatprep.subr.mxu0 0.0
        %1880 = vmatpush1.msra.mxu0 0.0
        %1881 = vmatprep.subr.mxu0 0.0
        %1882 = vmatpush1.msra.mxu0 0.0
        %1883 = vmatprep.subr.mxu0 0.0
        %1884 = vmatpush1.msra.mxu0 0.0
        %1885 = vmatprep.subr.mxu0 0.0
        %1886 = vmatpush1.msra.mxu0 0.0
        %1887 = vmatprep.subr.mxu0 0.0
        %1888 = vmatpush1.msra.mxu0 0.0
        %1889 = vmatprep.subr.mxu0 0.0
        %1890 = vmatpush1.msra.mxu0 0.0
        %1891 = vmatprep.subr.mxu0 0.0
        %1892 = vmatpush1.msra.mxu0 0.0
        %1893 = vmatprep.subr.mxu0 0.0
        %1894 = vmatpush1.msra.mxu0 0.0
        %1895 = vmatprep.subr.mxu0 0.0
        %1896 = vmatpush1.msra.mxu0 0.0
        %1897 = vmatprep.subr.mxu0 0.0
        %1898 = vmatpush1.msra.mxu0 %v1862
        %1899 = vmatprep.subr.mxu0 0.0
        %1900 = vmatpush2.msra.mxu0 0.0
        %1901 = vmatprep.subr.mxu0 0.0
        %1902 = vmatpush2.msra.mxu0 0.0
        %1903 = vmatprep.subr.mxu0 0.0
        %1904 = vmatpush2.msra.mxu0 0.0
        %1905 = vmatprep.subr.mxu0 0.0
        %1906 = vmatpush2.msra.mxu0 0.0
        %1907 = vmatprep.subr.mxu0 0.0
        %1908 = vmatpush2.msra.mxu0 0.0
        %1909 = vmatprep.subr.mxu0 0.0
        %1910 = vmatpush2.msra.mxu0 0.0
        %1911 = vmatprep.subr.mxu0 0.0
        %1912 = vmatpush2.msra.mxu0 0.0
        %1913 = vmatprep.subr.mxu0 0.0
        %1914 = vmatpush2.msra.mxu0 0.0
        %1915 = vmatprep.subr.mxu0 0.0
        %1916 = vmatpush2.msra.mxu0 0.0
        %1917 = vmatprep.subr.mxu0 0.0
        %1918 = vmatpush2.msra.mxu0 0.0
        %1919 = vmatprep.subr.mxu0 0.0
        %1920 = vmatpush2.msra.mxu0 0.0
        %1921 = vmatprep.subr.mxu0 0.0
        %1922 = vmatpush2.msra.mxu0 0.0
        %1923 = vmatprep.subr.mxu0 0.0
        %1924 = vmatpush2.msra.mxu0 0.0
        %1925 = vmatprep.subr.mxu0 0.0
        %1926 = vmatpush2.msra.mxu0 0.0
        %1927 = vmatprep.subr.mxu0 0.0
        %1928 = vmatpush2.msra.mxu0 0.0
        %1929 = vmatprep.subr.mxu0 0.0
        %1930 = vmatpush2.msra.mxu0 0.0
        %1931 = vmatprep.mubr.f32.mxu0 0.0
        %1932 = vmatmul.mubr.f32.gmra.mxu0 %v1865
        %v1933 = vpop.f32.mrf.mxu0
        %v1934 = vadd.f32 0.0, %v1933
        %v1935 = vpop.f32.mrf.mxu0
        %1936 = vdwg.mxu0
        %1939 = vrot.lane.b32.xlu0 %v1554, 8
        %v1940 = vpop.permute.xlu0 %1939
        %1941 = vrot.lane.b32.xlu0 %v1630, 8
        %v1942 = vpop.permute.xlu0 %1941
        %1947 = vrot.lane.b32.xlu0 %v1706, 16
        %v1948 = vpop.permute.xlu0 %1947
        %1949 = vrot.lane.b32.xlu0 %v1782, 16
        %v1950 = vpop.permute.xlu0 %1949
        %1955 = vrot.lane.b32.xlu0 %v1858, 24
        %v1956 = vpop.permute.xlu0 %1955
        %1957 = vrot.lane.b32.xlu0 %v1934, 24
        %v1958 = vpop.permute.xlu0 %1957
        %v1961 = vsel %vm593, %v1402, %v1940
        %v1962 = vsel %vm593, %v1478, %v1942
        %vm1963 = vcmask 130048
        %v1964 = vsel %vm1963, %v1961, %v1948
        %v1965 = vsel %vm1963, %v1962, %v1950
        %vm1966 = vcmask 195584
        %v1967 = vsel %vm1966, %v1964, %v1956
        %v1968 = vsel %vm1966, %v1965, %v1958
        %v1969 = vpack.c.bf16 %v1968, %v1967
        %v1970 = vld [vmem:[%s488] sm:$0xf]
        %v1971 = vld [vmem:[%s488 + $0x4] sm:$0xf]
        %v1972 = vld [vmem:[%s488 + $0x8] sm:$0xf]
        %v1973 = vld [vmem:[%s488 + $0xc] sm:$0xf]
        %v1974 = vld [vmem:[%s492] sm:$0x1]
        %v1975 = vlaneseq
        %v1976 = vshrl.u32 %v1975, 7
        %v1977 = vsub.s32 0, %v1976
        %v1978 = vrot.slane %v1974, %v1977
        %v1983 = vunpack.c.l.b16 %v1970
        %v1984 = vunpack.c.l.b16 %v1971
        %v1985 = vunpack.c.l.b16 %v1972
        %v1986 = vunpack.c.l.b16 %v1973
        %v1987 = vpack.c.b16 %v1984, %v1983
        %v1988 = vpack.c.b16 %v1986, %v1985
        %v1992 = vsel %vm545, %v1969, 0
        %1994 = vmatprep.subr.bf16.mxu0 0
        %1995 = vmatpush1.bf16.msra.mxu0 0
        %1996 = vmatprep.subr.bf16.mxu0 0
        %1997 = vmatpush1.bf16.msra.mxu0 0
        %1998 = vmatprep.subr.bf16.mxu0 0
        %1999 = vmatpush1.bf16.msra.mxu0 0
        %2000 = vmatprep.subr.bf16.mxu0 0
        %2001 = vmatpush1.bf16.msra.mxu0 0
        %2002 = vmatprep.subr.bf16.mxu0 0
        %2003 = vmatpush1.bf16.msra.mxu0 0
        %2004 = vmatprep.subr.bf16.mxu0 0
        %2005 = vmatpush1.bf16.msra.mxu0 0
        %2006 = vmatprep.subr.bf16.mxu0 0
        %2007 = vmatpush1.bf16.msra.mxu0 %v1988
        %2008 = vmatprep.subr.bf16.mxu0 0
        %2009 = vmatpush1.bf16.msra.mxu0 %v1987
        %2010 = vmatprep.subr.bf16.mxu0 0
        %2011 = vmatpush2.bf16.msra.mxu0 0
        %2012 = vmatprep.subr.bf16.mxu0 0
        %2013 = vmatpush2.bf16.msra.mxu0 0
        %2014 = vmatprep.subr.bf16.mxu0 0
        %2015 = vmatpush2.bf16.msra.mxu0 0
        %2016 = vmatprep.subr.bf16.mxu0 0
        %2017 = vmatpush2.bf16.msra.mxu0 0
        %2018 = vmatprep.subr.bf16.mxu0 0
        %2019 = vmatpush2.bf16.msra.mxu0 0
        %2020 = vmatprep.subr.bf16.mxu0 0
        %2021 = vmatpush2.bf16.msra.mxu0 0
        %2022 = vmatprep.subr.bf16.mxu0 0
        %2023 = vmatpush2.bf16.msra.mxu0 0
        %2024 = vmatprep.subr.bf16.mxu0 0
        %2025 = vmatpush2.bf16.msra.mxu0 0
        %2026 = vmatprep.mubr.bf16.mxu0 0
        %2027 = vmatmul.mubr.bf16.gmra.mxu0 %v1992
        %v2028 = vpop.f32.mrf.mxu0
        %v2029 = vadd.f32 %v1978, %v2028
        %v2030 = vpop.f32.mrf.mxu0
        %v2031 = vpop.f32.mrf.mxu0
        %v2032 = vadd.f32 %v1978, %v2031
        %v2033 = vpop.f32.mrf.mxu0
        %2034 = vdwg.mxu0
        %v2035 = vadd.f32 %v517, %v2029
        %v2036 = vadd.f32 %v518, %v2032
        %v2037 = vld [vmem:[%s492 + $0x2] sm:$0x1]
        %v2038 = vld [vmem:[%s492 + $0x3] sm:$0x1]
        %v2039 = vsel %vm545, %v2035, 0.0
        %2040 = vadd.xlane.f32.xlu0 %v2039
        %v2041 = vpop.xlane.xlu0 %2040
        %v2042 = vsel %vm545, %v2036, 0.0
        %2043 = vadd.xlane.f32.xlu0 %v2042
        %v2044 = vpop.xlane.xlu0 %2043
        %v2045 = vrcp.pop 32.0
        %v2046 = vmul.f32 %v2041, %v2045
        %v2047 = vmul.f32 %v2044, %v2045
        %v2048 = vsub.f32 %v2035, %v2046
        %v2049 = vsub.f32 %v2036, %v2047
        %v2050 = vmul.f32 %v2048, %v2048
        %v2051 = vmul.f32 %v2049, %v2049
        %v2052 = vsel %vm545, %v2050, 0.0
        %2053 = vadd.xlane.f32.xlu0 %v2052
        %v2054 = vpop.xlane.xlu0 %2053
        %v2055 = vsel %vm545, %v2051, 0.0
        %2056 = vadd.xlane.f32.xlu0 %v2055
        %v2057 = vpop.xlane.xlu0 %2056
        %v2058 = vmul.f32 %v2054, %v2045
        %v2059 = vmul.f32 %v2057, %v2045
        %v2060 = vadd.f32 %v2058, 1e-05
        %v2061 = vadd.f32 %v2059, 1e-05
        %v2062 = vrsqrt.pop %v2060
        %v2063 = vrsqrt.pop %v2061
        %v2064 = vmul.f32 %v2048, %v2062
        %v2065 = vmul.f32 %v2049, %v2063
        %v2066 = vlaneseq
        %v2067 = vshrl.u32 %v2066, 7
        %v2068 = vsub.s32 0, %v2067
        %v2069 = vrot.slane %v2037, %v2068
        %v2070 = vmul.f32 %v2064, %v2069
        %v2071 = vmul.f32 %v2065, %v2069
        %v2072 = vlaneseq
        %v2073 = vshrl.u32 %v2072, 7
        %v2074 = vsub.s32 0, %v2073
        %v2075 = vrot.slane %v2038, %v2074
        %v2076 = vadd.f32 %v2070, %v2075
        %v2077 = vadd.f32 %v2071, %v2075
        %v2078 = vpack.c.bf16 %v2077, %v2076
        %v2079 = vld [vmem:[%s497] sm:$0xff]
        %v2080 = vld [vmem:[%s497 + $0x8] sm:$0xff]
        %v2081 = vld [vmem:[%s497 + $0x10] sm:$0xff]
        %v2082 = vld [vmem:[%s497 + $0x18] sm:$0xff]
        %v2083 = vld [vmem:[%s497 + $0x20] sm:$0xff]
        %v2084 = vld [vmem:[%s497 + $0x28] sm:$0xff]
        %v2085 = vld [vmem:[%s497 + $0x30] sm:$0xff]
        %v2086 = vld [vmem:[%s497 + $0x38] sm:$0xff]
        %v2087 = vld [vmem:[%s497 + $0x40] sm:$0xff]
        %v2088 = vld [vmem:[%s497 + $0x48] sm:$0xff]
        %v2089 = vld [vmem:[%s497 + $0x50] sm:$0xff]
        %v2090 = vld [vmem:[%s497 + $0x58] sm:$0xff]
        %v2091 = vld [vmem:[%s497 + $0x60] sm:$0xff]
        %v2092 = vld [vmem:[%s497 + $0x68] sm:$0xff]
        %v2093 = vld [vmem:[%s497 + $0x70] sm:$0xff]
        %v2094 = vld [vmem:[%s497 + $0x78] sm:$0xff]
        %v2095 = vld [vmem:[%s497 + $0x80] sm:$0xff]
        %v2096 = vld [vmem:[%s497 + $0x88] sm:$0xff]
        %v2097 = vld [vmem:[%s497 + $0x90] sm:$0xff]
        %v2098 = vld [vmem:[%s497 + $0x98] sm:$0xff]
        %v2099 = vld [vmem:[%s497 + $0xa0] sm:$0xff]
        %v2100 = vld [vmem:[%s497 + $0xa8] sm:$0xff]
        %v2101 = vld [vmem:[%s497 + $0xb0] sm:$0xff]
        %v2102 = vld [vmem:[%s497 + $0xb8] sm:$0xff]
        %v2103 = vld [vmem:[%s497 + $0xc0] sm:$0xff]
        %v2104 = vld [vmem:[%s497 + $0xc8] sm:$0xff]
        %v2105 = vld [vmem:[%s497 + $0xd0] sm:$0xff]
        %v2106 = vld [vmem:[%s497 + $0xd8] sm:$0xff]
        %v2107 = vld [vmem:[%s497 + $0xe0] sm:$0xff]
        %v2108 = vld [vmem:[%s497 + $0xe8] sm:$0xff]
        %v2109 = vld [vmem:[%s497 + $0xf0] sm:$0xff]
        %v2110 = vld [vmem:[%s497 + $0xf8] sm:$0xff]
        %v2111 = vld [vmem:[%s501] sm:$0xff]
        %v2112 = vld [vmem:[%s501 + $0x8] sm:$0xff]
        %v2115 = vlaneseq
        %v2116 = vshrl.u32 %v2115, 7
        %v2117 = vsub.s32 0, %v2116
        %v2118 = vrot.slane %v2111, %v2117
        %v2119 = vlaneseq
        %v2120 = vshrl.u32 %v2119, 7
        %v2121 = vsub.s32 1, %v2120
        %v2122 = vrot.slane %v2111, %v2121
        %v2123 = vlaneseq
        %v2124 = vshrl.u32 %v2123, 7
        %v2125 = vsub.s32 2, %v2124
        %v2126 = vrot.slane %v2111, %v2125
        %v2127 = vlaneseq
        %v2128 = vshrl.u32 %v2127, 7
        %v2129 = vsub.s32 3, %v2128
        %v2130 = vrot.slane %v2111, %v2129
        %v2131 = vlaneseq
        %v2132 = vshrl.u32 %v2131, 7
        %v2133 = vsub.s32 4, %v2132
        %v2134 = vrot.slane %v2111, %v2133
        %v2135 = vlaneseq
        %v2136 = vshrl.u32 %v2135, 7
        %v2137 = vsub.s32 5, %v2136
        %v2138 = vrot.slane %v2111, %v2137
        %v2139 = vlaneseq
        %v2140 = vshrl.u32 %v2139, 7
        %v2141 = vsub.s32 6, %v2140
        %v2142 = vrot.slane %v2111, %v2141
        %v2143 = vlaneseq
        %v2144 = vshrl.u32 %v2143, 7
        %v2145 = vsub.s32 7, %v2144
        %v2146 = vrot.slane %v2111, %v2145
        %v2147 = vlaneseq
        %v2148 = vshrl.u32 %v2147, 7
        %v2149 = vsub.s32 0, %v2148
        %v2150 = vrot.slane %v2112, %v2149
        %v2151 = vlaneseq
        %v2152 = vshrl.u32 %v2151, 7
        %v2153 = vsub.s32 1, %v2152
        %v2154 = vrot.slane %v2112, %v2153
        %v2155 = vlaneseq
        %v2156 = vshrl.u32 %v2155, 7
        %v2157 = vsub.s32 2, %v2156
        %v2158 = vrot.slane %v2112, %v2157
        %v2159 = vlaneseq
        %v2160 = vshrl.u32 %v2159, 7
        %v2161 = vsub.s32 3, %v2160
        %v2162 = vrot.slane %v2112, %v2161
        %v2163 = vlaneseq
        %v2164 = vshrl.u32 %v2163, 7
        %v2165 = vsub.s32 4, %v2164
        %v2166 = vrot.slane %v2112, %v2165
        %v2167 = vlaneseq
        %v2168 = vshrl.u32 %v2167, 7
        %v2169 = vsub.s32 5, %v2168
        %v2170 = vrot.slane %v2112, %v2169
        %v2171 = vlaneseq
        %v2172 = vshrl.u32 %v2171, 7
        %v2173 = vsub.s32 6, %v2172
        %v2174 = vrot.slane %v2112, %v2173
        %v2175 = vlaneseq
        %v2176 = vshrl.u32 %v2175, 7
        %v2177 = vsub.s32 7, %v2176
        %v2178 = vrot.slane %v2112, %v2177
        %v2227 = vunpack.c.l.b16 %v2079
        %v2228 = vunpack.c.h.b16 %v2079
        %v2229 = vunpack.c.l.b16 %v2080
        %v2230 = vunpack.c.h.b16 %v2080
        %v2231 = vunpack.c.l.b16 %v2081
        %v2232 = vunpack.c.h.b16 %v2081
        %v2233 = vunpack.c.l.b16 %v2082
        %v2234 = vunpack.c.h.b16 %v2082
        %v2235 = vunpack.c.l.b16 %v2083
        %v2236 = vunpack.c.h.b16 %v2083
        %v2237 = vunpack.c.l.b16 %v2084
        %v2238 = vunpack.c.h.b16 %v2084
        %v2239 = vunpack.c.l.b16 %v2085
        %v2240 = vunpack.c.h.b16 %v2085
        %v2241 = vunpack.c.l.b16 %v2086
        %v2242 = vunpack.c.h.b16 %v2086
        %v2243 = vunpack.c.l.b16 %v2087
        %v2244 = vunpack.c.h.b16 %v2087
        %v2245 = vunpack.c.l.b16 %v2088
        %v2246 = vunpack.c.h.b16 %v2088
        %v2247 = vunpack.c.l.b16 %v2089
        %v2248 = vunpack.c.h.b16 %v2089
        %v2249 = vunpack.c.l.b16 %v2090
        %v2250 = vunpack.c.h.b16 %v2090
        %v2251 = vunpack.c.l.b16 %v2091
        %v2252 = vunpack.c.h.b16 %v2091
        %v2253 = vunpack.c.l.b16 %v2092
        %v2254 = vunpack.c.h.b16 %v2092
        %v2255 = vunpack.c.l.b16 %v2093
        %v2256 = vunpack.c.h.b16 %v2093
        %v2257 = vunpack.c.l.b16 %v2094
        %v2258 = vunpack.c.h.b16 %v2094
        %v2259 = vunpack.c.l.b16 %v2095
        %v2260 = vunpack.c.h.b16 %v2095
        %v2261 = vunpack.c.l.b16 %v2096
        %v2262 = vunpack.c.h.b16 %v2096
        %v2263 = vunpack.c.l.b16 %v2097
        %v2264 = vunpack.c.h.b16 %v2097
        %v2265 = vunpack.c.l.b16 %v2098
        %v2266 = vunpack.c.h.b16 %v2098
        %v2267 = vunpack.c.l.b16 %v2099
        %v2268 = vunpack.c.h.b16 %v2099
        %v2269 = vunpack.c.l.b16 %v2100
        %v2270 = vunpack.c.h.b16 %v2100
        %v2271 = vunpack.c.l.b16 %v2101
        %v2272 = vunpack.c.h.b16 %v2101
        %v2273 = vunpack.c.l.b16 %v2102
        %v2274 = vunpack.c.h.b16 %v2102
        %v2275 = vunpack.c.l.b16 %v2103
        %v2276 = vunpack.c.h.b16 %v2103
        %v2277 = vunpack.c.l.b16 %v2104
        %v2278 = vunpack.c.h.b16 %v2104
        %v2279 = vunpack.c.l.b16 %v2105
        %v2280 = vunpack.c.h.b16 %v2105
        %v2281 = vunpack.c.l.b16 %v2106
        %v2282 = vunpack.c.h.b16 %v2106
        %v2283 = vunpack.c.l.b16 %v2107
        %v2284 = vunpack.c.h.b16 %v2107
        %v2285 = vunpack.c.l.b16 %v2108
        %v2286 = vunpack.c.h.b16 %v2108
        %v2287 = vunpack.c.l.b16 %v2109
        %v2288 = vunpack.c.h.b16 %v2109
        %v2289 = vunpack.c.l.b16 %v2110
        %v2290 = vunpack.c.h.b16 %v2110
        %v2291 = vpack.c.b16 %v2243, %v2227
        %v2292 = vpack.c.b16 %v2244, %v2228
        %v2293 = vpack.c.b16 %v2245, %v2229
        %v2294 = vpack.c.b16 %v2246, %v2230
        %v2295 = vpack.c.b16 %v2247, %v2231
        %v2296 = vpack.c.b16 %v2248, %v2232
        %v2297 = vpack.c.b16 %v2249, %v2233
        %v2298 = vpack.c.b16 %v2250, %v2234
        %v2299 = vpack.c.b16 %v2251, %v2235
        %v2300 = vpack.c.b16 %v2252, %v2236
        %v2301 = vpack.c.b16 %v2253, %v2237
        %v2302 = vpack.c.b16 %v2254, %v2238
        %v2303 = vpack.c.b16 %v2255, %v2239
        %v2304 = vpack.c.b16 %v2256, %v2240
        %v2305 = vpack.c.b16 %v2257, %v2241
        %v2306 = vpack.c.b16 %v2258, %v2242
        %v2307 = vpack.c.b16 %v2275, %v2259
        %v2308 = vpack.c.b16 %v2276, %v2260
        %v2309 = vpack.c.b16 %v2277, %v2261
        %v2310 = vpack.c.b16 %v2278, %v2262
        %v2311 = vpack.c.b16 %v2279, %v2263
        %v2312 = vpack.c.b16 %v2280, %v2264
        %v2313 = vpack.c.b16 %v2281, %v2265
        %v2314 = vpack.c.b16 %v2282, %v2266
        %v2315 = vpack.c.b16 %v2283, %v2267
        %v2316 = vpack.c.b16 %v2284, %v2268
        %v2317 = vpack.c.b16 %v2285, %v2269
        %v2318 = vpack.c.b16 %v2286, %v2270
        %v2319 = vpack.c.b16 %v2287, %v2271
        %v2320 = vpack.c.b16 %v2288, %v2272
        %v2321 = vpack.c.b16 %v2289, %v2273
        %v2322 = vpack.c.b16 %v2290, %v2274
        %v2356 = vsel %vm545, %v2078, 0
        %2358 = vmatprep.subr.bf16.mxu0 0
        %2359 = vmatpush1.bf16.msra.mxu0 0
        %2360 = vmatprep.subr.bf16.mxu0 0
        %2361 = vmatpush1.bf16.msra.mxu0 0
        %2362 = vmatprep.subr.bf16.mxu0 0
        %2363 = vmatpush1.bf16.msra.mxu0 0
        %2364 = vmatprep.subr.bf16.mxu0 0
        %2365 = vmatpush1.bf16.msra.mxu0 0
        %2366 = vmatprep.subr.bf16.mxu0 0
        %2367 = vmatpush1.bf16.msra.mxu0 0
        %2368 = vmatprep.subr.bf16.mxu0 0
        %2369 = vmatpush1.bf16.msra.mxu0 0
        %2370 = vmatprep.subr.bf16.mxu0 %v2308
        %2371 = vmatpush1.bf16.msra.mxu0 %v2307
        %2372 = vmatprep.subr.bf16.mxu0 %v2292
        %2373 = vmatpush1.bf16.msra.mxu0 %v2291
        %2374 = vmatprep.subr.bf16.mxu0 0
        %2375 = vmatpush2.bf16.msra.mxu0 0
        %2376 = vmatprep.subr.bf16.mxu0 0
        %2377 = vmatpush2.bf16.msra.mxu0 0
        %2378 = vmatprep.subr.bf16.mxu0 0
        %2379 = vmatpush2.bf16.msra.mxu0 0
        %2380 = vmatprep.subr.bf16.mxu0 0
        %2381 = vmatpush2.bf16.msra.mxu0 0
        %2382 = vmatprep.subr.bf16.mxu0 0
        %2383 = vmatpush2.bf16.msra.mxu0 0
        %2384 = vmatprep.subr.bf16.mxu0 0
        %2385 = vmatpush2.bf16.msra.mxu0 0
        %2386 = vmatprep.subr.bf16.mxu0 0
        %2387 = vmatpush2.bf16.msra.mxu0 0
        %2388 = vmatprep.subr.bf16.mxu0 0
        %2389 = vmatpush2.bf16.msra.mxu0 0
        %2390 = vmatprep.mubr.bf16.mxu0 0
        %2391 = vmatmul.mubr.bf16.gmra.mxu0 %v2356
        %v2392 = vpop.f32.mrf.mxu0
        %v2393 = vadd.f32 %v2118, %v2392
        %v2394 = vpop.f32.mrf.mxu0
        %v2395 = vadd.f32 %v2122, %v2394
        %v2396 = vpop.f32.mrf.mxu0
        %v2397 = vadd.f32 %v2118, %v2396
        %v2398 = vpop.f32.mrf.mxu0
        %v2399 = vadd.f32 %v2122, %v2398
        %2400 = vdwg.mxu0
        %2401 = vmatprep.subr.bf16.mxu0 0
        %2402 = vmatpush1.bf16.msra.mxu0 0
        %2403 = vmatprep.subr.bf16.mxu0 0
        %2404 = vmatpush1.bf16.msra.mxu0 0
        %2405 = vmatprep.subr.bf16.mxu0 0
        %2406 = vmatpush1.bf16.msra.mxu0 0
        %2407 = vmatprep.subr.bf16.mxu0 0
        %2408 = vmatpush1.bf16.msra.mxu0 0
        %2409 = vmatprep.subr.bf16.mxu0 0
        %2410 = vmatpush1.bf16.msra.mxu0 0
        %2411 = vmatprep.subr.bf16.mxu0 0
        %2412 = vmatpush1.bf16.msra.mxu0 0
        %2413 = vmatprep.subr.bf16.mxu0 %v2310
        %2414 = vmatpush1.bf16.msra.mxu0 %v2309
        %2415 = vmatprep.subr.bf16.mxu0 %v2294
        %2416 = vmatpush1.bf16.msra.mxu0 %v2293
        %2417 = vmatprep.subr.bf16.mxu0 0
        %2418 = vmatpush2.bf16.msra.mxu0 0
        %2419 = vmatprep.subr.bf16.mxu0 0
        %2420 = vmatpush2.bf16.msra.mxu0 0
        %2421 = vmatprep.subr.bf16.mxu0 0
        %2422 = vmatpush2.bf16.msra.mxu0 0
        %2423 = vmatprep.subr.bf16.mxu0 0
        %2424 = vmatpush2.bf16.msra.mxu0 0
        %2425 = vmatprep.subr.bf16.mxu0 0
        %2426 = vmatpush2.bf16.msra.mxu0 0
        %2427 = vmatprep.subr.bf16.mxu0 0
        %2428 = vmatpush2.bf16.msra.mxu0 0
        %2429 = vmatprep.subr.bf16.mxu0 0
        %2430 = vmatpush2.bf16.msra.mxu0 0
        %2431 = vmatprep.subr.bf16.mxu0 0
        %2432 = vmatpush2.bf16.msra.mxu0 0
        %2433 = vmatprep.mubr.bf16.mxu0 0
        %2434 = vmatmul.mubr.bf16.gmra.mxu0 %v2356
        %v2435 = vpop.f32.mrf.mxu0
        %v2436 = vadd.f32 %v2126, %v2435
        %v2437 = vpop.f32.mrf.mxu0
        %v2438 = vadd.f32 %v2130, %v2437
        %v2439 = vpop.f32.mrf.mxu0
        %v2440 = vadd.f32 %v2126, %v2439
        %v2441 = vpop.f32.mrf.mxu0
        %v2442 = vadd.f32 %v2130, %v2441
        %2443 = vdwg.mxu0
        %2444 = vmatprep.subr.bf16.mxu0 0
        %2445 = vmatpush1.bf16.msra.mxu0 0
        %2446 = vmatprep.subr.bf16.mxu0 0
        %2447 = vmatpush1.bf16.msra.mxu0 0
        %2448 = vmatprep.subr.bf16.mxu0 0
        %2449 = vmatpush1.bf16.msra.mxu0 0
        %2450 = vmatprep.subr.bf16.mxu0 0
        %2451 = vmatpush1.bf16.msra.mxu0 0
        %2452 = vmatprep.subr.bf16.mxu0 0
        %2453 = vmatpush1.bf16.msra.mxu0 0
        %2454 = vmatprep.subr.bf16.mxu0 0
        %2455 = vmatpush1.bf16.msra.mxu0 0
        %2456 = vmatprep.subr.bf16.mxu0 %v2312
        %2457 = vmatpush1.bf16.msra.mxu0 %v2311
        %2458 = vmatprep.subr.bf16.mxu0 %v2296
        %2459 = vmatpush1.bf16.msra.mxu0 %v2295
        %2460 = vmatprep.subr.bf16.mxu0 0
        %2461 = vmatpush2.bf16.msra.mxu0 0
        %2462 = vmatprep.subr.bf16.mxu0 0
        %2463 = vmatpush2.bf16.msra.mxu0 0
        %2464 = vmatprep.subr.bf16.mxu0 0
        %2465 = vmatpush2.bf16.msra.mxu0 0
        %2466 = vmatprep.subr.bf16.mxu0 0
        %2467 = vmatpush2.bf16.msra.mxu0 0
        %2468 = vmatprep.subr.bf16.mxu0 0
        %2469 = vmatpush2.bf16.msra.mxu0 0
        %2470 = vmatprep.subr.bf16.mxu0 0
        %2471 = vmatpush2.bf16.msra.mxu0 0
        %2472 = vmatprep.subr.bf16.mxu0 0
        %2473 = vmatpush2.bf16.msra.mxu0 0
        %2474 = vmatprep.subr.bf16.mxu0 0
        %2475 = vmatpush2.bf16.msra.mxu0 0
        %2476 = vmatprep.mubr.bf16.mxu0 0
        %2477 = vmatmul.mubr.bf16.gmra.mxu0 %v2356
        %v2478 = vpop.f32.mrf.mxu0
        %v2479 = vadd.f32 %v2134, %v2478
        %v2480 = vpop.f32.mrf.mxu0
        %v2481 = vadd.f32 %v2138, %v2480
        %v2482 = vpop.f32.mrf.mxu0
        %v2483 = vadd.f32 %v2134, %v2482
        %v2484 = vpop.f32.mrf.mxu0
        %v2485 = vadd.f32 %v2138, %v2484
        %2486 = vdwg.mxu0
        %2487 = vmatprep.subr.bf16.mxu0 0
        %2488 = vmatpush1.bf16.msra.mxu0 0
        %2489 = vmatprep.subr.bf16.mxu0 0
        %2490 = vmatpush1.bf16.msra.mxu0 0
        %2491 = vmatprep.subr.bf16.mxu0 0
        %2492 = vmatpush1.bf16.msra.mxu0 0
        %2493 = vmatprep.subr.bf16.mxu0 0
        %2494 = vmatpush1.bf16.msra.mxu0 0
        %2495 = vmatprep.subr.bf16.mxu0 0
        %2496 = vmatpush1.bf16.msra.mxu0 0
        %2497 = vmatprep.subr.bf16.mxu0 0
        %2498 = vmatpush1.bf16.msra.mxu0 0
        %2499 = vmatprep.subr.bf16.mxu0 %v2314
        %2500 = vmatpush1.bf16.msra.mxu0 %v2313
        %2501 = vmatprep.subr.bf16.mxu0 %v2298
        %2502 = vmatpush1.bf16.msra.mxu0 %v2297
        %2503 = vmatprep.subr.bf16.mxu0 0
        %2504 = vmatpush2.bf16.msra.mxu0 0
        %2505 = vmatprep.subr.bf16.mxu0 0
        %2506 = vmatpush2.bf16.msra.mxu0 0
        %2507 = vmatprep.subr.bf16.mxu0 0
        %2508 = vmatpush2.bf16.msra.mxu0 0
        %2509 = vmatprep.subr.bf16.mxu0 0
        %2510 = vmatpush2.bf16.msra.mxu0 0
        %2511 = vmatprep.subr.bf16.mxu0 0
        %2512 = vmatpush2.bf16.msra.mxu0 0
        %2513 = vmatprep.subr.bf16.mxu0 0
        %2514 = vmatpush2.bf16.msra.mxu0 0
        %2515 = vmatprep.subr.bf16.mxu0 0
        %2516 = vmatpush2.bf16.msra.mxu0 0
        %2517 = vmatprep.subr.bf16.mxu0 0
        %2518 = vmatpush2.bf16.msra.mxu0 0
        %2519 = vmatprep.mubr.bf16.mxu0 0
        %2520 = vmatmul.mubr.bf16.gmra.mxu0 %v2356
        %v2521 = vpop.f32.mrf.mxu0
        %v2522 = vadd.f32 %v2142, %v2521
        %v2523 = vpop.f32.mrf.mxu0
        %v2524 = vadd.f32 %v2146, %v2523
        %v2525 = vpop.f32.mrf.mxu0
        %v2526 = vadd.f32 %v2142, %v2525
        %v2527 = vpop.f32.mrf.mxu0
        %v2528 = vadd.f32 %v2146, %v2527
        %2529 = vdwg.mxu0
        %2530 = vmatprep.subr.bf16.mxu0 0
        %2531 = vmatpush1.bf16.msra.mxu0 0
        %2532 = vmatprep.subr.bf16.mxu0 0
        %2533 = vmatpush1.bf16.msra.mxu0 0
        %2534 = vmatprep.subr.bf16.mxu0 0
        %2535 = vmatpush1.bf16.msra.mxu0 0
        %2536 = vmatprep.subr.bf16.mxu0 0
        %2537 = vmatpush1.bf16.msra.mxu0 0
        %2538 = vmatprep.subr.bf16.mxu0 0
        %2539 = vmatpush1.bf16.msra.mxu0 0
        %2540 = vmatprep.subr.bf16.mxu0 0
        %2541 = vmatpush1.bf16.msra.mxu0 0
        %2542 = vmatprep.subr.bf16.mxu0 %v2316
        %2543 = vmatpush1.bf16.msra.mxu0 %v2315
        %2544 = vmatprep.subr.bf16.mxu0 %v2300
        %2545 = vmatpush1.bf16.msra.mxu0 %v2299
        %2546 = vmatprep.subr.bf16.mxu0 0
        %2547 = vmatpush2.bf16.msra.mxu0 0
        %2548 = vmatprep.subr.bf16.mxu0 0
        %2549 = vmatpush2.bf16.msra.mxu0 0
        %2550 = vmatprep.subr.bf16.mxu0 0
        %2551 = vmatpush2.bf16.msra.mxu0 0
        %2552 = vmatprep.subr.bf16.mxu0 0
        %2553 = vmatpush2.bf16.msra.mxu0 0
        %2554 = vmatprep.subr.bf16.mxu0 0
        %2555 = vmatpush2.bf16.msra.mxu0 0
        %2556 = vmatprep.subr.bf16.mxu0 0
        %2557 = vmatpush2.bf16.msra.mxu0 0
        %2558 = vmatprep.subr.bf16.mxu0 0
        %2559 = vmatpush2.bf16.msra.mxu0 0
        %2560 = vmatprep.subr.bf16.mxu0 0
        %2561 = vmatpush2.bf16.msra.mxu0 0
        %2562 = vmatprep.mubr.bf16.mxu0 0
        %2563 = vmatmul.mubr.bf16.gmra.mxu0 %v2356
        %v2564 = vpop.f32.mrf.mxu0
        %v2565 = vadd.f32 %v2150, %v2564
        %v2566 = vpop.f32.mrf.mxu0
        %v2567 = vadd.f32 %v2154, %v2566
        %v2568 = vpop.f32.mrf.mxu0
        %v2569 = vadd.f32 %v2150, %v2568
        %v2570 = vpop.f32.mrf.mxu0
        %v2571 = vadd.f32 %v2154, %v2570
        %2572 = vdwg.mxu0
        %2573 = vmatprep.subr.bf16.mxu0 0
        %2574 = vmatpush1.bf16.msra.mxu0 0
        %2575 = vmatprep.subr.bf16.mxu0 0
        %2576 = vmatpush1.bf16.msra.mxu0 0
        %2577 = vmatprep.subr.bf16.mxu0 0
        %2578 = vmatpush1.bf16.msra.mxu0 0
        %2579 = vmatprep.subr.bf16.mxu0 0
        %2580 = vmatpush1.bf16.msra.mxu0 0
        %2581 = vmatprep.subr.bf16.mxu0 0
        %2582 = vmatpush1.bf16.msra.mxu0 0
        %2583 = vmatprep.subr.bf16.mxu0 0
        %2584 = vmatpush1.bf16.msra.mxu0 0
        %2585 = vmatprep.subr.bf16.mxu0 %v2318
        %2586 = vmatpush1.bf16.msra.mxu0 %v2317
        %2587 = vmatprep.subr.bf16.mxu0 %v2302
        %2588 = vmatpush1.bf16.msra.mxu0 %v2301
        %2589 = vmatprep.subr.bf16.mxu0 0
        %2590 = vmatpush2.bf16.msra.mxu0 0
        %2591 = vmatprep.subr.bf16.mxu0 0
        %2592 = vmatpush2.bf16.msra.mxu0 0
        %2593 = vmatprep.subr.bf16.mxu0 0
        %2594 = vmatpush2.bf16.msra.mxu0 0
        %2595 = vmatprep.subr.bf16.mxu0 0
        %2596 = vmatpush2.bf16.msra.mxu0 0
        %2597 = vmatprep.subr.bf16.mxu0 0
        %2598 = vmatpush2.bf16.msra.mxu0 0
        %2599 = vmatprep.subr.bf16.mxu0 0
        %2600 = vmatpush2.bf16.msra.mxu0 0
        %2601 = vmatprep.subr.bf16.mxu0 0
        %2602 = vmatpush2.bf16.msra.mxu0 0
        %2603 = vmatprep.subr.bf16.mxu0 0
        %2604 = vmatpush2.bf16.msra.mxu0 0
        %2605 = vmatprep.mubr.bf16.mxu0 0
        %2606 = vmatmul.mubr.bf16.gmra.mxu0 %v2356
        %v2607 = vpop.f32.mrf.mxu0
        %v2608 = vadd.f32 %v2158, %v2607
        %v2609 = vpop.f32.mrf.mxu0
        %v2610 = vadd.f32 %v2162, %v2609
        %v2611 = vpop.f32.mrf.mxu0
        %v2612 = vadd.f32 %v2158, %v2611
        %v2613 = vpop.f32.mrf.mxu0
        %v2614 = vadd.f32 %v2162, %v2613
        %2615 = vdwg.mxu0
        %2616 = vmatprep.subr.bf16.mxu0 0
        %2617 = vmatpush1.bf16.msra.mxu0 0
        %2618 = vmatprep.subr.bf16.mxu0 0
        %2619 = vmatpush1.bf16.msra.mxu0 0
        %2620 = vmatprep.subr.bf16.mxu0 0
        %2621 = vmatpush1.bf16.msra.mxu0 0
        %2622 = vmatprep.subr.bf16.mxu0 0
        %2623 = vmatpush1.bf16.msra.mxu0 0
        %2624 = vmatprep.subr.bf16.mxu0 0
        %2625 = vmatpush1.bf16.msra.mxu0 0
        %2626 = vmatprep.subr.bf16.mxu0 0
        %2627 = vmatpush1.bf16.msra.mxu0 0
        %2628 = vmatprep.subr.bf16.mxu0 %v2320
        %2629 = vmatpush1.bf16.msra.mxu0 %v2319
        %2630 = vmatprep.subr.bf16.mxu0 %v2304
        %2631 = vmatpush1.bf16.msra.mxu0 %v2303
        %2632 = vmatprep.subr.bf16.mxu0 0
        %2633 = vmatpush2.bf16.msra.mxu0 0
        %2634 = vmatprep.subr.bf16.mxu0 0
        %2635 = vmatpush2.bf16.msra.mxu0 0
        %2636 = vmatprep.subr.bf16.mxu0 0
        %2637 = vmatpush2.bf16.msra.mxu0 0
        %2638 = vmatprep.subr.bf16.mxu0 0
        %2639 = vmatpush2.bf16.msra.mxu0 0
        %2640 = vmatprep.subr.bf16.mxu0 0
        %2641 = vmatpush2.bf16.msra.mxu0 0
        %2642 = vmatprep.subr.bf16.mxu0 0
        %2643 = vmatpush2.bf16.msra.mxu0 0
        %2644 = vmatprep.subr.bf16.mxu0 0
        %2645 = vmatpush2.bf16.msra.mxu0 0
        %2646 = vmatprep.subr.bf16.mxu0 0
        %2647 = vmatpush2.bf16.msra.mxu0 0
        %2648 = vmatprep.mubr.bf16.mxu0 0
        %2649 = vmatmul.mubr.bf16.gmra.mxu0 %v2356
        %v2650 = vpop.f32.mrf.mxu0
        %v2651 = vadd.f32 %v2166, %v2650
        %v2652 = vpop.f32.mrf.mxu0
        %v2653 = vadd.f32 %v2170, %v2652
        %v2654 = vpop.f32.mrf.mxu0
        %v2655 = vadd.f32 %v2166, %v2654
        %v2656 = vpop.f32.mrf.mxu0
        %v2657 = vadd.f32 %v2170, %v2656
        %2658 = vdwg.mxu0
        %2659 = vmatprep.subr.bf16.mxu0 0
        %2660 = vmatpush1.bf16.msra.mxu0 0
        %2661 = vmatprep.subr.bf16.mxu0 0
        %2662 = vmatpush1.bf16.msra.mxu0 0
        %2663 = vmatprep.subr.bf16.mxu0 0
        %2664 = vmatpush1.bf16.msra.mxu0 0
        %2665 = vmatprep.subr.bf16.mxu0 0
        %2666 = vmatpush1.bf16.msra.mxu0 0
        %2667 = vmatprep.subr.bf16.mxu0 0
        %2668 = vmatpush1.bf16.msra.mxu0 0
        %2669 = vmatprep.subr.bf16.mxu0 0
        %2670 = vmatpush1.bf16.msra.mxu0 0
        %2671 = vmatprep.subr.bf16.mxu0 %v2322
        %2672 = vmatpush1.bf16.msra.mxu0 %v2321
        %2673 = vmatprep.subr.bf16.mxu0 %v2306
        %2674 = vmatpush1.bf16.msra.mxu0 %v2305
        %2675 = vmatprep.subr.bf16.mxu0 0
        %2676 = vmatpush2.bf16.msra.mxu0 0
        %2677 = vmatprep.subr.bf16.mxu0 0
        %2678 = vmatpush2.bf16.msra.mxu0 0
        %2679 = vmatprep.subr.bf16.mxu0 0
        %2680 = vmatpush2.bf16.msra.mxu0 0
        %2681 = vmatprep.subr.bf16.mxu0 0
        %2682 = vmatpush2.bf16.msra.mxu0 0
        %2683 = vmatprep.subr.bf16.mxu0 0
        %2684 = vmatpush2.bf16.msra.mxu0 0
        %2685 = vmatprep.subr.bf16.mxu0 0
        %2686 = vmatpush2.bf16.msra.mxu0 0
        %2687 = vmatprep.subr.bf16.mxu0 0
        %2688 = vmatpush2.bf16.msra.mxu0 0
        %2689 = vmatprep.subr.bf16.mxu0 0
        %2690 = vmatpush2.bf16.msra.mxu0 0
        %2691 = vmatprep.mubr.bf16.mxu0 0
        %2692 = vmatmul.mubr.bf16.gmra.mxu0 %v2356
        %v2693 = vpop.f32.mrf.mxu0
        %v2694 = vadd.f32 %v2174, %v2693
        %v2695 = vpop.f32.mrf.mxu0
        %v2696 = vadd.f32 %v2178, %v2695
        %v2697 = vpop.f32.mrf.mxu0
        %v2698 = vadd.f32 %v2174, %v2697
        %v2699 = vpop.f32.mrf.mxu0
        %v2700 = vadd.f32 %v2178, %v2699
        %2701 = vdwg.mxu0
        %v2702 = vmax.f32 %v2393, 0.0
        %v2703 = vmax.f32 %v2395, 0.0
        %v2704 = vmax.f32 %v2436, 0.0
        %v2705 = vmax.f32 %v2438, 0.0
        %v2706 = vmax.f32 %v2479, 0.0
        %v2707 = vmax.f32 %v2481, 0.0
        %v2708 = vmax.f32 %v2522, 0.0
        %v2709 = vmax.f32 %v2524, 0.0
        %v2710 = vmax.f32 %v2565, 0.0
        %v2711 = vmax.f32 %v2567, 0.0
        %v2712 = vmax.f32 %v2608, 0.0
        %v2713 = vmax.f32 %v2610, 0.0
        %v2714 = vmax.f32 %v2651, 0.0
        %v2715 = vmax.f32 %v2653, 0.0
        %v2716 = vmax.f32 %v2694, 0.0
        %v2717 = vmax.f32 %v2696, 0.0
        %v2718 = vmax.f32 %v2397, 0.0
        %v2719 = vmax.f32 %v2399, 0.0
        %v2720 = vmax.f32 %v2440, 0.0
        %v2721 = vmax.f32 %v2442, 0.0
        %v2722 = vmax.f32 %v2483, 0.0
        %v2723 = vmax.f32 %v2485, 0.0
        %v2724 = vmax.f32 %v2526, 0.0
        %v2725 = vmax.f32 %v2528, 0.0
        %v2726 = vmax.f32 %v2569, 0.0
        %v2727 = vmax.f32 %v2571, 0.0
        %v2728 = vmax.f32 %v2612, 0.0
        %v2729 = vmax.f32 %v2614, 0.0
        %v2730 = vmax.f32 %v2655, 0.0
        %v2731 = vmax.f32 %v2657, 0.0
        %v2732 = vmax.f32 %v2698, 0.0
        %v2733 = vmax.f32 %v2700, 0.0
        %v2734 = vpack.c.bf16 %v2718, %v2702
        %v2735 = vpack.c.bf16 %v2719, %v2703
        %v2736 = vpack.c.bf16 %v2720, %v2704
        %v2737 = vpack.c.bf16 %v2721, %v2705
        %v2738 = vpack.c.bf16 %v2722, %v2706
        %v2739 = vpack.c.bf16 %v2723, %v2707
        %v2740 = vpack.c.bf16 %v2724, %v2708
        %v2741 = vpack.c.bf16 %v2725, %v2709
        %v2742 = vpack.c.bf16 %v2726, %v2710
        %v2743 = vpack.c.bf16 %v2727, %v2711
        %v2744 = vpack.c.bf16 %v2728, %v2712
        %v2745 = vpack.c.bf16 %v2729, %v2713
        %v2746 = vpack.c.bf16 %v2730, %v2714
        %v2747 = vpack.c.bf16 %v2731, %v2715
        %v2748 = vpack.c.bf16 %v2732, %v2716
        %v2749 = vpack.c.bf16 %v2733, %v2717
        %v2750 = vld [vmem:[%s506] sm:$0xf]
        %v2751 = vld [vmem:[%s506 + $0x4] sm:$0xf]
        %v2752 = vld [vmem:[%s506 + $0x8] sm:$0xf]
        %v2753 = vld [vmem:[%s506 + $0xc] sm:$0xf]
        %v2754 = vld [vmem:[%s506 + $0x10] sm:$0xf]
        %v2755 = vld [vmem:[%s506 + $0x14] sm:$0xf]
        %v2756 = vld [vmem:[%s506 + $0x18] sm:$0xf]
        %v2757 = vld [vmem:[%s506 + $0x1c] sm:$0xf]
        %v2758 = vld [vmem:[%s506 + $0x20] sm:$0xf]
        %v2759 = vld [vmem:[%s506 + $0x24] sm:$0xf]
        %v2760 = vld [vmem:[%s506 + $0x28] sm:$0xf]
        %v2761 = vld [vmem:[%s506 + $0x2c] sm:$0xf]
        %v2762 = vld [vmem:[%s506 + $0x30] sm:$0xf]
        %v2763 = vld [vmem:[%s506 + $0x34] sm:$0xf]
        %v2764 = vld [vmem:[%s506 + $0x38] sm:$0xf]
        %v2765 = vld [vmem:[%s506 + $0x3c] sm:$0xf]
        %v2766 = vld [vmem:[%s506 + $0x40] sm:$0xf]
        %v2767 = vld [vmem:[%s506 + $0x44] sm:$0xf]
        %v2768 = vld [vmem:[%s506 + $0x48] sm:$0xf]
        %v2769 = vld [vmem:[%s506 + $0x4c] sm:$0xf]
        %v2770 = vld [vmem:[%s506 + $0x50] sm:$0xf]
        %v2771 = vld [vmem:[%s506 + $0x54] sm:$0xf]
        %v2772 = vld [vmem:[%s506 + $0x58] sm:$0xf]
        %v2773 = vld [vmem:[%s506 + $0x5c] sm:$0xf]
        %v2774 = vld [vmem:[%s506 + $0x60] sm:$0xf]
        %v2775 = vld [vmem:[%s506 + $0x64] sm:$0xf]
        %v2776 = vld [vmem:[%s506 + $0x68] sm:$0xf]
        %v2777 = vld [vmem:[%s506 + $0x6c] sm:$0xf]
        %v2778 = vld [vmem:[%s506 + $0x70] sm:$0xf]
        %v2779 = vld [vmem:[%s506 + $0x74] sm:$0xf]
        %v2780 = vld [vmem:[%s506 + $0x78] sm:$0xf]
        %v2781 = vld [vmem:[%s506 + $0x7c] sm:$0xf]
        %v2782 = vld [vmem:[%s506 + $0x80] sm:$0xf]
        %v2783 = vld [vmem:[%s506 + $0x84] sm:$0xf]
        %v2784 = vld [vmem:[%s506 + $0x88] sm:$0xf]
        %v2785 = vld [vmem:[%s506 + $0x8c] sm:$0xf]
        %v2786 = vld [vmem:[%s506 + $0x90] sm:$0xf]
        %v2787 = vld [vmem:[%s506 + $0x94] sm:$0xf]
        %v2788 = vld [vmem:[%s506 + $0x98] sm:$0xf]
        %v2789 = vld [vmem:[%s506 + $0x9c] sm:$0xf]
        %v2790 = vld [vmem:[%s506 + $0xa0] sm:$0xf]
        %v2791 = vld [vmem:[%s506 + $0xa4] sm:$0xf]
        %v2792 = vld [vmem:[%s506 + $0xa8] sm:$0xf]
        %v2793 = vld [vmem:[%s506 + $0xac] sm:$0xf]
        %v2794 = vld [vmem:[%s506 + $0xb0] sm:$0xf]
        %v2795 = vld [vmem:[%s506 + $0xb4] sm:$0xf]
        %v2796 = vld [vmem:[%s506 + $0xb8] sm:$0xf]
        %v2797 = vld [vmem:[%s506 + $0xbc] sm:$0xf]
        %v2798 = vld [vmem:[%s506 + $0xc0] sm:$0xf]
        %v2799 = vld [vmem:[%s506 + $0xc4] sm:$0xf]
        %v2800 = vld [vmem:[%s506 + $0xc8] sm:$0xf]
        %v2801 = vld [vmem:[%s506 + $0xcc] sm:$0xf]
        %v2802 = vld [vmem:[%s506 + $0xd0] sm:$0xf]
        %v2803 = vld [vmem:[%s506 + $0xd4] sm:$0xf]
        %v2804 = vld [vmem:[%s506 + $0xd8] sm:$0xf]
        %v2805 = vld [vmem:[%s506 + $0xdc] sm:$0xf]
        %v2806 = vld [vmem:[%s506 + $0xe0] sm:$0xf]
        %v2807 = vld [vmem:[%s506 + $0xe4] sm:$0xf]
        %v2808 = vld [vmem:[%s506 + $0xe8] sm:$0xf]
        %v2809 = vld [vmem:[%s506 + $0xec] sm:$0xf]
        %v2810 = vld [vmem:[%s506 + $0xf0] sm:$0xf]
        %v2811 = vld [vmem:[%s506 + $0xf4] sm:$0xf]
        %v2812 = vld [vmem:[%s506 + $0xf8] sm:$0xf]
        %v2813 = vld [vmem:[%s506 + $0xfc] sm:$0xf]
        %v2814 = vld [vmem:[%s506 + $0x100] sm:$0xf]
        %v2815 = vld [vmem:[%s506 + $0x104] sm:$0xf]
        %v2816 = vld [vmem:[%s506 + $0x108] sm:$0xf]
        %v2817 = vld [vmem:[%s506 + $0x10c] sm:$0xf]
        %v2818 = vld [vmem:[%s506 + $0x110] sm:$0xf]
        %v2819 = vld [vmem:[%s506 + $0x114] sm:$0xf]
        %v2820 = vld [vmem:[%s506 + $0x118] sm:$0xf]
        %v2821 = vld [vmem:[%s506 + $0x11c] sm:$0xf]
        %v2822 = vld [vmem:[%s506 + $0x120] sm:$0xf]
        %v2823 = vld [vmem:[%s506 + $0x124] sm:$0xf]
        %v2824 = vld [vmem:[%s506 + $0x128] sm:$0xf]
        %v2825 = vld [vmem:[%s506 + $0x12c] sm:$0xf]
        %v2826 = vld [vmem:[%s506 + $0x130] sm:$0xf]
        %v2827 = vld [vmem:[%s506 + $0x134] sm:$0xf]
        %v2828 = vld [vmem:[%s506 + $0x138] sm:$0xf]
        %v2829 = vld [vmem:[%s506 + $0x13c] sm:$0xf]
        %v2830 = vld [vmem:[%s506 + $0x140] sm:$0xf]
        %v2831 = vld [vmem:[%s506 + $0x144] sm:$0xf]
        %v2832 = vld [vmem:[%s506 + $0x148] sm:$0xf]
        %v2833 = vld [vmem:[%s506 + $0x14c] sm:$0xf]
        %v2834 = vld [vmem:[%s506 + $0x150] sm:$0xf]
        %v2835 = vld [vmem:[%s506 + $0x154] sm:$0xf]
        %v2836 = vld [vmem:[%s506 + $0x158] sm:$0xf]
        %v2837 = vld [vmem:[%s506 + $0x15c] sm:$0xf]
        %v2838 = vld [vmem:[%s506 + $0x160] sm:$0xf]
        %v2839 = vld [vmem:[%s506 + $0x164] sm:$0xf]
        %v2840 = vld [vmem:[%s506 + $0x168] sm:$0xf]
        %v2841 = vld [vmem:[%s506 + $0x16c] sm:$0xf]
        %v2842 = vld [vmem:[%s506 + $0x170] sm:$0xf]
        %v2843 = vld [vmem:[%s506 + $0x174] sm:$0xf]
        %v2844 = vld [vmem:[%s506 + $0x178] sm:$0xf]
        %v2845 = vld [vmem:[%s506 + $0x17c] sm:$0xf]
        %v2846 = vld [vmem:[%s506 + $0x180] sm:$0xf]
        %v2847 = vld [vmem:[%s506 + $0x184] sm:$0xf]
        %v2848 = vld [vmem:[%s506 + $0x188] sm:$0xf]
        %v2849 = vld [vmem:[%s506 + $0x18c] sm:$0xf]
        %v2850 = vld [vmem:[%s506 + $0x190] sm:$0xf]
        %v2851 = vld [vmem:[%s506 + $0x194] sm:$0xf]
        %v2852 = vld [vmem:[%s506 + $0x198] sm:$0xf]
        %v2853 = vld [vmem:[%s506 + $0x19c] sm:$0xf]
        %v2854 = vld [vmem:[%s506 + $0x1a0] sm:$0xf]
        %v2855 = vld [vmem:[%s506 + $0x1a4] sm:$0xf]
        %v2856 = vld [vmem:[%s506 + $0x1a8] sm:$0xf]
        %v2857 = vld [vmem:[%s506 + $0x1ac] sm:$0xf]
        %v2858 = vld [vmem:[%s506 + $0x1b0] sm:$0xf]
        %v2859 = vld [vmem:[%s506 + $0x1b4] sm:$0xf]
        %v2860 = vld [vmem:[%s506 + $0x1b8] sm:$0xf]
        %v2861 = vld [vmem:[%s506 + $0x1bc] sm:$0xf]
        %v2862 = vld [vmem:[%s506 + $0x1c0] sm:$0xf]
        %v2863 = vld [vmem:[%s506 + $0x1c4] sm:$0xf]
        %v2864 = vld [vmem:[%s506 + $0x1c8] sm:$0xf]
        %v2865 = vld [vmem:[%s506 + $0x1cc] sm:$0xf]
        %v2866 = vld [vmem:[%s506 + $0x1d0] sm:$0xf]
        %v2867 = vld [vmem:[%s506 + $0x1d4] sm:$0xf]
        %v2868 = vld [vmem:[%s506 + $0x1d8] sm:$0xf]
        %v2869 = vld [vmem:[%s506 + $0x1dc] sm:$0xf]
        %v2870 = vld [vmem:[%s506 + $0x1e0] sm:$0xf]
        %v2871 = vld [vmem:[%s506 + $0x1e4] sm:$0xf]
        %v2872 = vld [vmem:[%s506 + $0x1e8] sm:$0xf]
        %v2873 = vld [vmem:[%s506 + $0x1ec] sm:$0xf]
        %v2874 = vld [vmem:[%s506 + $0x1f0] sm:$0xf]
        %v2875 = vld [vmem:[%s506 + $0x1f4] sm:$0xf]
        %v2876 = vld [vmem:[%s506 + $0x1f8] sm:$0xf]
        %v2877 = vld [vmem:[%s506 + $0x1fc] sm:$0xf]
        %v2878 = vld [vmem:[%s506 + $0x200] sm:$0xf]
        %v2879 = vld [vmem:[%s506 + $0x204] sm:$0xf]
        %v2880 = vld [vmem:[%s506 + $0x208] sm:$0xf]
        %v2881 = vld [vmem:[%s506 + $0x20c] sm:$0xf]
        %v2882 = vld [vmem:[%s506 + $0x210] sm:$0xf]
        %v2883 = vld [vmem:[%s506 + $0x214] sm:$0xf]
        %v2884 = vld [vmem:[%s506 + $0x218] sm:$0xf]
        %v2885 = vld [vmem:[%s506 + $0x21c] sm:$0xf]
        %v2886 = vld [vmem:[%s506 + $0x220] sm:$0xf]
        %v2887 = vld [vmem:[%s506 + $0x224] sm:$0xf]
        %v2888 = vld [vmem:[%s506 + $0x228] sm:$0xf]
        %v2889 = vld [vmem:[%s506 + $0x22c] sm:$0xf]
        %v2890 = vld [vmem:[%s506 + $0x230] sm:$0xf]
        %v2891 = vld [vmem:[%s506 + $0x234] sm:$0xf]
        %v2892 = vld [vmem:[%s506 + $0x238] sm:$0xf]
        %v2893 = vld [vmem:[%s506 + $0x23c] sm:$0xf]
        %v2894 = vld [vmem:[%s506 + $0x240] sm:$0xf]
        %v2895 = vld [vmem:[%s506 + $0x244] sm:$0xf]
        %v2896 = vld [vmem:[%s506 + $0x248] sm:$0xf]
        %v2897 = vld [vmem:[%s506 + $0x24c] sm:$0xf]
        %v2898 = vld [vmem:[%s506 + $0x250] sm:$0xf]
        %v2899 = vld [vmem:[%s506 + $0x254] sm:$0xf]
        %v2900 = vld [vmem:[%s506 + $0x258] sm:$0xf]
        %v2901 = vld [vmem:[%s506 + $0x25c] sm:$0xf]
        %v2902 = vld [vmem:[%s506 + $0x260] sm:$0xf]
        %v2903 = vld [vmem:[%s506 + $0x264] sm:$0xf]
        %v2904 = vld [vmem:[%s506 + $0x268] sm:$0xf]
        %v2905 = vld [vmem:[%s506 + $0x26c] sm:$0xf]
        %v2906 = vld [vmem:[%s506 + $0x270] sm:$0xf]
        %v2907 = vld [vmem:[%s506 + $0x274] sm:$0xf]
        %v2908 = vld [vmem:[%s506 + $0x278] sm:$0xf]
        %v2909 = vld [vmem:[%s506 + $0x27c] sm:$0xf]
        %v2910 = vld [vmem:[%s506 + $0x280] sm:$0xf]
        %v2911 = vld [vmem:[%s506 + $0x284] sm:$0xf]
        %v2912 = vld [vmem:[%s506 + $0x288] sm:$0xf]
        %v2913 = vld [vmem:[%s506 + $0x28c] sm:$0xf]
        %v2914 = vld [vmem:[%s506 + $0x290] sm:$0xf]
        %v2915 = vld [vmem:[%s506 + $0x294] sm:$0xf]
        %v2916 = vld [vmem:[%s506 + $0x298] sm:$0xf]
        %v2917 = vld [vmem:[%s506 + $0x29c] sm:$0xf]
        %v2918 = vld [vmem:[%s506 + $0x2a0] sm:$0xf]
        %v2919 = vld [vmem:[%s506 + $0x2a4] sm:$0xf]
        %v2920 = vld [vmem:[%s506 + $0x2a8] sm:$0xf]
        %v2921 = vld [vmem:[%s506 + $0x2ac] sm:$0xf]
        %v2922 = vld [vmem:[%s506 + $0x2b0] sm:$0xf]
        %v2923 = vld [vmem:[%s506 + $0x2b4] sm:$0xf]
        %v2924 = vld [vmem:[%s506 + $0x2b8] sm:$0xf]
        %v2925 = vld [vmem:[%s506 + $0x2bc] sm:$0xf]
        %v2926 = vld [vmem:[%s506 + $0x2c0] sm:$0xf]
        %v2927 = vld [vmem:[%s506 + $0x2c4] sm:$0xf]
        %v2928 = vld [vmem:[%s506 + $0x2c8] sm:$0xf]
        %v2929 = vld [vmem:[%s506 + $0x2cc] sm:$0xf]
        %v2930 = vld [vmem:[%s506 + $0x2d0] sm:$0xf]
        %v2931 = vld [vmem:[%s506 + $0x2d4] sm:$0xf]
        %v2932 = vld [vmem:[%s506 + $0x2d8] sm:$0xf]
        %v2933 = vld [vmem:[%s506 + $0x2dc] sm:$0xf]
        %v2934 = vld [vmem:[%s506 + $0x2e0] sm:$0xf]
        %v2935 = vld [vmem:[%s506 + $0x2e4] sm:$0xf]
        %v2936 = vld [vmem:[%s506 + $0x2e8] sm:$0xf]
        %v2937 = vld [vmem:[%s506 + $0x2ec] sm:$0xf]
        %v2938 = vld [vmem:[%s506 + $0x2f0] sm:$0xf]
        %v2939 = vld [vmem:[%s506 + $0x2f4] sm:$0xf]
        %v2940 = vld [vmem:[%s506 + $0x2f8] sm:$0xf]
        %v2941 = vld [vmem:[%s506 + $0x2fc] sm:$0xf]
        %v2942 = vld [vmem:[%s506 + $0x300] sm:$0xf]
        %v2943 = vld [vmem:[%s506 + $0x304] sm:$0xf]
        %v2944 = vld [vmem:[%s506 + $0x308] sm:$0xf]
        %v2945 = vld [vmem:[%s506 + $0x30c] sm:$0xf]
        %v2946 = vld [vmem:[%s506 + $0x310] sm:$0xf]
        %v2947 = vld [vmem:[%s506 + $0x314] sm:$0xf]
        %v2948 = vld [vmem:[%s506 + $0x318] sm:$0xf]
        %v2949 = vld [vmem:[%s506 + $0x31c] sm:$0xf]
        %v2950 = vld [vmem:[%s506 + $0x320] sm:$0xf]
        %v2951 = vld [vmem:[%s506 + $0x324] sm:$0xf]
        %v2952 = vld [vmem:[%s506 + $0x328] sm:$0xf]
        %v2953 = vld [vmem:[%s506 + $0x32c] sm:$0xf]
        %v2954 = vld [vmem:[%s506 + $0x330] sm:$0xf]
        %v2955 = vld [vmem:[%s506 + $0x334] sm:$0xf]
        %v2956 = vld [vmem:[%s506 + $0x338] sm:$0xf]
        %v2957 = vld [vmem:[%s506 + $0x33c] sm:$0xf]
        %v2958 = vld [vmem:[%s506 + $0x340] sm:$0xf]
        %v2959 = vld [vmem:[%s506 + $0x344] sm:$0xf]
        %v2960 = vld [vmem:[%s506 + $0x348] sm:$0xf]
        %v2961 = vld [vmem:[%s506 + $0x34c] sm:$0xf]
        %v2962 = vld [vmem:[%s506 + $0x350] sm:$0xf]
        %v2963 = vld [vmem:[%s506 + $0x354] sm:$0xf]
        %v2964 = vld [vmem:[%s506 + $0x358] sm:$0xf]
        %v2965 = vld [vmem:[%s506 + $0x35c] sm:$0xf]
        %v2966 = vld [vmem:[%s506 + $0x360] sm:$0xf]
        %v2967 = vld [vmem:[%s506 + $0x364] sm:$0xf]
        %v2968 = vld [vmem:[%s506 + $0x368] sm:$0xf]
        %v2969 = vld [vmem:[%s506 + $0x36c] sm:$0xf]
        %v2970 = vld [vmem:[%s506 + $0x370] sm:$0xf]
        %v2971 = vld [vmem:[%s506 + $0x374] sm:$0xf]
        %v2972 = vld [vmem:[%s506 + $0x378] sm:$0xf]
        %v2973 = vld [vmem:[%s506 + $0x37c] sm:$0xf]
        %v2974 = vld [vmem:[%s506 + $0x380] sm:$0xf]
        %v2975 = vld [vmem:[%s506 + $0x384] sm:$0xf]
        %v2976 = vld [vmem:[%s506 + $0x388] sm:$0xf]
        %v2977 = vld [vmem:[%s506 + $0x38c] sm:$0xf]
        %v2978 = vld [vmem:[%s506 + $0x390] sm:$0xf]
        %v2979 = vld [vmem:[%s506 + $0x394] sm:$0xf]
        %v2980 = vld [vmem:[%s506 + $0x398] sm:$0xf]
        %v2981 = vld [vmem:[%s506 + $0x39c] sm:$0xf]
        %v2982 = vld [vmem:[%s506 + $0x3a0] sm:$0xf]
        %v2983 = vld [vmem:[%s506 + $0x3a4] sm:$0xf]
        %v2984 = vld [vmem:[%s506 + $0x3a8] sm:$0xf]
        %v2985 = vld [vmem:[%s506 + $0x3ac] sm:$0xf]
        %v2986 = vld [vmem:[%s506 + $0x3b0] sm:$0xf]
        %v2987 = vld [vmem:[%s506 + $0x3b4] sm:$0xf]
        %v2988 = vld [vmem:[%s506 + $0x3b8] sm:$0xf]
        %v2989 = vld [vmem:[%s506 + $0x3bc] sm:$0xf]
        %v2990 = vld [vmem:[%s506 + $0x3c0] sm:$0xf]
        %v2991 = vld [vmem:[%s506 + $0x3c4] sm:$0xf]
        %v2992 = vld [vmem:[%s506 + $0x3c8] sm:$0xf]
        %v2993 = vld [vmem:[%s506 + $0x3cc] sm:$0xf]
        %v2994 = vld [vmem:[%s506 + $0x3d0] sm:$0xf]
        %v2995 = vld [vmem:[%s506 + $0x3d4] sm:$0xf]
        %v2996 = vld [vmem:[%s506 + $0x3d8] sm:$0xf]
        %v2997 = vld [vmem:[%s506 + $0x3dc] sm:$0xf]
        %v2998 = vld [vmem:[%s506 + $0x3e0] sm:$0xf]
        %v2999 = vld [vmem:[%s506 + $0x3e4] sm:$0xf]
        %v3000 = vld [vmem:[%s506 + $0x3e8] sm:$0xf]
        %v3001 = vld [vmem:[%s506 + $0x3ec] sm:$0xf]
        %v3002 = vld [vmem:[%s506 + $0x3f0] sm:$0xf]
        %v3003 = vld [vmem:[%s506 + $0x3f4] sm:$0xf]
        %v3004 = vld [vmem:[%s506 + $0x3f8] sm:$0xf]
        %v3005 = vld [vmem:[%s506 + $0x3fc] sm:$0xf]
        %v3006 = vld [vmem:[%s492 + $0x1] sm:$0x1]
        %v3007 = vlaneseq
        %v3008 = vshrl.u32 %v3007, 7
        %v3009 = vsub.s32 0, %v3008
        %v3010 = vrot.slane %v3006, %v3009
        %v3267 = vunpack.c.l.b16 %v2750
        %v3268 = vunpack.c.l.b16 %v2751
        %v3269 = vunpack.c.l.b16 %v2752
        %v3270 = vunpack.c.l.b16 %v2753
        %v3271 = vunpack.c.l.b16 %v2754
        %v3272 = vunpack.c.l.b16 %v2755
        %v3273 = vunpack.c.l.b16 %v2756
        %v3274 = vunpack.c.l.b16 %v2757
        %v3275 = vunpack.c.l.b16 %v2758
        %v3276 = vunpack.c.l.b16 %v2759
        %v3277 = vunpack.c.l.b16 %v2760
        %v3278 = vunpack.c.l.b16 %v2761
        %v3279 = vunpack.c.l.b16 %v2762
        %v3280 = vunpack.c.l.b16 %v2763
        %v3281 = vunpack.c.l.b16 %v2764
        %v3282 = vunpack.c.l.b16 %v2765
        %v3283 = vunpack.c.l.b16 %v2766
        %v3284 = vunpack.c.l.b16 %v2767
        %v3285 = vunpack.c.l.b16 %v2768
        %v3286 = vunpack.c.l.b16 %v2769
        %v3287 = vunpack.c.l.b16 %v2770
        %v3288 = vunpack.c.l.b16 %v2771
        %v3289 = vunpack.c.l.b16 %v2772
        %v3290 = vunpack.c.l.b16 %v2773
        %v3291 = vunpack.c.l.b16 %v2774
        %v3292 = vunpack.c.l.b16 %v2775
        %v3293 = vunpack.c.l.b16 %v2776
        %v3294 = vunpack.c.l.b16 %v2777
        %v3295 = vunpack.c.l.b16 %v2778
        %v3296 = vunpack.c.l.b16 %v2779
        %v3297 = vunpack.c.l.b16 %v2780
        %v3298 = vunpack.c.l.b16 %v2781
        %v3299 = vunpack.c.l.b16 %v2782
        %v3300 = vunpack.c.l.b16 %v2783
        %v3301 = vunpack.c.l.b16 %v2784
        %v3302 = vunpack.c.l.b16 %v2785
        %v3303 = vunpack.c.l.b16 %v2786
        %v3304 = vunpack.c.l.b16 %v2787
        %v3305 = vunpack.c.l.b16 %v2788
        %v3306 = vunpack.c.l.b16 %v2789
        %v3307 = vunpack.c.l.b16 %v2790
        %v3308 = vunpack.c.l.b16 %v2791
        %v3309 = vunpack.c.l.b16 %v2792
        %v3310 = vunpack.c.l.b16 %v2793
        %v3311 = vunpack.c.l.b16 %v2794
        %v3312 = vunpack.c.l.b16 %v2795
        %v3313 = vunpack.c.l.b16 %v2796
        %v3314 = vunpack.c.l.b16 %v2797
        %v3315 = vunpack.c.l.b16 %v2798
        %v3316 = vunpack.c.l.b16 %v2799
        %v3317 = vunpack.c.l.b16 %v2800
        %v3318 = vunpack.c.l.b16 %v2801
        %v3319 = vunpack.c.l.b16 %v2802
        %v3320 = vunpack.c.l.b16 %v2803
        %v3321 = vunpack.c.l.b16 %v2804
        %v3322 = vunpack.c.l.b16 %v2805
        %v3323 = vunpack.c.l.b16 %v2806
        %v3324 = vunpack.c.l.b16 %v2807
        %v3325 = vunpack.c.l.b16 %v2808
        %v3326 = vunpack.c.l.b16 %v2809
        %v3327 = vunpack.c.l.b16 %v2810
        %v3328 = vunpack.c.l.b16 %v2811
        %v3329 = vunpack.c.l.b16 %v2812
        %v3330 = vunpack.c.l.b16 %v2813
        %v3331 = vunpack.c.l.b16 %v2814
        %v3332 = vunpack.c.l.b16 %v2815
        %v3333 = vunpack.c.l.b16 %v2816
        %v3334 = vunpack.c.l.b16 %v2817
        %v3335 = vunpack.c.l.b16 %v2818
        %v3336 = vunpack.c.l.b16 %v2819
        %v3337 = vunpack.c.l.b16 %v2820
        %v3338 = vunpack.c.l.b16 %v2821
        %v3339 = vunpack.c.l.b16 %v2822
        %v3340 = vunpack.c.l.b16 %v2823
        %v3341 = vunpack.c.l.b16 %v2824
        %v3342 = vunpack.c.l.b16 %v2825
        %v3343 = vunpack.c.l.b16 %v2826
        %v3344 = vunpack.c.l.b16 %v2827
        %v3345 = vunpack.c.l.b16 %v2828
        %v3346 = vunpack.c.l.b16 %v2829
        %v3347 = vunpack.c.l.b16 %v2830
        %v3348 = vunpack.c.l.b16 %v2831
        %v3349 = vunpack.c.l.b16 %v2832
        %v3350 = vunpack.c.l.b16 %v2833
        %v3351 = vunpack.c.l.b16 %v2834
        %v3352 = vunpack.c.l.b16 %v2835
        %v3353 = vunpack.c.l.b16 %v2836
        %v3354 = vunpack.c.l.b16 %v2837
        %v3355 = vunpack.c.l.b16 %v2838
        %v3356 = vunpack.c.l.b16 %v2839
        %v3357 = vunpack.c.l.b16 %v2840
        %v3358 = vunpack.c.l.b16 %v2841
        %v3359 = vunpack.c.l.b16 %v2842
        %v3360 = vunpack.c.l.b16 %v2843
        %v3361 = vunpack.c.l.b16 %v2844
        %v3362 = vunpack.c.l.b16 %v2845
        %v3363 = vunpack.c.l.b16 %v2846
        %v3364 = vunpack.c.l.b16 %v2847
        %v3365 = vunpack.c.l.b16 %v2848
        %v3366 = vunpack.c.l.b16 %v2849
        %v3367 = vunpack.c.l.b16 %v2850
        %v3368 = vunpack.c.l.b16 %v2851
        %v3369 = vunpack.c.l.b16 %v2852
        %v3370 = vunpack.c.l.b16 %v2853
        %v3371 = vunpack.c.l.b16 %v2854
        %v3372 = vunpack.c.l.b16 %v2855
        %v3373 = vunpack.c.l.b16 %v2856
        %v3374 = vunpack.c.l.b16 %v2857
        %v3375 = vunpack.c.l.b16 %v2858
        %v3376 = vunpack.c.l.b16 %v2859
        %v3377 = vunpack.c.l.b16 %v2860
        %v3378 = vunpack.c.l.b16 %v2861
        %v3379 = vunpack.c.l.b16 %v2862
        %v3380 = vunpack.c.l.b16 %v2863
        %v3381 = vunpack.c.l.b16 %v2864
        %v3382 = vunpack.c.l.b16 %v2865
        %v3383 = vunpack.c.l.b16 %v2866
        %v3384 = vunpack.c.l.b16 %v2867
        %v3385 = vunpack.c.l.b16 %v2868
        %v3386 = vunpack.c.l.b16 %v2869
        %v3387 = vunpack.c.l.b16 %v2870
        %v3388 = vunpack.c.l.b16 %v2871
        %v3389 = vunpack.c.l.b16 %v2872
        %v3390 = vunpack.c.l.b16 %v2873
        %v3391 = vunpack.c.l.b16 %v2874
        %v3392 = vunpack.c.l.b16 %v2875
        %v3393 = vunpack.c.l.b16 %v2876
        %v3394 = vunpack.c.l.b16 %v2877
        %v3395 = vunpack.c.l.b16 %v2878
        %v3396 = vunpack.c.l.b16 %v2879
        %v3397 = vunpack.c.l.b16 %v2880
        %v3398 = vunpack.c.l.b16 %v2881
        %v3399 = vunpack.c.l.b16 %v2882
        %v3400 = vunpack.c.l.b16 %v2883
        %v3401 = vunpack.c.l.b16 %v2884
        %v3402 = vunpack.c.l.b16 %v2885
        %v3403 = vunpack.c.l.b16 %v2886
        %v3404 = vunpack.c.l.b16 %v2887
        %v3405 = vunpack.c.l.b16 %v2888
        %v3406 = vunpack.c.l.b16 %v2889
        %v3407 = vunpack.c.l.b16 %v2890
        %v3408 = vunpack.c.l.b16 %v2891
        %v3409 = vunpack.c.l.b16 %v2892
        %v3410 = vunpack.c.l.b16 %v2893
        %v3411 = vunpack.c.l.b16 %v2894
        %v3412 = vunpack.c.l.b16 %v2895
        %v3413 = vunpack.c.l.b16 %v2896
        %v3414 = vunpack.c.l.b16 %v2897
        %v3415 = vunpack.c.l.b16 %v2898
        %v3416 = vunpack.c.l.b16 %v2899
        %v3417 = vunpack.c.l.b16 %v2900
        %v3418 = vunpack.c.l.b16 %v2901
        %v3419 = vunpack.c.l.b16 %v2902
        %v3420 = vunpack.c.l.b16 %v2903
        %v3421 = vunpack.c.l.b16 %v2904
        %v3422 = vunpack.c.l.b16 %v2905
        %v3423 = vunpack.c.l.b16 %v2906
        %v3424 = vunpack.c.l.b16 %v2907
        %v3425 = vunpack.c.l.b16 %v2908
        %v3426 = vunpack.c.l.b16 %v2909
        %v3427 = vunpack.c.l.b16 %v2910
        %v3428 = vunpack.c.l.b16 %v2911
        %v3429 = vunpack.c.l.b16 %v2912
        %v3430 = vunpack.c.l.b16 %v2913
        %v3431 = vunpack.c.l.b16 %v2914
        %v3432 = vunpack.c.l.b16 %v2915
        %v3433 = vunpack.c.l.b16 %v2916
        %v3434 = vunpack.c.l.b16 %v2917
        %v3435 = vunpack.c.l.b16 %v2918
        %v3436 = vunpack.c.l.b16 %v2919
        %v3437 = vunpack.c.l.b16 %v2920
        %v3438 = vunpack.c.l.b16 %v2921
        %v3439 = vunpack.c.l.b16 %v2922
        %v3440 = vunpack.c.l.b16 %v2923
        %v3441 = vunpack.c.l.b16 %v2924
        %v3442 = vunpack.c.l.b16 %v2925
        %v3443 = vunpack.c.l.b16 %v2926
        %v3444 = vunpack.c.l.b16 %v2927
        %v3445 = vunpack.c.l.b16 %v2928
        %v3446 = vunpack.c.l.b16 %v2929
        %v3447 = vunpack.c.l.b16 %v2930
        %v3448 = vunpack.c.l.b16 %v2931
        %v3449 = vunpack.c.l.b16 %v2932
        %v3450 = vunpack.c.l.b16 %v2933
        %v3451 = vunpack.c.l.b16 %v2934
        %v3452 = vunpack.c.l.b16 %v2935
        %v3453 = vunpack.c.l.b16 %v2936
        %v3454 = vunpack.c.l.b16 %v2937
        %v3455 = vunpack.c.l.b16 %v2938
        %v3456 = vunpack.c.l.b16 %v2939
        %v3457 = vunpack.c.l.b16 %v2940
        %v3458 = vunpack.c.l.b16 %v2941
        %v3459 = vunpack.c.l.b16 %v2942
        %v3460 = vunpack.c.l.b16 %v2943
        %v3461 = vunpack.c.l.b16 %v2944
        %v3462 = vunpack.c.l.b16 %v2945
        %v3463 = vunpack.c.l.b16 %v2946
        %v3464 = vunpack.c.l.b16 %v2947
        %v3465 = vunpack.c.l.b16 %v2948
        %v3466 = vunpack.c.l.b16 %v2949
        %v3467 = vunpack.c.l.b16 %v2950
        %v3468 = vunpack.c.l.b16 %v2951
        %v3469 = vunpack.c.l.b16 %v2952
        %v3470 = vunpack.c.l.b16 %v2953
        %v3471 = vunpack.c.l.b16 %v2954
        %v3472 = vunpack.c.l.b16 %v2955
        %v3473 = vunpack.c.l.b16 %v2956
        %v3474 = vunpack.c.l.b16 %v2957
        %v3475 = vunpack.c.l.b16 %v2958
        %v3476 = vunpack.c.l.b16 %v2959
        %v3477 = vunpack.c.l.b16 %v2960
        %v3478 = vunpack.c.l.b16 %v2961
        %v3479 = vunpack.c.l.b16 %v2962
        %v3480 = vunpack.c.l.b16 %v2963
        %v3481 = vunpack.c.l.b16 %v2964
        %v3482 = vunpack.c.l.b16 %v2965
        %v3483 = vunpack.c.l.b16 %v2966
        %v3484 = vunpack.c.l.b16 %v2967
        %v3485 = vunpack.c.l.b16 %v2968
        %v3486 = vunpack.c.l.b16 %v2969
        %v3487 = vunpack.c.l.b16 %v2970
        %v3488 = vunpack.c.l.b16 %v2971
        %v3489 = vunpack.c.l.b16 %v2972
        %v3490 = vunpack.c.l.b16 %v2973
        %v3491 = vunpack.c.l.b16 %v2974
        %v3492 = vunpack.c.l.b16 %v2975
        %v3493 = vunpack.c.l.b16 %v2976
        %v3494 = vunpack.c.l.b16 %v2977
        %v3495 = vunpack.c.l.b16 %v2978
        %v3496 = vunpack.c.l.b16 %v2979
        %v3497 = vunpack.c.l.b16 %v2980
        %v3498 = vunpack.c.l.b16 %v2981
        %v3499 = vunpack.c.l.b16 %v2982
        %v3500 = vunpack.c.l.b16 %v2983
        %v3501 = vunpack.c.l.b16 %v2984
        %v3502 = vunpack.c.l.b16 %v2985
        %v3503 = vunpack.c.l.b16 %v2986
        %v3504 = vunpack.c.l.b16 %v2987
        %v3505 = vunpack.c.l.b16 %v2988
        %v3506 = vunpack.c.l.b16 %v2989
        %v3507 = vunpack.c.l.b16 %v2990
        %v3508 = vunpack.c.l.b16 %v2991
        %v3509 = vunpack.c.l.b16 %v2992
        %v3510 = vunpack.c.l.b16 %v2993
        %v3511 = vunpack.c.l.b16 %v2994
        %v3512 = vunpack.c.l.b16 %v2995
        %v3513 = vunpack.c.l.b16 %v2996
        %v3514 = vunpack.c.l.b16 %v2997
        %v3515 = vunpack.c.l.b16 %v2998
        %v3516 = vunpack.c.l.b16 %v2999
        %v3517 = vunpack.c.l.b16 %v3000
        %v3518 = vunpack.c.l.b16 %v3001
        %v3519 = vunpack.c.l.b16 %v3002
        %v3520 = vunpack.c.l.b16 %v3003
        %v3521 = vunpack.c.l.b16 %v3004
        %v3522 = vunpack.c.l.b16 %v3005
        %v3523 = vpack.c.b16 %v3268, %v3267
        %v3524 = vpack.c.b16 %v3270, %v3269
        %v3525 = vpack.c.b16 %v3272, %v3271
        %v3526 = vpack.c.b16 %v3274, %v3273
        %v3527 = vpack.c.b16 %v3276, %v3275
        %v3528 = vpack.c.b16 %v3278, %v3277
        %v3529 = vpack.c.b16 %v3280, %v3279
        %v3530 = vpack.c.b16 %v3282, %v3281
        %v3531 = vpack.c.b16 %v3284, %v3283
        %v3532 = vpack.c.b16 %v3286, %v3285
        %v3533 = vpack.c.b16 %v3288, %v3287
        %v3534 = vpack.c.b16 %v3290, %v3289
        %v3535 = vpack.c.b16 %v3292, %v3291
        %v3536 = vpack.c.b16 %v3294, %v3293
        %v3537 = vpack.c.b16 %v3296, %v3295
        %v3538 = vpack.c.b16 %v3298, %v3297
        %v3539 = vpack.c.b16 %v3300, %v3299
        %v3540 = vpack.c.b16 %v3302, %v3301
        %v3541 = vpack.c.b16 %v3304, %v3303
        %v3542 = vpack.c.b16 %v3306, %v3305
        %v3543 = vpack.c.b16 %v3308, %v3307
        %v3544 = vpack.c.b16 %v3310, %v3309
        %v3545 = vpack.c.b16 %v3312, %v3311
        %v3546 = vpack.c.b16 %v3314, %v3313
        %v3547 = vpack.c.b16 %v3316, %v3315
        %v3548 = vpack.c.b16 %v3318, %v3317
        %v3549 = vpack.c.b16 %v3320, %v3319
        %v3550 = vpack.c.b16 %v3322, %v3321
        %v3551 = vpack.c.b16 %v3324, %v3323
        %v3552 = vpack.c.b16 %v3326, %v3325
        %v3553 = vpack.c.b16 %v3328, %v3327
        %v3554 = vpack.c.b16 %v3330, %v3329
        %v3555 = vpack.c.b16 %v3332, %v3331
        %v3556 = vpack.c.b16 %v3334, %v3333
        %v3557 = vpack.c.b16 %v3336, %v3335
        %v3558 = vpack.c.b16 %v3338, %v3337
        %v3559 = vpack.c.b16 %v3340, %v3339
        %v3560 = vpack.c.b16 %v3342, %v3341
        %v3561 = vpack.c.b16 %v3344, %v3343
        %v3562 = vpack.c.b16 %v3346, %v3345
        %v3563 = vpack.c.b16 %v3348, %v3347
        %v3564 = vpack.c.b16 %v3350, %v3349
        %v3565 = vpack.c.b16 %v3352, %v3351
        %v3566 = vpack.c.b16 %v3354, %v3353
        %v3567 = vpack.c.b16 %v3356, %v3355
        %v3568 = vpack.c.b16 %v3358, %v3357
        %v3569 = vpack.c.b16 %v3360, %v3359
        %v3570 = vpack.c.b16 %v3362, %v3361
        %v3571 = vpack.c.b16 %v3364, %v3363
        %v3572 = vpack.c.b16 %v3366, %v3365
        %v3573 = vpack.c.b16 %v3368, %v3367
        %v3574 = vpack.c.b16 %v3370, %v3369
        %v3575 = vpack.c.b16 %v3372, %v3371
        %v3576 = vpack.c.b16 %v3374, %v3373
        %v3577 = vpack.c.b16 %v3376, %v3375
        %v3578 = vpack.c.b16 %v3378, %v3377
        %v3579 = vpack.c.b16 %v3380, %v3379
        %v3580 = vpack.c.b16 %v3382, %v3381
        %v3581 = vpack.c.b16 %v3384, %v3383
        %v3582 = vpack.c.b16 %v3386, %v3385
        %v3583 = vpack.c.b16 %v3388, %v3387
        %v3584 = vpack.c.b16 %v3390, %v3389
        %v3585 = vpack.c.b16 %v3392, %v3391
        %v3586 = vpack.c.b16 %v3394, %v3393
        %v3587 = vpack.c.b16 %v3396, %v3395
        %v3588 = vpack.c.b16 %v3398, %v3397
        %v3589 = vpack.c.b16 %v3400, %v3399
        %v3590 = vpack.c.b16 %v3402, %v3401
        %v3591 = vpack.c.b16 %v3404, %v3403
        %v3592 = vpack.c.b16 %v3406, %v3405
        %v3593 = vpack.c.b16 %v3408, %v3407
        %v3594 = vpack.c.b16 %v3410, %v3409
        %v3595 = vpack.c.b16 %v3412, %v3411
        %v3596 = vpack.c.b16 %v3414, %v3413
        %v3597 = vpack.c.b16 %v3416, %v3415
        %v3598 = vpack.c.b16 %v3418, %v3417
        %v3599 = vpack.c.b16 %v3420, %v3419
        %v3600 = vpack.c.b16 %v3422, %v3421
        %v3601 = vpack.c.b16 %v3424, %v3423
        %v3602 = vpack.c.b16 %v3426, %v3425
        %v3603 = vpack.c.b16 %v3428, %v3427
        %v3604 = vpack.c.b16 %v3430, %v3429
        %v3605 = vpack.c.b16 %v3432, %v3431
        %v3606 = vpack.c.b16 %v3434, %v3433
        %v3607 = vpack.c.b16 %v3436, %v3435
        %v3608 = vpack.c.b16 %v3438, %v3437
        %v3609 = vpack.c.b16 %v3440, %v3439
        %v3610 = vpack.c.b16 %v3442, %v3441
        %v3611 = vpack.c.b16 %v3444, %v3443
        %v3612 = vpack.c.b16 %v3446, %v3445
        %v3613 = vpack.c.b16 %v3448, %v3447
        %v3614 = vpack.c.b16 %v3450, %v3449
        %v3615 = vpack.c.b16 %v3452, %v3451
        %v3616 = vpack.c.b16 %v3454, %v3453
        %v3617 = vpack.c.b16 %v3456, %v3455
        %v3618 = vpack.c.b16 %v3458, %v3457
        %v3619 = vpack.c.b16 %v3460, %v3459
        %v3620 = vpack.c.b16 %v3462, %v3461
        %v3621 = vpack.c.b16 %v3464, %v3463
        %v3622 = vpack.c.b16 %v3466, %v3465
        %v3623 = vpack.c.b16 %v3468, %v3467
        %v3624 = vpack.c.b16 %v3470, %v3469
        %v3625 = vpack.c.b16 %v3472, %v3471
        %v3626 = vpack.c.b16 %v3474, %v3473
        %v3627 = vpack.c.b16 %v3476, %v3475
        %v3628 = vpack.c.b16 %v3478, %v3477
        %v3629 = vpack.c.b16 %v3480, %v3479
        %v3630 = vpack.c.b16 %v3482, %v3481
        %v3631 = vpack.c.b16 %v3484, %v3483
        %v3632 = vpack.c.b16 %v3486, %v3485
        %v3633 = vpack.c.b16 %v3488, %v3487
        %v3634 = vpack.c.b16 %v3490, %v3489
        %v3635 = vpack.c.b16 %v3492, %v3491
        %v3636 = vpack.c.b16 %v3494, %v3493
        %v3637 = vpack.c.b16 %v3496, %v3495
        %v3638 = vpack.c.b16 %v3498, %v3497
        %v3639 = vpack.c.b16 %v3500, %v3499
        %v3640 = vpack.c.b16 %v3502, %v3501
        %v3641 = vpack.c.b16 %v3504, %v3503
        %v3642 = vpack.c.b16 %v3506, %v3505
        %v3643 = vpack.c.b16 %v3508, %v3507
        %v3644 = vpack.c.b16 %v3510, %v3509
        %v3645 = vpack.c.b16 %v3512, %v3511
        %v3646 = vpack.c.b16 %v3514, %v3513
        %v3647 = vpack.c.b16 %v3516, %v3515
        %v3648 = vpack.c.b16 %v3518, %v3517
        %v3649 = vpack.c.b16 %v3520, %v3519
        %v3650 = vpack.c.b16 %v3522, %v3521
        %3779 = vmatprep.subr.bf16.mxu0 0
        %3780 = vmatpush1.bf16.msra.mxu0 %v3530
        %3781 = vmatprep.subr.bf16.mxu0 0
        %3782 = vmatpush1.bf16.msra.mxu0 %v3529
        %3783 = vmatprep.subr.bf16.mxu0 0
        %3784 = vmatpush1.bf16.msra.mxu0 %v3528
        %3785 = vmatprep.subr.bf16.mxu0 0
        %3786 = vmatpush1.bf16.msra.mxu0 %v3527
        %3787 = vmatprep.subr.bf16.mxu0 0
        %3788 = vmatpush1.bf16.msra.mxu0 %v3526
        %3789 = vmatprep.subr.bf16.mxu0 0
        %3790 = vmatpush1.bf16.msra.mxu0 %v3525
        %3791 = vmatprep.subr.bf16.mxu0 0
        %3792 = vmatpush1.bf16.msra.mxu0 %v3524
        %3793 = vmatprep.subr.bf16.mxu0 0
        %3794 = vmatpush1.bf16.msra.mxu0 %v3523
        %3795 = vmatprep.subr.bf16.mxu0 0
        %3796 = vmatpush2.bf16.msra.mxu0 %v3538
        %3797 = vmatprep.subr.bf16.mxu0 0
        %3798 = vmatpush2.bf16.msra.mxu0 %v3537
        %3799 = vmatprep.subr.bf16.mxu0 0
        %3800 = vmatpush2.bf16.msra.mxu0 %v3536
        %3801 = vmatprep.subr.bf16.mxu0 0
        %3802 = vmatpush2.bf16.msra.mxu0 %v3535
        %3803 = vmatprep.subr.bf16.mxu0 0
        %3804 = vmatpush2.bf16.msra.mxu0 %v3534
        %3805 = vmatprep.subr.bf16.mxu0 0
        %3806 = vmatpush2.bf16.msra.mxu0 %v3533
        %3807 = vmatprep.subr.bf16.mxu0 0
        %3808 = vmatpush2.bf16.msra.mxu0 %v3532
        %3809 = vmatprep.subr.bf16.mxu0 0
        %3810 = vmatpush2.bf16.msra.mxu0 %v3531
        %3811 = vmatprep.mubr.bf16.mxu0 %v2735
        %3812 = vmatmul.mubr.bf16.gmra.mxu0 %v2734
        %v3813 = vpop.f32.mrf.mxu0
        %v3814 = vadd.f32 %v3010, %v3813
        %v3815 = vpop.f32.mrf.mxu0
        %v3816 = vpop.f32.mrf.mxu0
        %v3817 = vadd.f32 %v3010, %v3816
        %v3818 = vpop.f32.mrf.mxu0
        %3819 = vdwg.mxu0
        %3820 = vmatprep.subr.bf16.mxu0 0
        %3821 = vmatpush1.bf16.msra.mxu0 %v3546
        %3822 = vmatprep.subr.bf16.mxu0 0
        %3823 = vmatpush1.bf16.msra.mxu0 %v3545
        %3824 = vmatprep.subr.bf16.mxu0 0
        %3825 = vmatpush1.bf16.msra.mxu0 %v3544
        %3826 = vmatprep.subr.bf16.mxu0 0
        %3827 = vmatpush1.bf16.msra.mxu0 %v3543
        %3828 = vmatprep.subr.bf16.mxu0 0
        %3829 = vmatpush1.bf16.msra.mxu0 %v3542
        %3830 = vmatprep.subr.bf16.mxu0 0
        %3831 = vmatpush1.bf16.msra.mxu0 %v3541
        %3832 = vmatprep.subr.bf16.mxu0 0
        %3833 = vmatpush1.bf16.msra.mxu0 %v3540
        %3834 = vmatprep.subr.bf16.mxu0 0
        %3835 = vmatpush1.bf16.msra.mxu0 %v3539
        %3836 = vmatprep.subr.bf16.mxu0 0
        %3837 = vmatpush2.bf16.msra.mxu0 %v3554
        %3838 = vmatprep.subr.bf16.mxu0 0
        %3839 = vmatpush2.bf16.msra.mxu0 %v3553
        %3840 = vmatprep.subr.bf16.mxu0 0
        %3841 = vmatpush2.bf16.msra.mxu0 %v3552
        %3842 = vmatprep.subr.bf16.mxu0 0
        %3843 = vmatpush2.bf16.msra.mxu0 %v3551
        %3844 = vmatprep.subr.bf16.mxu0 0
        %3845 = vmatpush2.bf16.msra.mxu0 %v3550
        %3846 = vmatprep.subr.bf16.mxu0 0
        %3847 = vmatpush2.bf16.msra.mxu0 %v3549
        %3848 = vmatprep.subr.bf16.mxu0 0
        %3849 = vmatpush2.bf16.msra.mxu0 %v3548
        %3850 = vmatprep.subr.bf16.mxu0 0
        %3851 = vmatpush2.bf16.msra.mxu0 %v3547
        %3852 = vmatprep.mubr.bf16.mxu0 %v2737
        %3853 = vmatmul.mubr.bf16.gmra.mxu0 %v2736
        %v3854 = vpop.f32.mrf.mxu0
        %v3855 = vadd.f32 %v3814, %v3854
        %v3856 = vpop.f32.mrf.mxu0
        %v3857 = vpop.f32.mrf.mxu0
        %v3858 = vadd.f32 %v3817, %v3857
        %v3859 = vpop.f32.mrf.mxu0
        %3860 = vdwg.mxu0
        %3861 = vmatprep.subr.bf16.mxu0 0
        %3862 = vmatpush1.bf16.msra.mxu0 %v3562
        %3863 = vmatprep.subr.bf16.mxu0 0
        %3864 = vmatpush1.bf16.msra.mxu0 %v3561
        %3865 = vmatprep.subr.bf16.mxu0 0
        %3866 = vmatpush1.bf16.msra.mxu0 %v3560
        %3867 = vmatprep.subr.bf16.mxu0 0
        %3868 = vmatpush1.bf16.msra.mxu0 %v3559
        %3869 = vmatprep.subr.bf16.mxu0 0
        %3870 = vmatpush1.bf16.msra.mxu0 %v3558
        %3871 = vmatprep.subr.bf16.mxu0 0
        %3872 = vmatpush1.bf16.msra.mxu0 %v3557
        %3873 = vmatprep.subr.bf16.mxu0 0
        %3874 = vmatpush1.bf16.msra.mxu0 %v3556
        %3875 = vmatprep.subr.bf16.mxu0 0
        %3876 = vmatpush1.bf16.msra.mxu0 %v3555
        %3877 = vmatprep.subr.bf16.mxu0 0
        %3878 = vmatpush2.bf16.msra.mxu0 %v3570
        %3879 = vmatprep.subr.bf16.mxu0 0
        %3880 = vmatpush2.bf16.msra.mxu0 %v3569
        %3881 = vmatprep.subr.bf16.mxu0 0
        %3882 = vmatpush2.bf16.msra.mxu0 %v3568
        %3883 = vmatprep.subr.bf16.mxu0 0
        %3884 = vmatpush2.bf16.msra.mxu0 %v3567
        %3885 = vmatprep.subr.bf16.mxu0 0
        %3886 = vmatpush2.bf16.msra.mxu0 %v3566
        %3887 = vmatprep.subr.bf16.mxu0 0
        %3888 = vmatpush2.bf16.msra.mxu0 %v3565
        %3889 = vmatprep.subr.bf16.mxu0 0
        %3890 = vmatpush2.bf16.msra.mxu0 %v3564
        %3891 = vmatprep.subr.bf16.mxu0 0
        %3892 = vmatpush2.bf16.msra.mxu0 %v3563
        %3893 = vmatprep.mubr.bf16.mxu0 %v2739
        %3894 = vmatmul.mubr.bf16.gmra.mxu0 %v2738
        %v3895 = vpop.f32.mrf.mxu0
        %v3896 = vadd.f32 %v3855, %v3895
        %v3897 = vpop.f32.mrf.mxu0
        %v3898 = vpop.f32.mrf.mxu0
        %v3899 = vadd.f32 %v3858, %v3898
        %v3900 = vpop.f32.mrf.mxu0
        %3901 = vdwg.mxu0
        %3902 = vmatprep.subr.bf16.mxu0 0
        %3903 = vmatpush1.bf16.msra.mxu0 %v3578
        %3904 = vmatprep.subr.bf16.mxu0 0
        %3905 = vmatpush1.bf16.msra.mxu0 %v3577
        %3906 = vmatprep.subr.bf16.mxu0 0
        %3907 = vmatpush1.bf16.msra.mxu0 %v3576
        %3908 = vmatprep.subr.bf16.mxu0 0
        %3909 = vmatpush1.bf16.msra.mxu0 %v3575
        %3910 = vmatprep.subr.bf16.mxu0 0
        %3911 = vmatpush1.bf16.msra.mxu0 %v3574
        %3912 = vmatprep.subr.bf16.mxu0 0
        %3913 = vmatpush1.bf16.msra.mxu0 %v3573
        %3914 = vmatprep.subr.bf16.mxu0 0
        %3915 = vmatpush1.bf16.msra.mxu0 %v3572
        %3916 = vmatprep.subr.bf16.mxu0 0
        %3917 = vmatpush1.bf16.msra.mxu0 %v3571
        %3918 = vmatprep.subr.bf16.mxu0 0
        %3919 = vmatpush2.bf16.msra.mxu0 %v3586
        %3920 = vmatprep.subr.bf16.mxu0 0
        %3921 = vmatpush2.bf16.msra.mxu0 %v3585
        %3922 = vmatprep.subr.bf16.mxu0 0
        %3923 = vmatpush2.bf16.msra.mxu0 %v3584
        %3924 = vmatprep.subr.bf16.mxu0 0
        %3925 = vmatpush2.bf16.msra.mxu0 %v3583
        %3926 = vmatprep.subr.bf16.mxu0 0
        %3927 = vmatpush2.bf16.msra.mxu0 %v3582
        %3928 = vmatprep.subr.bf16.mxu0 0
        %3929 = vmatpush2.bf16.msra.mxu0 %v3581
        %3930 = vmatprep.subr.bf16.mxu0 0
        %3931 = vmatpush2.bf16.msra.mxu0 %v3580
        %3932 = vmatprep.subr.bf16.mxu0 0
        %3933 = vmatpush2.bf16.msra.mxu0 %v3579
        %3934 = vmatprep.mubr.bf16.mxu0 %v2741
        %3935 = vmatmul.mubr.bf16.gmra.mxu0 %v2740
        %v3936 = vpop.f32.mrf.mxu0
        %v3937 = vadd.f32 %v3896, %v3936
        %v3938 = vpop.f32.mrf.mxu0
        %v3939 = vpop.f32.mrf.mxu0
        %v3940 = vadd.f32 %v3899, %v3939
        %v3941 = vpop.f32.mrf.mxu0
        %3942 = vdwg.mxu0
        %3943 = vmatprep.subr.bf16.mxu0 0
        %3944 = vmatpush1.bf16.msra.mxu0 %v3594
        %3945 = vmatprep.subr.bf16.mxu0 0
        %3946 = vmatpush1.bf16.msra.mxu0 %v3593
        %3947 = vmatprep.subr.bf16.mxu0 0
        %3948 = vmatpush1.bf16.msra.mxu0 %v3592
        %3949 = vmatprep.subr.bf16.mxu0 0
        %3950 = vmatpush1.bf16.msra.mxu0 %v3591
        %3951 = vmatprep.subr.bf16.mxu0 0
        %3952 = vmatpush1.bf16.msra.mxu0 %v3590
        %3953 = vmatprep.subr.bf16.mxu0 0
        %3954 = vmatpush1.bf16.msra.mxu0 %v3589
        %3955 = vmatprep.subr.bf16.mxu0 0
        %3956 = vmatpush1.bf16.msra.mxu0 %v3588
        %3957 = vmatprep.subr.bf16.mxu0 0
        %3958 = vmatpush1.bf16.msra.mxu0 %v3587
        %3959 = vmatprep.subr.bf16.mxu0 0
        %3960 = vmatpush2.bf16.msra.mxu0 %v3602
        %3961 = vmatprep.subr.bf16.mxu0 0
        %3962 = vmatpush2.bf16.msra.mxu0 %v3601
        %3963 = vmatprep.subr.bf16.mxu0 0
        %3964 = vmatpush2.bf16.msra.mxu0 %v3600
        %3965 = vmatprep.subr.bf16.mxu0 0
        %3966 = vmatpush2.bf16.msra.mxu0 %v3599
        %3967 = vmatprep.subr.bf16.mxu0 0
        %3968 = vmatpush2.bf16.msra.mxu0 %v3598
        %3969 = vmatprep.subr.bf16.mxu0 0
        %3970 = vmatpush2.bf16.msra.mxu0 %v3597
        %3971 = vmatprep.subr.bf16.mxu0 0
        %3972 = vmatpush2.bf16.msra.mxu0 %v3596
        %3973 = vmatprep.subr.bf16.mxu0 0
        %3974 = vmatpush2.bf16.msra.mxu0 %v3595
        %3975 = vmatprep.mubr.bf16.mxu0 %v2743
        %3976 = vmatmul.mubr.bf16.gmra.mxu0 %v2742
        %v3977 = vpop.f32.mrf.mxu0
        %v3978 = vadd.f32 %v3937, %v3977
        %v3979 = vpop.f32.mrf.mxu0
        %v3980 = vpop.f32.mrf.mxu0
        %v3981 = vadd.f32 %v3940, %v3980
        %v3982 = vpop.f32.mrf.mxu0
        %3983 = vdwg.mxu0
        %3984 = vmatprep.subr.bf16.mxu0 0
        %3985 = vmatpush1.bf16.msra.mxu0 %v3610
        %3986 = vmatprep.subr.bf16.mxu0 0
        %3987 = vmatpush1.bf16.msra.mxu0 %v3609
        %3988 = vmatprep.subr.bf16.mxu0 0
        %3989 = vmatpush1.bf16.msra.mxu0 %v3608
        %3990 = vmatprep.subr.bf16.mxu0 0
        %3991 = vmatpush1.bf16.msra.mxu0 %v3607
        %3992 = vmatprep.subr.bf16.mxu0 0
        %3993 = vmatpush1.bf16.msra.mxu0 %v3606
        %3994 = vmatprep.subr.bf16.mxu0 0
        %3995 = vmatpush1.bf16.msra.mxu0 %v3605
        %3996 = vmatprep.subr.bf16.mxu0 0
        %3997 = vmatpush1.bf16.msra.mxu0 %v3604
        %3998 = vmatprep.subr.bf16.mxu0 0
        %3999 = vmatpush1.bf16.msra.mxu0 %v3603
        %4000 = vmatprep.subr.bf16.mxu0 0
        %4001 = vmatpush2.bf16.msra.mxu0 %v3618
        %4002 = vmatprep.subr.bf16.mxu0 0
        %4003 = vmatpush2.bf16.msra.mxu0 %v3617
        %4004 = vmatprep.subr.bf16.mxu0 0
        %4005 = vmatpush2.bf16.msra.mxu0 %v3616
        %4006 = vmatprep.subr.bf16.mxu0 0
        %4007 = vmatpush2.bf16.msra.mxu0 %v3615
        %4008 = vmatprep.subr.bf16.mxu0 0
        %4009 = vmatpush2.bf16.msra.mxu0 %v3614
        %4010 = vmatprep.subr.bf16.mxu0 0
        %4011 = vmatpush2.bf16.msra.mxu0 %v3613
        %4012 = vmatprep.subr.bf16.mxu0 0
        %4013 = vmatpush2.bf16.msra.mxu0 %v3612
        %4014 = vmatprep.subr.bf16.mxu0 0
        %4015 = vmatpush2.bf16.msra.mxu0 %v3611
        %4016 = vmatprep.mubr.bf16.mxu0 %v2745
        %4017 = vmatmul.mubr.bf16.gmra.mxu0 %v2744
        %v4018 = vpop.f32.mrf.mxu0
        %v4019 = vadd.f32 %v3978, %v4018
        %v4020 = vpop.f32.mrf.mxu0
        %v4021 = vpop.f32.mrf.mxu0
        %v4022 = vadd.f32 %v3981, %v4021
        %v4023 = vpop.f32.mrf.mxu0
        %4024 = vdwg.mxu0
        %4025 = vmatprep.subr.bf16.mxu0 0
        %4026 = vmatpush1.bf16.msra.mxu0 %v3626
        %4027 = vmatprep.subr.bf16.mxu0 0
        %4028 = vmatpush1.bf16.msra.mxu0 %v3625
        %4029 = vmatprep.subr.bf16.mxu0 0
        %4030 = vmatpush1.bf16.msra.mxu0 %v3624
        %4031 = vmatprep.subr.bf16.mxu0 0
        %4032 = vmatpush1.bf16.msra.mxu0 %v3623
        %4033 = vmatprep.subr.bf16.mxu0 0
        %4034 = vmatpush1.bf16.msra.mxu0 %v3622
        %4035 = vmatprep.subr.bf16.mxu0 0
        %4036 = vmatpush1.bf16.msra.mxu0 %v3621
        %4037 = vmatprep.subr.bf16.mxu0 0
        %4038 = vmatpush1.bf16.msra.mxu0 %v3620
        %4039 = vmatprep.subr.bf16.mxu0 0
        %4040 = vmatpush1.bf16.msra.mxu0 %v3619
        %4041 = vmatprep.subr.bf16.mxu0 0
        %4042 = vmatpush2.bf16.msra.mxu0 %v3634
        %4043 = vmatprep.subr.bf16.mxu0 0
        %4044 = vmatpush2.bf16.msra.mxu0 %v3633
        %4045 = vmatprep.subr.bf16.mxu0 0
        %4046 = vmatpush2.bf16.msra.mxu0 %v3632
        %4047 = vmatprep.subr.bf16.mxu0 0
        %4048 = vmatpush2.bf16.msra.mxu0 %v3631
        %4049 = vmatprep.subr.bf16.mxu0 0
        %4050 = vmatpush2.bf16.msra.mxu0 %v3630
        %4051 = vmatprep.subr.bf16.mxu0 0
        %4052 = vmatpush2.bf16.msra.mxu0 %v3629
        %4053 = vmatprep.subr.bf16.mxu0 0
        %4054 = vmatpush2.bf16.msra.mxu0 %v3628
        %4055 = vmatprep.subr.bf16.mxu0 0
        %4056 = vmatpush2.bf16.msra.mxu0 %v3627
        %4057 = vmatprep.mubr.bf16.mxu0 %v2747
        %4058 = vmatmul.mubr.bf16.gmra.mxu0 %v2746
        %v4059 = vpop.f32.mrf.mxu0
        %v4060 = vadd.f32 %v4019, %v4059
        %v4061 = vpop.f32.mrf.mxu0
        %v4062 = vpop.f32.mrf.mxu0
        %v4063 = vadd.f32 %v4022, %v4062
        %v4064 = vpop.f32.mrf.mxu0
        %4065 = vdwg.mxu0
        %4066 = vmatprep.subr.bf16.mxu0 0
        %4067 = vmatpush1.bf16.msra.mxu0 %v3642
        %4068 = vmatprep.subr.bf16.mxu0 0
        %4069 = vmatpush1.bf16.msra.mxu0 %v3641
        %4070 = vmatprep.subr.bf16.mxu0 0
        %4071 = vmatpush1.bf16.msra.mxu0 %v3640
        %4072 = vmatprep.subr.bf16.mxu0 0
        %4073 = vmatpush1.bf16.msra.mxu0 %v3639
        %4074 = vmatprep.subr.bf16.mxu0 0
        %4075 = vmatpush1.bf16.msra.mxu0 %v3638
        %4076 = vmatprep.subr.bf16.mxu0 0
        %4077 = vmatpush1.bf16.msra.mxu0 %v3637
        %4078 = vmatprep.subr.bf16.mxu0 0
        %4079 = vmatpush1.bf16.msra.mxu0 %v3636
        %4080 = vmatprep.subr.bf16.mxu0 0
        %4081 = vmatpush1.bf16.msra.mxu0 %v3635
        %4082 = vmatprep.subr.bf16.mxu0 0
        %4083 = vmatpush2.bf16.msra.mxu0 %v3650
        %4084 = vmatprep.subr.bf16.mxu0 0
        %4085 = vmatpush2.bf16.msra.mxu0 %v3649
        %4086 = vmatprep.subr.bf16.mxu0 0
        %4087 = vmatpush2.bf16.msra.mxu0 %v3648
        %4088 = vmatprep.subr.bf16.mxu0 0
        %4089 = vmatpush2.bf16.msra.mxu0 %v3647
        %4090 = vmatprep.subr.bf16.mxu0 0
        %4091 = vmatpush2.bf16.msra.mxu0 %v3646
        %4092 = vmatprep.subr.bf16.mxu0 0
        %4093 = vmatpush2.bf16.msra.mxu0 %v3645
        %4094 = vmatprep.subr.bf16.mxu0 0
        %4095 = vmatpush2.bf16.msra.mxu0 %v3644
        %4096 = vmatprep.subr.bf16.mxu0 0
        %4097 = vmatpush2.bf16.msra.mxu0 %v3643
        %4098 = vmatprep.mubr.bf16.mxu0 %v2749
        %4099 = vmatmul.mubr.bf16.gmra.mxu0 %v2748
        %v4100 = vpop.f32.mrf.mxu0
        %v4101 = vadd.f32 %v4060, %v4100
        %v4102 = vpop.f32.mrf.mxu0
        %v4103 = vpop.f32.mrf.mxu0
        %v4104 = vadd.f32 %v4063, %v4103
        %v4105 = vpop.f32.mrf.mxu0
        %4106 = vdwg.mxu0
        %v4107 = vadd.f32 %v2076, %v4101
        %v4108 = vadd.f32 %v2077, %v4104
        %v4109 = vld [vmem:[%s492 + $0x4] sm:$0x1]
        %v4110 = vld [vmem:[%s492 + $0x5] sm:$0x1]
        %v4111 = vsel %vm545, %v4107, 0.0
        %4112 = vadd.xlane.f32.xlu0 %v4111
        %v4113 = vpop.xlane.xlu0 %4112
        %v4114 = vsel %vm545, %v4108, 0.0
        %4115 = vadd.xlane.f32.xlu0 %v4114
        %v4116 = vpop.xlane.xlu0 %4115
        %v4117 = vmul.f32 %v4113, %v2045
        %v4118 = vmul.f32 %v4116, %v2045
        %v4119 = vsub.f32 %v4107, %v4117
        %v4120 = vsub.f32 %v4108, %v4118
        %v4121 = vmul.f32 %v4119, %v4119
        %v4122 = vmul.f32 %v4120, %v4120
        %v4123 = vsel %vm545, %v4121, 0.0
        %4124 = vadd.xlane.f32.xlu0 %v4123
        %v4125 = vpop.xlane.xlu0 %4124
        %v4126 = vsel %vm545, %v4122, 0.0
        %4127 = vadd.xlane.f32.xlu0 %v4126
        %v4128 = vpop.xlane.xlu0 %4127
        %v4129 = vmul.f32 %v4125, %v2045
        %v4130 = vmul.f32 %v4128, %v2045
        %v4131 = vadd.f32 %v4129, 1e-05
        %v4132 = vadd.f32 %v4130, 1e-05
        %v4133 = vrsqrt.pop %v4131
        %v4134 = vrsqrt.pop %v4132
        %v4135 = vmul.f32 %v4119, %v4133
        %v4136 = vmul.f32 %v4120, %v4134
        %v4137 = vlaneseq
        %v4138 = vshrl.u32 %v4137, 7
        %v4139 = vsub.s32 0, %v4138
        %v4140 = vrot.slane %v4109, %v4139
        %v4141 = vmul.f32 %v4135, %v4140
        %v4142 = vmul.f32 %v4136, %v4140
        %v4143 = vlaneseq
        %v4144 = vshrl.u32 %v4143, 7
        %v4145 = vsub.s32 0, %v4144
        %v4146 = vrot.slane %v4110, %v4145
        %v4147 = vadd.f32 %v4141, %v4146
        %v4148 = vadd.f32 %v4142, %v4146
        %4149 = vst.msk [vmem:[#allocation2] sm:$0xff] %vm545, %v4147
        %4150 = vst.msk [vmem:[#allocation2 + $0x8] sm:$0xff] %vm545, %v4148
        %p4151 = scmp.eq.s32.totalorder %s26, 1
        // Predicated region
        $region69: #{tpu_custom_call.1} parent=63 // pred_check
          %p4152 = pneg %p4151
        $region70: #{tpu_custom_call.1} parent=63 // pred_check_branch
          %4154 = sbr.rel (%p4152) target = $region72
        $region71: #{tpu_custom_call.1} parent=63 // pred_region
          %4155 = vst.msk [vmem:[#allocation5] sm:$0xff] %vm545, %v4147
          %4156 = vst.msk [vmem:[#allocation5 + $0x8] sm:$0xff] %vm545, %v4148
          %v4157 = vpack.c.bf16 %v4148, %v4147
          %v4158 = vld [vmem:[%s9] sm:$0xf]
          %v4159 = vld [vmem:[%s9 + $0x4] sm:$0xf]
          %v4160 = vld [vmem:[%s9 + $0x8] sm:$0xf]
          %v4161 = vld [vmem:[%s9 + $0xc] sm:$0xf]
          %v4162 = vld [vmem:[%s10] sm:$0x1]
          %v4164 = vlaneseq
          %v4165 = vshrl.u32 %v4164, 7
          %v4166 = vsub.s32 0, %v4165
          %v4167 = vrot.slane %v4162, %v4166
          %v4173 = vunpack.c.l.b16 %v4158
          %v4174 = vunpack.c.l.b16 %v4159
          %v4175 = vunpack.c.l.b16 %v4160
          %v4176 = vunpack.c.l.b16 %v4161
          %v4177 = vpack.c.b16 %v4174, %v4173
          %v4178 = vpack.c.b16 %v4176, %v4175
          %v4182 = vsel %vm545, %v4157, 0
          %4184 = vmatprep.subr.bf16.mxu0 0
          %4185 = vmatpush1.bf16.msra.mxu0 0
          %4186 = vmatprep.subr.bf16.mxu0 0
          %4187 = vmatpush1.bf16.msra.mxu0 0
          %4188 = vmatprep.subr.bf16.mxu0 0
          %4189 = vmatpush1.bf16.msra.mxu0 0
          %4190 = vmatprep.subr.bf16.mxu0 0
          %4191 = vmatpush1.bf16.msra.mxu0 0
          %4192 = vmatprep.subr.bf16.mxu0 0
          %4193 = vmatpush1.bf16.msra.mxu0 0
          %4194 = vmatprep.subr.bf16.mxu0 0
          %4195 = vmatpush1.bf16.msra.mxu0 0
          %4196 = vmatprep.subr.bf16.mxu0 0
          %4197 = vmatpush1.bf16.msra.mxu0 %v4178
          %4198 = vmatprep.subr.bf16.mxu0 0
          %4199 = vmatpush1.bf16.msra.mxu0 %v4177
          %4200 = vmatprep.subr.bf16.mxu0 0
          %4201 = vmatpush2.bf16.msra.mxu0 0
          %4202 = vmatprep.subr.bf16.mxu0 0
          %4203 = vmatpush2.bf16.msra.mxu0 0
          %4204 = vmatprep.subr.bf16.mxu0 0
          %4205 = vmatpush2.bf16.msra.mxu0 0
          %4206 = vmatprep.subr.bf16.mxu0 0
          %4207 = vmatpush2.bf16.msra.mxu0 0
          %4208 = vmatprep.subr.bf16.mxu0 0
          %4209 = vmatpush2.bf16.msra.mxu0 0
          %4210 = vmatprep.subr.bf16.mxu0 0
          %4211 = vmatpush2.bf16.msra.mxu0 0
          %4212 = vmatprep.subr.bf16.mxu0 0
          %4213 = vmatpush2.bf16.msra.mxu0 0
          %4214 = vmatprep.subr.bf16.mxu0 0
          %4215 = vmatpush2.bf16.msra.mxu0 0
          %4216 = vmatprep.mubr.bf16.mxu0 0
          %4217 = vmatmul.mubr.bf16.gmra.mxu0 %v4182
          %v4218 = vpop.f32.mrf.mxu0
          %v4219 = vadd.f32 %v4167, %v4218
          %v4220 = vpop.f32.mrf.mxu0
          %v4221 = vpop.f32.mrf.mxu0
          %v4222 = vadd.f32 %v4167, %v4221
          %v4223 = vpop.f32.mrf.mxu0
          %4224 = vdwg.mxu0
          %4225 = vst [vmem:[#allocation3] sm:$0xff] %v4219
          %4226 = vst [vmem:[#allocation3 + $0x8] sm:$0xff] %v4222
        $region72: #{tpu_custom_call.1} parent=63 // pred_fallthru
          _
        // Predicated region
        $region73: #{tpu_custom_call.1} parent=63 // pred_check
          %p4227 = pneg %p305
        $region74: #{tpu_custom_call.1} parent=63 // pred_check_branch
          %4229 = sbr.rel (%p4227) target = $region76
        $region75: #{tpu_custom_call.1} parent=63 // pred_region
          %s4231 = ssub.s32 256, 256
          %4232 = vsyncadd [#allocation4], %s4231
          %s4233 = sshll.u32 [#allocation3], 4
          %s4234 = int_to_ptr.vmem [resolvable:$true] %s4233
          %4239 = dma.vmem_to_hbm [thread:$0]  %s4234, 256, %s11, [#allocation4], 128, 128, 8
        $region76: #{tpu_custom_call.1} parent=63 // pred_fallthru
          _
        // Predicated region
        $region77: #{tpu_custom_call.1} parent=63 // pred_check
          %p4240 = pneg %p326
        $region78: #{tpu_custom_call.1} parent=63 // pred_check_branch
          %4242 = sbr.rel (%p4240) target = $region80
        $region79: #{tpu_custom_call.1} parent=63 // pred_region
          %s4244 = ssub.s32 256, 256
          %4245 = vsyncadd [#allocation6], %s4244
          %s4246 = sshll.u32 [#allocation5], 4
          %s4247 = int_to_ptr.vmem [resolvable:$true] %s4246
          %4252 = dma.vmem_to_hbm [thread:$0]  %s4247, 256, %s12, [#allocation6], 128, 128, 8
        $region80: #{tpu_custom_call.1} parent=63 // pred_fallthru
          _
        // Predicated region
        $region81: #{tpu_custom_call.1} parent=63 // pred_check
          %p4253 = pneg %p305
        $region82: #{tpu_custom_call.1} parent=63 // pred_check_branch
          %4255 = sbr.rel (%p4253) target = $region84
        $region83: #{tpu_custom_call.1} parent=63 // pred_region
          %4256 = dma.done [#allocation4], 256
        $region84: #{tpu_custom_call.1} parent=63 // pred_fallthru
          _
        // Predicated region
        $region85: #{tpu_custom_call.1} parent=63 // pred_check
          %p4257 = pneg %p326
        $region86: #{tpu_custom_call.1} parent=63 // pred_check_branch
          %4259 = sbr.rel (%p4257) target = $region88
        $region87: #{tpu_custom_call.1} parent=63 // pred_region
          %4260 = dma.done [#allocation6], 256
        $region88: #{tpu_custom_call.1} parent=63 // pred_fallthru
          _
      $region64: #{tpu_custom_call.1} parent=5 // pred_fallthru
        _
      %p4261 = scmp.le.s32.totalorder 2, %s21
      // Predicated region
      $region89: #{tpu_custom_call.1} parent=5 // pred_check
        %p4262 = pneg %p4261
      $region90: #{tpu_custom_call.1} parent=5 // pred_check_branch
        %4264 = sbr.rel (%p4262) target = $region92
      $region91: #{tpu_custom_call.1} parent=5 // pred_region
        %s4265 = ssub.s32 %s21, 2
      $region92: #{tpu_custom_call.1} parent=5 // pred_fallthru
        _
    $region6: #{tpu_custom_call.1} parent=1 // loop_footer
      %s25 = sadd.s32 1, %s21
    $region7: #{tpu_custom_call.1} parent=1 // loop_footer_branch
      %20 = sbr.rel target = $region3
    $region8: #{tpu_custom_call.1} parent=1 // loop_exit
      _
    %4266 = vsyncpa [#allocation4], 1
    %s4267 = scalar_lea.sflag [#allocation4], 1
    %4268 = vsyncpa %s4267, 1
    %4269 = vsyncpa [#allocation6], 1

</llo_original>
